<compile_context>
chip_gen: v7x
topology: tpu7x:2x2x1
jax: 0.10.0
libtpu: 0.0.40
codegen_flags: <defaults>
</compile_context>

<pallas_src>
import functools

import jax
import jax.numpy as jnp
from jax.experimental import pallas as pl
from jax.experimental.pallas import tpu as pltpu

H_STEP = 0.05


def _activation(name, x):
    if name == "tanh":
        return jnp.tanh(x)
    if name == "sigmoid":
        return jax.nn.sigmoid(x)
    if name == "relu":
        return jnp.maximum(x, 0.0)
    if name == "softplus":
        return jnp.logaddexp(x, 0.0)
    raise ValueError(f"unknown activation {name}")


def rk4net_kernel(x_ref, w0_ref, w_ref, b_ref, wc_ref, bc_ref,
                  cls_ref, xt_ref, *, L, act_name, compute_dtype, n_sub):
    """One batch tile, feature-major layout (batch = lane axis).

    x_ref   : (d, TILE_N)            input tile (transposed)
    w0_ref  : (d_hat, d)             input-layer weight (W0^T), compute_dtype
    w_ref   : (L, d_hat, d_hat)      RK4-layer weights (W_l^T), compute_dtype
    b_ref   : (L, d_hat, 1)          RK4-layer biases (f32)
    wc_ref  : (K, d_hat)             classifier weight (Wc^T), compute_dtype
    bc_ref  : (K, 1)                 classifier bias (f32)
    cls_ref : (K, TILE_N)            out: classifier(X)  (lane-dense)
    xt_ref  : (L+1, d_hat, TILE_N)   out: features after every layer (lane-dense)
    """
    h = jnp.float32(H_STEP)
    f32 = jnp.float32
    tile_n = x_ref.shape[1]
    d_hat = w0_ref.shape[0]
    K = wc_ref.shape[0]
    sub = tile_n // n_sub
    act_in_bf16 = jnp.dtype(compute_dtype) == jnp.dtype(jnp.bfloat16)

    def act(y):  # y is f32; optionally run the transcendental in bf16 (v6e/v7x EUP)
        if act_in_bf16:
            y = y.astype(jnp.bfloat16)
        return _activation(act_name, y).astype(f32)

    # Input layer (bias-free space augmentation), per independent sub-block.
    # TODO(synk): pltpu.matmul_push_rhs/matmul_acc_lhs/matmul_pop could pin the
    # layer weight in the MXU weight registers across the 4 RK4 stages; only
    # pays off for d_hat >= 128, so it is not used here.
    w0 = w0_ref[...]                                        # (d_hat, d)
    Z = []
    for j in range(n_sub):
        xs = x_ref[:, j * sub:(j + 1) * sub].astype(compute_dtype)
        zj = jnp.dot(w0, xs, preferred_element_type=f32)    # (d_hat, sub)
        xt_ref[0, :, j * sub:(j + 1) * sub] = zj.astype(xt_ref.dtype)
        Z.append(zj)

    # L RK4 residual layers (L small & static -> unrolled).  The n_sub
    # sub-block chains are independent, so MXU matmuls of one overlap the EUP
    # activations of the other inside the same basic block.
    for l in range(L):
        Wl = w_ref[l]                                            # (d_hat, d_hat)
        bl = jnp.broadcast_to(b_ref[l], (d_hat, sub))            # hoisted: once/layer

        def layer(z, Wl=Wl, bl=bl):
            return jnp.dot(Wl, z.astype(compute_dtype),
                           preferred_element_type=f32) + bl

        newZ = []
        for j in range(n_sub):
            z = Z[j]
            # Incremental RK4 accumulation: few live (d_hat, sub) temporaries.
            f = act(layer(z))
            acc = (h / 6.0) * f
            f = act(layer(z + (0.5 * h) * f))
            acc = acc + (h / 3.0) * f
            f = act(layer(z + (0.5 * h) * f))
            acc = acc + (h / 3.0) * f
            f = act(layer(z + h * f))
            zn = z + acc + (h / 6.0) * f
            xt_ref[l + 1, :, j * sub:(j + 1) * sub] = zn.astype(xt_ref.dtype)
            newZ.append(zn)
        Z = newZ

    # Classifier (affine).  Hypothesis (sigmoid/softmax) is done in the wrapper.
    wc = wc_ref[...]                                             # (K, d_hat)
    bc = jnp.broadcast_to(bc_ref[...], (K, sub))
    for j in range(n_sub):
        cls_ref[:, j * sub:(j + 1) * sub] = (
            jnp.dot(wc, Z[j].astype(compute_dtype), preferred_element_type=f32) + bc)


def _tpu_vmem_capacity_bytes():
    """Physical VMEM per TensorCore (generation-aware, conservative fallback)."""
    try:
        info = pltpu.get_tpu_info()
        cap = getattr(info, "vmem_capacity_bytes", None)
        if cap:
            return int(cap)
    except Exception:
        pass
    return 64 << 20  # v7x-sized fallback: safe on every generation


def _auto_tile_n(N, d, d_hat, K, L, trace_dtype, compute_dtype, budget_bytes):
    """Largest multiple-of-256 batch tile whose working set fits the budget."""
    ts = jnp.dtype(trace_dtype).itemsize
    ws = jnp.dtype(compute_dtype).itemsize
    # Per-batch-column bytes: double-buffered trace/input/cls streams plus
    # ~10 live f32 (d_hat,) RK4 temporaries (state, acc, stage, layer temp, headroom).
    per_col = 2 * (L + 1) * d_hat * ts + 2 * d * 4 + 2 * K * 4 + 10 * d_hat * 4
    # Constant-index weight blocks are still double-buffered by default.
    weights = 2 * (ws * (d * d_hat + L * d_hat * d_hat + K * d_hat)
                   + 4 * (L * d_hat + K))
    avail = max(budget_bytes - weights, per_col * 256)
    tile = (avail // per_col // 256) * 256
    n_cap = -(-N // 256) * 256          # don't pad far beyond the real batch
    return int(max(256, min(2048, tile, n_cap)))


def rk4net_forward(X, params, *, L, K, act_function, tile_n=None, interleave=2,
                   trace_layout="kernel", trace_dtype=jnp.float32,
                   compute_dtype=jnp.float32, even_grid=True):
    """RK4Net forward pass.

    trace_layout="kernel" (default) returns the feature trace lane-dense as
    (L+1, d_hat, N); "torch" transposes to PyTorch's (N, d_hat, L+1) at the
    cost of an extra HBM round trip of the largest tensor.
    compute_dtype/trace_dtype=bfloat16 enable the fast bf16 datapath
    (f32 accumulation & RK4 state); keep f32 on v5e (no bf16 VPU/EUP).
    """
    compute_dtype = jnp.dtype(compute_dtype)
    trace_dtype = jnp.dtype(trace_dtype)
    N, d = X.shape
    d_hat = params["W0"].shape[1]

    cap = _tpu_vmem_capacity_bytes()
    vmem_limit = int(max(32 << 20, min((cap * 3) // 4, 100 << 20)))

    if tile_n is None:
        tile_n = _auto_tile_n(N, d, d_hat, K, L, trace_dtype, compute_dtype,
                              budget_bytes=int(vmem_limit * 0.8))
    tile_n = max(128, (int(tile_n) // 128) * 128)

    # Independent sub-block interleave (MXU/EUP overlap); each sub-block must
    # stay a multiple of 128 lanes.
    n_sub = max(1, int(interleave))
    while n_sub > 1 and (tile_n % n_sub != 0 or (tile_n // n_sub) % 128 != 0):
        n_sub -= 1

    n_tiles = -(-N // tile_n)
    if even_grid and n_tiles > 1 and n_tiles % 2 == 1:
        n_tiles += 1            # balance the two v7x TensorCores (megacore)
    n_pad = n_tiles * tile_n

    # Transposed (feature-major) operands; weight transposes/casts are tiny,
    # one-off XLA ops.
    xT = X.T.astype(jnp.float32)                                  # (d, N)
    if n_pad != N:
        xT = jnp.pad(xT, ((0, 0), (0, n_pad - N)))
    w0T = params["W0"].T.astype(compute_dtype)                    # (d_hat, d)
    wT = jnp.transpose(params["W"], (0, 2, 1)).astype(compute_dtype)
    b = params["b"].reshape(L, d_hat, 1).astype(jnp.float32)
    wcT = params["Wc"].T.astype(compute_dtype)                    # (K, d_hat)
    bc = params["bc"].reshape(K, 1).astype(jnp.float32)

    kernel = functools.partial(rk4net_kernel, L=L, act_name=act_function,
                               compute_dtype=compute_dtype, n_sub=n_sub)

    cls_t, xt = pl.pallas_call(
        kernel,
        grid=(n_tiles,),
        out_shape=(
            jax.ShapeDtypeStruct((K, n_pad), jnp.float32),
            jax.ShapeDtypeStruct((L + 1, d_hat, n_pad), trace_dtype),
        ),
        in_specs=[
            # Per-tile batch slab (lane axis = batch).
            pl.BlockSpec((d, tile_n), lambda i: (0, i)),
            # Weights/biases: constant index_map -> DMA'd once, VMEM-resident.
            # TODO(synk): pipeline_mode=pl.Buffered(1) would single-buffer these
            # constant blocks (halves resident weight VMEM for large d_hat*L);
            # left at the default pending lowering-support verification.
            pl.BlockSpec((d_hat, d), lambda i: (0, 0)),
            pl.BlockSpec((L, d_hat, d_hat), lambda i: (0, 0, 0)),
            pl.BlockSpec((L, d_hat, 1), lambda i: (0, 0, 0)),
            pl.BlockSpec((K, d_hat), lambda i: (0, 0)),
            pl.BlockSpec((K, 1), lambda i: (0, 0)),
        ],
        out_specs=(
            pl.BlockSpec((K, tile_n), lambda i: (0, i)),
            pl.BlockSpec((L + 1, d_hat, tile_n), lambda i: (0, 0, i)),
        ),
        compiler_params=pltpu.CompilerParams(
            dimension_semantics=("parallel",),   # megacore on v7x, free elsewhere
            vmem_limit_bytes=vmem_limit,         # generation-aware
        ),
    )(xT, w0T, wT, b, wcT, bc)

    cls = cls_t[:, :N].T                          # (N, K): tiny transpose
    if K == 1:
        pred = jax.nn.sigmoid(cls)                # exact hypothesis in the wrapper
    else:
        pred = jax.nn.softmax(cls, axis=1)

    xt = xt[:, :, :N]                             # (L+1, d_hat, N) lane-dense layout
    if trace_layout == "torch":
        # Compat path only: PyTorch's (N, d_hat, L+1). Re-reads/re-writes the
        # largest tensor — prefer the default "kernel" layout.
        xt = jnp.transpose(xt, (2, 1, 0))
    return pred, cls, xt


def rk4net_reference(X, params, *, L, K, act_function):
    """Pure-JAX f32 reference (mirrors the PyTorch forward)."""
    h = H_STEP
    Z = X @ params["W0"]
    feats = [Z]
    for l in range(L):
        W = params["W"][l]
        b = params["b"][l]
        layer = lambda z: z @ W + b  # noqa: E731
        f1 = _activation(act_function, layer(Z))
        f2 = _activation(act_function, layer(Z + h / 2.0 * f1))
        f3 = _activation(act_function, layer(Z + h / 2.0 * f2))
        f4 = _activation(act_function, layer(Z + h * f3))
        Z = Z + h * (f1 / 6.0 + f2 / 3.0 + f3 / 3.0 + f4 / 6.0)
        feats.append(Z)
    cls = Z @ params["Wc"] + params["bc"]
    pred = jax.nn.sigmoid(cls) if K == 1 else jax.nn.softmax(cls, axis=1)
    xt = jnp.stack(feats, axis=-1)                # (N, d_hat, L+1)
    return pred, cls, xt


def init_params(key, d, d_hat, K, L):
    """Deterministic PyTorch-Linear-style init (uniform +-1/sqrt(fan_in))."""
    k0, k1, k2, k3, k4 = jax.random.split(key, 5)
    u = lambda k, shape, fan_in: jax.random.uniform(  # noqa: E731
        k, shape, jnp.float32, -1.0 / jnp.sqrt(fan_in), 1.0 / jnp.sqrt(fan_in))
    return {
        "W0": u(k0, (d, d_hat), d),             # Linear(d, d_hat, bias=False), (in,out)
        "W":  u(k1, (L, d_hat, d_hat), d_hat),  # L x Linear(d_hat, d_hat), (in,out)
        "b":  u(k2, (L, d_hat), d_hat),
        "Wc": u(k3, (d_hat, K), d_hat),         # Linear(d_hat, K), (in,out)
        "bc": u(k4, (K,), d_hat),
    }


if __name__ == "__main__":
    N, d, d_hat, K, L = 600, 2, 32, 3, 4
    act_function = "tanh"

    key = jax.random.PRNGKey(0)
    kx, kp = jax.random.split(key)
    X = jax.random.normal(kx, (N, d), dtype=jnp.float32)
    params = init_params(kp, d, d_hat, K, L)
    pred_r, cls_r, xt_r = rk4net_reference(X, params, L=L, K=K,
                                           act_function=act_function)

    # 1) f32 path, small explicit tile: exercises the multi-tile grid, batch
    #    padding, even-grid balancing and the "torch" trace-layout compat path.
    pred, cls, xt = jax.block_until_ready(
        rk4net_forward(X, params, L=L, K=K, act_function=act_function,
                       tile_n=256, trace_layout="torch"))
    assert pred.shape == (N, K) and cls.shape == (N, K)
    assert xt.shape == (N, d_hat, L + 1)
    assert jnp.allclose(cls, cls_r, atol=1e-4, rtol=1e-4)
    assert jnp.allclose(xt, xt_r, atol=1e-4, rtol=1e-4)
    assert jnp.allclose(pred, pred_r, atol=1e-4, rtol=1e-4)

    # 2) Fast path: auto tile, kernel-native lane-dense (L+1, d_hat, N) trace,
    #    bf16 matmuls/activations/trace with f32 accumulation.
    p2, c2, x2 = jax.block_until_ready(
        rk4net_forward(X, params, L=L, K=K, act_function=act_function,
                       compute_dtype=jnp.bfloat16, trace_dtype=jnp.bfloat16))
    assert p2.shape == (N, K) and c2.shape == (N, K)
    assert x2.shape == (L + 1, d_hat, N)
    assert jnp.allclose(c2, cls_r, atol=3e-2, rtol=3e-2)
    assert jnp.allclose(x2.astype(jnp.float32),
                        jnp.transpose(xt_r, (2, 1, 0)), atol=3e-2, rtol=3e-2)
    assert jnp.allclose(p2, pred_r, atol=3e-2, rtol=3e-2)

    # 3) Binary-classification path (K=1 -> sigmoid hypothesis), relu, auto tile.
    params1 = init_params(kp, d, d_hat, 1, L)
    p1, c1, x1 = jax.block_until_ready(
        rk4net_forward(X, params1, L=L, K=1, act_function="relu",
                       trace_layout="torch"))
    p1_r, c1_r, x1_r = rk4net_reference(X, params1, L=L, K=1, act_function="relu")
    assert p1.shape == (N, 1) and c1.shape == (N, 1) and x1.shape == (N, d_hat, L + 1)
    assert jnp.allclose(p1, p1_r, atol=1e-4, rtol=1e-4)
    assert jnp.allclose(c1, c1_r, atol=1e-4, rtol=1e-4)
    assert jnp.allclose(x1, x1_r, atol=1e-4, rtol=1e-4)

    print("KERNEL_OK")
</pallas_src>

<mosaic_0001>
module attributes {stable_mosaic.version = 11 : i64} {
  func.func @rk4net_kernel(%arg0: i32, %arg1: memref<2x256xf32, #tpu.memory_space<vmem>>, %arg2: memref<32x2xf32, #tpu.memory_space<vmem>>, %arg3: memref<4x32x32xf32, #tpu.memory_space<vmem>>, %arg4: memref<4x32x1xf32, #tpu.memory_space<vmem>>, %arg5: memref<3x32xf32, #tpu.memory_space<vmem>>, %arg6: memref<3x1xf32, #tpu.memory_space<vmem>>, %arg7: memref<3x256xf32, #tpu.memory_space<vmem>>, %arg8: memref<5x32x256xf32, #tpu.memory_space<vmem>>) attributes {dimension_semantics = [#tpu.dimension_semantics<parallel>], iteration_bounds = array<i64: 4>, scalar_prefetch = 0 : i64, scratch_operands = 0 : i64, tpu.core_type = #tpu.core_type<tc>, window_params = [{transform_indices = @transform_0, window_bounds = array<i64: 2, 256>}, {pipeline_mode = #tpu.pipeline_mode<synchronous>, transform_indices = @transform_1, window_bounds = array<i64: 32, 2>}, {pipeline_mode = #tpu.pipeline_mode<synchronous>, transform_indices = @transform_2, window_bounds = array<i64: 4, 32, 32>}, {pipeline_mode = #tpu.pipeline_mode<synchronous>, transform_indices = @transform_3, window_bounds = array<i64: 4, 32, 1>}, {pipeline_mode = #tpu.pipeline_mode<synchronous>, transform_indices = @transform_4, window_bounds = array<i64: 3, 32>}, {pipeline_mode = #tpu.pipeline_mode<synchronous>, transform_indices = @transform_5, window_bounds = array<i64: 3, 1>}, {transform_indices = @transform_6, window_bounds = array<i64: 3, 256>}, {transform_indices = @transform_7, window_bounds = array<i64: 5, 32, 256>}]} {
    %c0 = arith.constant 0 : index
    %c0_0 = arith.constant 0 : index
    %0 = vector.load %arg2[%c0, %c0_0] : memref<32x2xf32, #tpu.memory_space<vmem>>, vector<32x2xf32>
    %c0_1 = arith.constant 0 : index
    %c0_2 = arith.constant 0 : index
    %1 = vector.load %arg1[%c0_1, %c0_2] : memref<2x256xf32, #tpu.memory_space<vmem>>, vector<2x128xf32>
    %cst = arith.constant dense<0.000000e+00> : vector<32x128xf32>
    %2 = tpu.matmul %0, %1, %cst {dimension_numbers = #tpu.dot_dimension_numbers<[1], [0], [0], [1], [0, 0, 1, 1], [], []>} : vector<32x2xf32>, vector<2x128xf32>, vector<32x128xf32> -> vector<32x128xf32>
    %c0_3 = arith.constant 0 : index
    %c0_4 = arith.constant 0 : index
    %c0_5 = arith.constant 0 : index
    %3 = vector.load %arg8[%c0_3, %c0_4, %c0_5] : memref<5x32x256xf32, #tpu.memory_space<vmem>>, vector<1x32x128xf32>
    %4 = vector.shape_cast %3 : vector<1x32x128xf32> to vector<32x128xf32>
    %5 = vector.shape_cast %2 : vector<32x128xf32> to vector<1x32x128xf32>
    tpu.vector_store %arg8[%c0_3, %c0_4, %c0_5], %5 {strides = array<i32>} : memref<5x32x256xf32, #tpu.memory_space<vmem>>, vector<1x32x128xf32>,
    %c0_6 = arith.constant 0 : index
    %c128 = arith.constant 128 : index
    %6 = vector.load %arg1[%c0_6, %c128] : memref<2x256xf32, #tpu.memory_space<vmem>>, vector<2x128xf32>
    %cst_7 = arith.constant dense<0.000000e+00> : vector<32x128xf32>
    %7 = tpu.matmul %0, %6, %cst_7 {dimension_numbers = #tpu.dot_dimension_numbers<[1], [0], [0], [1], [0, 0, 1, 1], [], []>} : vector<32x2xf32>, vector<2x128xf32>, vector<32x128xf32> -> vector<32x128xf32>
    %c0_8 = arith.constant 0 : index
    %c0_9 = arith.constant 0 : index
    %c128_10 = arith.constant 128 : index
    %8 = vector.load %arg8[%c0_8, %c0_9, %c128_10] : memref<5x32x256xf32, #tpu.memory_space<vmem>>, vector<1x32x128xf32>
    %9 = vector.shape_cast %8 : vector<1x32x128xf32> to vector<32x128xf32>
    %10 = vector.shape_cast %7 : vector<32x128xf32> to vector<1x32x128xf32>
    tpu.vector_store %arg8[%c0_8, %c0_9, %c128_10], %10 {strides = array<i32>} : memref<5x32x256xf32, #tpu.memory_space<vmem>>, vector<1x32x128xf32>,
    %c0_11 = arith.constant 0 : index
    %c0_12 = arith.constant 0 : index
    %c0_13 = arith.constant 0 : index
    %11 = vector.load %arg3[%c0_11, %c0_12, %c0_13] : memref<4x32x32xf32, #tpu.memory_space<vmem>>, vector<1x32x32xf32>
    %12 = vector.shape_cast %11 : vector<1x32x32xf32> to vector<32x32xf32>
    %c0_14 = arith.constant 0 : index
    %c0_15 = arith.constant 0 : index
    %c0_16 = arith.constant 0 : index
    %13 = vector.load %arg4[%c0_14, %c0_15, %c0_16] : memref<4x32x1xf32, #tpu.memory_space<vmem>>, vector<1x32x1xf32>
    %14 = vector.shape_cast %13 : vector<1x32x1xf32> to vector<32x1xf32>
    %15 = vector.shape_cast %14 : vector<32x1xf32> to vector<32x1xf32>
    %16 = vector.broadcast %15 : vector<32x1xf32> to vector<32x128xf32>
    %cst_17 = arith.constant dense<0.000000e+00> : vector<32x128xf32>
    %17 = tpu.matmul %12, %2, %cst_17 {dimension_numbers = #tpu.dot_dimension_numbers<[1], [0], [0], [1], [0, 0, 1, 1], [], []>} : vector<32x32xf32>, vector<32x128xf32>, vector<32x128xf32> -> vector<32x128xf32>
    %18 = arith.addf %17, %16 : vector<32x128xf32>
    %19 = math.tanh %18 : vector<32x128xf32>
    %cst_18 = arith.constant 5.000000e-02 : f32
    %cst_19 = arith.constant 6.000000e+00 : f32
    %20 = arith.divf %cst_18, %cst_19 : f32
    %21 = vector.broadcast %20 : f32 to vector<32x128xf32>
    %22 = arith.mulf %21, %19 : vector<32x128xf32>
    %cst_20 = arith.constant 5.000000e-01 : f32
    %cst_21 = arith.constant 5.000000e-02 : f32
    %23 = arith.mulf %cst_20, %cst_21 : f32
    %24 = vector.broadcast %23 : f32 to vector<32x128xf32>
    %25 = arith.mulf %24, %19 : vector<32x128xf32>
    %26 = arith.addf %2, %25 : vector<32x128xf32>
    %cst_22 = arith.constant dense<0.000000e+00> : vector<32x128xf32>
    %27 = tpu.matmul %12, %26, %cst_22 {dimension_numbers = #tpu.dot_dimension_numbers<[1], [0], [0], [1], [0, 0, 1, 1], [], []>} : vector<32x32xf32>, vector<32x128xf32>, vector<32x128xf32> -> vector<32x128xf32>
    %28 = arith.addf %27, %16 : vector<32x128xf32>
    %29 = math.tanh %28 : vector<32x128xf32>
    %cst_23 = arith.constant 5.000000e-02 : f32
    %cst_24 = arith.constant 3.000000e+00 : f32
    %30 = arith.divf %cst_23, %cst_24 : f32
    %31 = vector.broadcast %30 : f32 to vector<32x128xf32>
    %32 = arith.mulf %31, %29 : vector<32x128xf32>
    %33 = arith.addf %22, %32 : vector<32x128xf32>
    %cst_25 = arith.constant 5.000000e-01 : f32
    %cst_26 = arith.constant 5.000000e-02 : f32
    %34 = arith.mulf %cst_25, %cst_26 : f32
    %35 = vector.broadcast %34 : f32 to vector<32x128xf32>
    %36 = arith.mulf %35, %29 : vector<32x128xf32>
    %37 = arith.addf %2, %36 : vector<32x128xf32>
    %cst_27 = arith.constant dense<0.000000e+00> : vector<32x128xf32>
    %38 = tpu.matmul %12, %37, %cst_27 {dimension_numbers = #tpu.dot_dimension_numbers<[1], [0], [0], [1], [0, 0, 1, 1], [], []>} : vector<32x32xf32>, vector<32x128xf32>, vector<32x128xf32> -> vector<32x128xf32>
    %39 = arith.addf %38, %16 : vector<32x128xf32>
    %40 = math.tanh %39 : vector<32x128xf32>
    %cst_28 = arith.constant 5.000000e-02 : f32
    %cst_29 = arith.constant 3.000000e+00 : f32
    %41 = arith.divf %cst_28, %cst_29 : f32
    %42 = vector.broadcast %41 : f32 to vector<32x128xf32>
    %43 = arith.mulf %42, %40 : vector<32x128xf32>
    %44 = arith.addf %33, %43 : vector<32x128xf32>
    %cst_30 = arith.constant 5.000000e-02 : f32
    %45 = vector.broadcast %cst_30 : f32 to vector<32x128xf32>
    %46 = arith.mulf %45, %40 : vector<32x128xf32>
    %47 = arith.addf %2, %46 : vector<32x128xf32>
    %cst_31 = arith.constant dense<0.000000e+00> : vector<32x128xf32>
    %48 = tpu.matmul %12, %47, %cst_31 {dimension_numbers = #tpu.dot_dimension_numbers<[1], [0], [0], [1], [0, 0, 1, 1], [], []>} : vector<32x32xf32>, vector<32x128xf32>, vector<32x128xf32> -> vector<32x128xf32>
    %49 = arith.addf %48, %16 : vector<32x128xf32>
    %50 = math.tanh %49 : vector<32x128xf32>
    %51 = arith.addf %2, %44 : vector<32x128xf32>
    %cst_32 = arith.constant 5.000000e-02 : f32
    %cst_33 = arith.constant 6.000000e+00 : f32
    %52 = arith.divf %cst_32, %cst_33 : f32
    %53 = vector.broadcast %52 : f32 to vector<32x128xf32>
    %54 = arith.mulf %53, %50 : vector<32x128xf32>
    %55 = arith.addf %51, %54 : vector<32x128xf32>
    %c1 = arith.constant 1 : index
    %c0_34 = arith.constant 0 : index
    %c0_35 = arith.constant 0 : index
    %56 = vector.load %arg8[%c1, %c0_34, %c0_35] : memref<5x32x256xf32, #tpu.memory_space<vmem>>, vector<1x32x128xf32>
    %57 = vector.shape_cast %56 : vector<1x32x128xf32> to vector<32x128xf32>
    %58 = vector.shape_cast %55 : vector<32x128xf32> to vector<1x32x128xf32>
    tpu.vector_store %arg8[%c1, %c0_34, %c0_35], %58 {strides = array<i32>} : memref<5x32x256xf32, #tpu.memory_space<vmem>>, vector<1x32x128xf32>,
    %cst_36 = arith.constant dense<0.000000e+00> : vector<32x128xf32>
    %59 = tpu.matmul %12, %7, %cst_36 {dimension_numbers = #tpu.dot_dimension_numbers<[1], [0], [0], [1], [0, 0, 1, 1], [], []>} : vector<32x32xf32>, vector<32x128xf32>, vector<32x128xf32> -> vector<32x128xf32>
    %60 = arith.addf %59, %16 : vector<32x128xf32>
    %61 = math.tanh %60 : vector<32x128xf32>
    %cst_37 = arith.constant 5.000000e-02 : f32
    %cst_38 = arith.constant 6.000000e+00 : f32
    %62 = arith.divf %cst_37, %cst_38 : f32
    %63 = vector.broadcast %62 : f32 to vector<32x128xf32>
    %64 = arith.mulf %63, %61 : vector<32x128xf32>
    %cst_39 = arith.constant 5.000000e-01 : f32
    %cst_40 = arith.constant 5.000000e-02 : f32
    %65 = arith.mulf %cst_39, %cst_40 : f32
    %66 = vector.broadcast %65 : f32 to vector<32x128xf32>
    %67 = arith.mulf %66, %61 : vector<32x128xf32>
    %68 = arith.addf %7, %67 : vector<32x128xf32>
    %cst_41 = arith.constant dense<0.000000e+00> : vector<32x128xf32>
    %69 = tpu.matmul %12, %68, %cst_41 {dimension_numbers = #tpu.dot_dimension_numbers<[1], [0], [0], [1], [0, 0, 1, 1], [], []>} : vector<32x32xf32>, vector<32x128xf32>, vector<32x128xf32> -> vector<32x128xf32>
    %70 = arith.addf %69, %16 : vector<32x128xf32>
    %71 = math.tanh %70 : vector<32x128xf32>
    %cst_42 = arith.constant 5.000000e-02 : f32
    %cst_43 = arith.constant 3.000000e+00 : f32
    %72 = arith.divf %cst_42, %cst_43 : f32
    %73 = vector.broadcast %72 : f32 to vector<32x128xf32>
    %74 = arith.mulf %73, %71 : vector<32x128xf32>
    %75 = arith.addf %64, %74 : vector<32x128xf32>
    %cst_44 = arith.constant 5.000000e-01 : f32
    %cst_45 = arith.constant 5.000000e-02 : f32
    %76 = arith.mulf %cst_44, %cst_45 : f32
    %77 = vector.broadcast %76 : f32 to vector<32x128xf32>
    %78 = arith.mulf %77, %71 : vector<32x128xf32>
    %79 = arith.addf %7, %78 : vector<32x128xf32>
    %cst_46 = arith.constant dense<0.000000e+00> : vector<32x128xf32>
    %80 = tpu.matmul %12, %79, %cst_46 {dimension_numbers = #tpu.dot_dimension_numbers<[1], [0], [0], [1], [0, 0, 1, 1], [], []>} : vector<32x32xf32>, vector<32x128xf32>, vector<32x128xf32> -> vector<32x128xf32>
    %81 = arith.addf %80, %16 : vector<32x128xf32>
    %82 = math.tanh %81 : vector<32x128xf32>
    %cst_47 = arith.constant 5.000000e-02 : f32
    %cst_48 = arith.constant 3.000000e+00 : f32
    %83 = arith.divf %cst_47, %cst_48 : f32
    %84 = vector.broadcast %83 : f32 to vector<32x128xf32>
    %85 = arith.mulf %84, %82 : vector<32x128xf32>
    %86 = arith.addf %75, %85 : vector<32x128xf32>
    %cst_49 = arith.constant 5.000000e-02 : f32
    %87 = vector.broadcast %cst_49 : f32 to vector<32x128xf32>
    %88 = arith.mulf %87, %82 : vector<32x128xf32>
    %89 = arith.addf %7, %88 : vector<32x128xf32>
    %cst_50 = arith.constant dense<0.000000e+00> : vector<32x128xf32>
    %90 = tpu.matmul %12, %89, %cst_50 {dimension_numbers = #tpu.dot_dimension_numbers<[1], [0], [0], [1], [0, 0, 1, 1], [], []>} : vector<32x32xf32>, vector<32x128xf32>, vector<32x128xf32> -> vector<32x128xf32>
    %91 = arith.addf %90, %16 : vector<32x128xf32>
    %92 = math.tanh %91 : vector<32x128xf32>
    %93 = arith.addf %7, %86 : vector<32x128xf32>
    %cst_51 = arith.constant 5.000000e-02 : f32
    %cst_52 = arith.constant 6.000000e+00 : f32
    %94 = arith.divf %cst_51, %cst_52 : f32
    %95 = vector.broadcast %94 : f32 to vector<32x128xf32>
    %96 = arith.mulf %95, %92 : vector<32x128xf32>
    %97 = arith.addf %93, %96 : vector<32x128xf32>
    %c1_53 = arith.constant 1 : index
    %c0_54 = arith.constant 0 : index
    %c128_55 = arith.constant 128 : index
    %98 = vector.load %arg8[%c1_53, %c0_54, %c128_55] : memref<5x32x256xf32, #tpu.memory_space<vmem>>, vector<1x32x128xf32>
    %99 = vector.shape_cast %98 : vector<1x32x128xf32> to vector<32x128xf32>
    %100 = vector.shape_cast %97 : vector<32x128xf32> to vector<1x32x128xf32>
    tpu.vector_store %arg8[%c1_53, %c0_54, %c128_55], %100 {strides = array<i32>} : memref<5x32x256xf32, #tpu.memory_space<vmem>>, vector<1x32x128xf32>,
    %c1_56 = arith.constant 1 : index
    %c0_57 = arith.constant 0 : index
    %c0_58 = arith.constant 0 : index
    %101 = vector.load %arg3[%c1_56, %c0_57, %c0_58] : memref<4x32x32xf32, #tpu.memory_space<vmem>>, vector<1x32x32xf32>
    %102 = vector.shape_cast %101 : vector<1x32x32xf32> to vector<32x32xf32>
    %c1_59 = arith.constant 1 : index
    %c0_60 = arith.constant 0 : index
    %c0_61 = arith.constant 0 : index
    %103 = vector.load %arg4[%c1_59, %c0_60, %c0_61] : memref<4x32x1xf32, #tpu.memory_space<vmem>>, vector<1x32x1xf32>
    %104 = vector.shape_cast %103 : vector<1x32x1xf32> to vector<32x1xf32>
    %105 = vector.shape_cast %104 : vector<32x1xf32> to vector<32x1xf32>
    %106 = vector.broadcast %105 : vector<32x1xf32> to vector<32x128xf32>
    %cst_62 = arith.constant dense<0.000000e+00> : vector<32x128xf32>
    %107 = tpu.matmul %102, %55, %cst_62 {dimension_numbers = #tpu.dot_dimension_numbers<[1], [0], [0], [1], [0, 0, 1, 1], [], []>} : vector<32x32xf32>, vector<32x128xf32>, vector<32x128xf32> -> vector<32x128xf32>
    %108 = arith.addf %107, %106 : vector<32x128xf32>
    %109 = math.tanh %108 : vector<32x128xf32>
    %cst_63 = arith.constant 5.000000e-02 : f32
    %cst_64 = arith.constant 6.000000e+00 : f32
    %110 = arith.divf %cst_63, %cst_64 : f32
    %111 = vector.broadcast %110 : f32 to vector<32x128xf32>
    %112 = arith.mulf %111, %109 : vector<32x128xf32>
    %cst_65 = arith.constant 5.000000e-01 : f32
    %cst_66 = arith.constant 5.000000e-02 : f32
    %113 = arith.mulf %cst_65, %cst_66 : f32
    %114 = vector.broadcast %113 : f32 to vector<32x128xf32>
    %115 = arith.mulf %114, %109 : vector<32x128xf32>
    %116 = arith.addf %55, %115 : vector<32x128xf32>
    %cst_67 = arith.constant dense<0.000000e+00> : vector<32x128xf32>
    %117 = tpu.matmul %102, %116, %cst_67 {dimension_numbers = #tpu.dot_dimension_numbers<[1], [0], [0], [1], [0, 0, 1, 1], [], []>} : vector<32x32xf32>, vector<32x128xf32>, vector<32x128xf32> -> vector<32x128xf32>
    %118 = arith.addf %117, %106 : vector<32x128xf32>
    %119 = math.tanh %118 : vector<32x128xf32>
    %cst_68 = arith.constant 5.000000e-02 : f32
    %cst_69 = arith.constant 3.000000e+00 : f32
    %120 = arith.divf %cst_68, %cst_69 : f32
    %121 = vector.broadcast %120 : f32 to vector<32x128xf32>
    %122 = arith.mulf %121, %119 : vector<32x128xf32>
    %123 = arith.addf %112, %122 : vector<32x128xf32>
    %cst_70 = arith.constant 5.000000e-01 : f32
    %cst_71 = arith.constant 5.000000e-02 : f32
    %124 = arith.mulf %cst_70, %cst_71 : f32
    %125 = vector.broadcast %124 : f32 to vector<32x128xf32>
    %126 = arith.mulf %125, %119 : vector<32x128xf32>
    %127 = arith.addf %55, %126 : vector<32x128xf32>
    %cst_72 = arith.constant dense<0.000000e+00> : vector<32x128xf32>
    %128 = tpu.matmul %102, %127, %cst_72 {dimension_numbers = #tpu.dot_dimension_numbers<[1], [0], [0], [1], [0, 0, 1, 1], [], []>} : vector<32x32xf32>, vector<32x128xf32>, vector<32x128xf32> -> vector<32x128xf32>
    %129 = arith.addf %128, %106 : vector<32x128xf32>
    %130 = math.tanh %129 : vector<32x128xf32>
    %cst_73 = arith.constant 5.000000e-02 : f32
    %cst_74 = arith.constant 3.000000e+00 : f32
    %131 = arith.divf %cst_73, %cst_74 : f32
    %132 = vector.broadcast %131 : f32 to vector<32x128xf32>
    %133 = arith.mulf %132, %130 : vector<32x128xf32>
    %134 = arith.addf %123, %133 : vector<32x128xf32>
    %cst_75 = arith.constant 5.000000e-02 : f32
    %135 = vector.broadcast %cst_75 : f32 to vector<32x128xf32>
    %136 = arith.mulf %135, %130 : vector<32x128xf32>
    %137 = arith.addf %55, %136 : vector<32x128xf32>
    %cst_76 = arith.constant dense<0.000000e+00> : vector<32x128xf32>
    %138 = tpu.matmul %102, %137, %cst_76 {dimension_numbers = #tpu.dot_dimension_numbers<[1], [0], [0], [1], [0, 0, 1, 1], [], []>} : vector<32x32xf32>, vector<32x128xf32>, vector<32x128xf32> -> vector<32x128xf32>
    %139 = arith.addf %138, %106 : vector<32x128xf32>
    %140 = math.tanh %139 : vector<32x128xf32>
    %141 = arith.addf %55, %134 : vector<32x128xf32>
    %cst_77 = arith.constant 5.000000e-02 : f32
    %cst_78 = arith.constant 6.000000e+00 : f32
    %142 = arith.divf %cst_77, %cst_78 : f32
    %143 = vector.broadcast %142 : f32 to vector<32x128xf32>
    %144 = arith.mulf %143, %140 : vector<32x128xf32>
    %145 = arith.addf %141, %144 : vector<32x128xf32>
    %c2 = arith.constant 2 : index
    %c0_79 = arith.constant 0 : index
    %c0_80 = arith.constant 0 : index
    %146 = vector.load %arg8[%c2, %c0_79, %c0_80] : memref<5x32x256xf32, #tpu.memory_space<vmem>>, vector<1x32x128xf32>
    %147 = vector.shape_cast %146 : vector<1x32x128xf32> to vector<32x128xf32>
    %148 = vector.shape_cast %145 : vector<32x128xf32> to vector<1x32x128xf32>
    tpu.vector_store %arg8[%c2, %c0_79, %c0_80], %148 {strides = array<i32>} : memref<5x32x256xf32, #tpu.memory_space<vmem>>, vector<1x32x128xf32>,
    %cst_81 = arith.constant dense<0.000000e+00> : vector<32x128xf32>
    %149 = tpu.matmul %102, %97, %cst_81 {dimension_numbers = #tpu.dot_dimension_numbers<[1], [0], [0], [1], [0, 0, 1, 1], [], []>} : vector<32x32xf32>, vector<32x128xf32>, vector<32x128xf32> -> vector<32x128xf32>
    %150 = arith.addf %149, %106 : vector<32x128xf32>
    %151 = math.tanh %150 : vector<32x128xf32>
    %cst_82 = arith.constant 5.000000e-02 : f32
    %cst_83 = arith.constant 6.000000e+00 : f32
    %152 = arith.divf %cst_82, %cst_83 : f32
    %153 = vector.broadcast %152 : f32 to vector<32x128xf32>
    %154 = arith.mulf %153, %151 : vector<32x128xf32>
    %cst_84 = arith.constant 5.000000e-01 : f32
    %cst_85 = arith.constant 5.000000e-02 : f32
    %155 = arith.mulf %cst_84, %cst_85 : f32
    %156 = vector.broadcast %155 : f32 to vector<32x128xf32>
    %157 = arith.mulf %156, %151 : vector<32x128xf32>
    %158 = arith.addf %97, %157 : vector<32x128xf32>
    %cst_86 = arith.constant dense<0.000000e+00> : vector<32x128xf32>
    %159 = tpu.matmul %102, %158, %cst_86 {dimension_numbers = #tpu.dot_dimension_numbers<[1], [0], [0], [1], [0, 0, 1, 1], [], []>} : vector<32x32xf32>, vector<32x128xf32>, vector<32x128xf32> -> vector<32x128xf32>
    %160 = arith.addf %159, %106 : vector<32x128xf32>
    %161 = math.tanh %160 : vector<32x128xf32>
    %cst_87 = arith.constant 5.000000e-02 : f32
    %cst_88 = arith.constant 3.000000e+00 : f32
    %162 = arith.divf %cst_87, %cst_88 : f32
    %163 = vector.broadcast %162 : f32 to vector<32x128xf32>
    %164 = arith.mulf %163, %161 : vector<32x128xf32>
    %165 = arith.addf %154, %164 : vector<32x128xf32>
    %cst_89 = arith.constant 5.000000e-01 : f32
    %cst_90 = arith.constant 5.000000e-02 : f32
    %166 = arith.mulf %cst_89, %cst_90 : f32
    %167 = vector.broadcast %166 : f32 to vector<32x128xf32>
    %168 = arith.mulf %167, %161 : vector<32x128xf32>
    %169 = arith.addf %97, %168 : vector<32x128xf32>
    %cst_91 = arith.constant dense<0.000000e+00> : vector<32x128xf32>
    %170 = tpu.matmul %102, %169, %cst_91 {dimension_numbers = #tpu.dot_dimension_numbers<[1], [0], [0], [1], [0, 0, 1, 1], [], []>} : vector<32x32xf32>, vector<32x128xf32>, vector<32x128xf32> -> vector<32x128xf32>
    %171 = arith.addf %170, %106 : vector<32x128xf32>
    %172 = math.tanh %171 : vector<32x128xf32>
    %cst_92 = arith.constant 5.000000e-02 : f32
    %cst_93 = arith.constant 3.000000e+00 : f32
    %173 = arith.divf %cst_92, %cst_93 : f32
    %174 = vector.broadcast %173 : f32 to vector<32x128xf32>
    %175 = arith.mulf %174, %172 : vector<32x128xf32>
    %176 = arith.addf %165, %175 : vector<32x128xf32>
    %cst_94 = arith.constant 5.000000e-02 : f32
    %177 = vector.broadcast %cst_94 : f32 to vector<32x128xf32>
    %178 = arith.mulf %177, %172 : vector<32x128xf32>
    %179 = arith.addf %97, %178 : vector<32x128xf32>
    %cst_95 = arith.constant dense<0.000000e+00> : vector<32x128xf32>
    %180 = tpu.matmul %102, %179, %cst_95 {dimension_numbers = #tpu.dot_dimension_numbers<[1], [0], [0], [1], [0, 0, 1, 1], [], []>} : vector<32x32xf32>, vector<32x128xf32>, vector<32x128xf32> -> vector<32x128xf32>
    %181 = arith.addf %180, %106 : vector<32x128xf32>
    %182 = math.tanh %181 : vector<32x128xf32>
    %183 = arith.addf %97, %176 : vector<32x128xf32>
    %cst_96 = arith.constant 5.000000e-02 : f32
    %cst_97 = arith.constant 6.000000e+00 : f32
    %184 = arith.divf %cst_96, %cst_97 : f32
    %185 = vector.broadcast %184 : f32 to vector<32x128xf32>
    %186 = arith.mulf %185, %182 : vector<32x128xf32>
    %187 = arith.addf %183, %186 : vector<32x128xf32>
    %c2_98 = arith.constant 2 : index
    %c0_99 = arith.constant 0 : index
    %c128_100 = arith.constant 128 : index
    %188 = vector.load %arg8[%c2_98, %c0_99, %c128_100] : memref<5x32x256xf32, #tpu.memory_space<vmem>>, vector<1x32x128xf32>
    %189 = vector.shape_cast %188 : vector<1x32x128xf32> to vector<32x128xf32>
    %190 = vector.shape_cast %187 : vector<32x128xf32> to vector<1x32x128xf32>
    tpu.vector_store %arg8[%c2_98, %c0_99, %c128_100], %190 {strides = array<i32>} : memref<5x32x256xf32, #tpu.memory_space<vmem>>, vector<1x32x128xf32>,
    %c2_101 = arith.constant 2 : index
    %c0_102 = arith.constant 0 : index
    %c0_103 = arith.constant 0 : index
    %191 = vector.load %arg3[%c2_101, %c0_102, %c0_103] : memref<4x32x32xf32, #tpu.memory_space<vmem>>, vector<1x32x32xf32>
    %192 = vector.shape_cast %191 : vector<1x32x32xf32> to vector<32x32xf32>
    %c2_104 = arith.constant 2 : index
    %c0_105 = arith.constant 0 : index
    %c0_106 = arith.constant 0 : index
    %193 = vector.load %arg4[%c2_104, %c0_105, %c0_106] : memref<4x32x1xf32, #tpu.memory_space<vmem>>, vector<1x32x1xf32>
    %194 = vector.shape_cast %193 : vector<1x32x1xf32> to vector<32x1xf32>
    %195 = vector.shape_cast %194 : vector<32x1xf32> to vector<32x1xf32>
    %196 = vector.broadcast %195 : vector<32x1xf32> to vector<32x128xf32>
    %cst_107 = arith.constant dense<0.000000e+00> : vector<32x128xf32>
    %197 = tpu.matmul %192, %145, %cst_107 {dimension_numbers = #tpu.dot_dimension_numbers<[1], [0], [0], [1], [0, 0, 1, 1], [], []>} : vector<32x32xf32>, vector<32x128xf32>, vector<32x128xf32> -> vector<32x128xf32>
    %198 = arith.addf %197, %196 : vector<32x128xf32>
    %199 = math.tanh %198 : vector<32x128xf32>
    %cst_108 = arith.constant 5.000000e-02 : f32
    %cst_109 = arith.constant 6.000000e+00 : f32
    %200 = arith.divf %cst_108, %cst_109 : f32
    %201 = vector.broadcast %200 : f32 to vector<32x128xf32>
    %202 = arith.mulf %201, %199 : vector<32x128xf32>
    %cst_110 = arith.constant 5.000000e-01 : f32
    %cst_111 = arith.constant 5.000000e-02 : f32
    %203 = arith.mulf %cst_110, %cst_111 : f32
    %204 = vector.broadcast %203 : f32 to vector<32x128xf32>
    %205 = arith.mulf %204, %199 : vector<32x128xf32>
    %206 = arith.addf %145, %205 : vector<32x128xf32>
    %cst_112 = arith.constant dense<0.000000e+00> : vector<32x128xf32>
    %207 = tpu.matmul %192, %206, %cst_112 {dimension_numbers = #tpu.dot_dimension_numbers<[1], [0], [0], [1], [0, 0, 1, 1], [], []>} : vector<32x32xf32>, vector<32x128xf32>, vector<32x128xf32> -> vector<32x128xf32>
    %208 = arith.addf %207, %196 : vector<32x128xf32>
    %209 = math.tanh %208 : vector<32x128xf32>
    %cst_113 = arith.constant 5.000000e-02 : f32
    %cst_114 = arith.constant 3.000000e+00 : f32
    %210 = arith.divf %cst_113, %cst_114 : f32
    %211 = vector.broadcast %210 : f32 to vector<32x128xf32>
    %212 = arith.mulf %211, %209 : vector<32x128xf32>
    %213 = arith.addf %202, %212 : vector<32x128xf32>
    %cst_115 = arith.constant 5.000000e-01 : f32
    %cst_116 = arith.constant 5.000000e-02 : f32
    %214 = arith.mulf %cst_115, %cst_116 : f32
    %215 = vector.broadcast %214 : f32 to vector<32x128xf32>
    %216 = arith.mulf %215, %209 : vector<32x128xf32>
    %217 = arith.addf %145, %216 : vector<32x128xf32>
    %cst_117 = arith.constant dense<0.000000e+00> : vector<32x128xf32>
    %218 = tpu.matmul %192, %217, %cst_117 {dimension_numbers = #tpu.dot_dimension_numbers<[1], [0], [0], [1], [0, 0, 1, 1], [], []>} : vector<32x32xf32>, vector<32x128xf32>, vector<32x128xf32> -> vector<32x128xf32>
    %219 = arith.addf %218, %196 : vector<32x128xf32>
    %220 = math.tanh %219 : vector<32x128xf32>
    %cst_118 = arith.constant 5.000000e-02 : f32
    %cst_119 = arith.constant 3.000000e+00 : f32
    %221 = arith.divf %cst_118, %cst_119 : f32
    %222 = vector.broadcast %221 : f32 to vector<32x128xf32>
    %223 = arith.mulf %222, %220 : vector<32x128xf32>
    %224 = arith.addf %213, %223 : vector<32x128xf32>
    %cst_120 = arith.constant 5.000000e-02 : f32
    %225 = vector.broadcast %cst_120 : f32 to vector<32x128xf32>
    %226 = arith.mulf %225, %220 : vector<32x128xf32>
    %227 = arith.addf %145, %226 : vector<32x128xf32>
    %cst_121 = arith.constant dense<0.000000e+00> : vector<32x128xf32>
    %228 = tpu.matmul %192, %227, %cst_121 {dimension_numbers = #tpu.dot_dimension_numbers<[1], [0], [0], [1], [0, 0, 1, 1], [], []>} : vector<32x32xf32>, vector<32x128xf32>, vector<32x128xf32> -> vector<32x128xf32>
    %229 = arith.addf %228, %196 : vector<32x128xf32>
    %230 = math.tanh %229 : vector<32x128xf32>
    %231 = arith.addf %145, %224 : vector<32x128xf32>
    %cst_122 = arith.constant 5.000000e-02 : f32
    %cst_123 = arith.constant 6.000000e+00 : f32
    %232 = arith.divf %cst_122, %cst_123 : f32
    %233 = vector.broadcast %232 : f32 to vector<32x128xf32>
    %234 = arith.mulf %233, %230 : vector<32x128xf32>
    %235 = arith.addf %231, %234 : vector<32x128xf32>
    %c3 = arith.constant 3 : index
    %c0_124 = arith.constant 0 : index
    %c0_125 = arith.constant 0 : index
    %236 = vector.load %arg8[%c3, %c0_124, %c0_125] : memref<5x32x256xf32, #tpu.memory_space<vmem>>, vector<1x32x128xf32>
    %237 = vector.shape_cast %236 : vector<1x32x128xf32> to vector<32x128xf32>
    %238 = vector.shape_cast %235 : vector<32x128xf32> to vector<1x32x128xf32>
    tpu.vector_store %arg8[%c3, %c0_124, %c0_125], %238 {strides = array<i32>} : memref<5x32x256xf32, #tpu.memory_space<vmem>>, vector<1x32x128xf32>,
    %cst_126 = arith.constant dense<0.000000e+00> : vector<32x128xf32>
    %239 = tpu.matmul %192, %187, %cst_126 {dimension_numbers = #tpu.dot_dimension_numbers<[1], [0], [0], [1], [0, 0, 1, 1], [], []>} : vector<32x32xf32>, vector<32x128xf32>, vector<32x128xf32> -> vector<32x128xf32>
    %240 = arith.addf %239, %196 : vector<32x128xf32>
    %241 = math.tanh %240 : vector<32x128xf32>
    %cst_127 = arith.constant 5.000000e-02 : f32
    %cst_128 = arith.constant 6.000000e+00 : f32
    %242 = arith.divf %cst_127, %cst_128 : f32
    %243 = vector.broadcast %242 : f32 to vector<32x128xf32>
    %244 = arith.mulf %243, %241 : vector<32x128xf32>
    %cst_129 = arith.constant 5.000000e-01 : f32
    %cst_130 = arith.constant 5.000000e-02 : f32
    %245 = arith.mulf %cst_129, %cst_130 : f32
    %246 = vector.broadcast %245 : f32 to vector<32x128xf32>
    %247 = arith.mulf %246, %241 : vector<32x128xf32>
    %248 = arith.addf %187, %247 : vector<32x128xf32>
    %cst_131 = arith.constant dense<0.000000e+00> : vector<32x128xf32>
    %249 = tpu.matmul %192, %248, %cst_131 {dimension_numbers = #tpu.dot_dimension_numbers<[1], [0], [0], [1], [0, 0, 1, 1], [], []>} : vector<32x32xf32>, vector<32x128xf32>, vector<32x128xf32> -> vector<32x128xf32>
    %250 = arith.addf %249, %196 : vector<32x128xf32>
    %251 = math.tanh %250 : vector<32x128xf32>
    %cst_132 = arith.constant 5.000000e-02 : f32
    %cst_133 = arith.constant 3.000000e+00 : f32
    %252 = arith.divf %cst_132, %cst_133 : f32
    %253 = vector.broadcast %252 : f32 to vector<32x128xf32>
    %254 = arith.mulf %253, %251 : vector<32x128xf32>
    %255 = arith.addf %244, %254 : vector<32x128xf32>
    %cst_134 = arith.constant 5.000000e-01 : f32
    %cst_135 = arith.constant 5.000000e-02 : f32
    %256 = arith.mulf %cst_134, %cst_135 : f32
    %257 = vector.broadcast %256 : f32 to vector<32x128xf32>
    %258 = arith.mulf %257, %251 : vector<32x128xf32>
    %259 = arith.addf %187, %258 : vector<32x128xf32>
    %cst_136 = arith.constant dense<0.000000e+00> : vector<32x128xf32>
    %260 = tpu.matmul %192, %259, %cst_136 {dimension_numbers = #tpu.dot_dimension_numbers<[1], [0], [0], [1], [0, 0, 1, 1], [], []>} : vector<32x32xf32>, vector<32x128xf32>, vector<32x128xf32> -> vector<32x128xf32>
    %261 = arith.addf %260, %196 : vector<32x128xf32>
    %262 = math.tanh %261 : vector<32x128xf32>
    %cst_137 = arith.constant 5.000000e-02 : f32
    %cst_138 = arith.constant 3.000000e+00 : f32
    %263 = arith.divf %cst_137, %cst_138 : f32
    %264 = vector.broadcast %263 : f32 to vector<32x128xf32>
    %265 = arith.mulf %264, %262 : vector<32x128xf32>
    %266 = arith.addf %255, %265 : vector<32x128xf32>
    %cst_139 = arith.constant 5.000000e-02 : f32
    %267 = vector.broadcast %cst_139 : f32 to vector<32x128xf32>
    %268 = arith.mulf %267, %262 : vector<32x128xf32>
    %269 = arith.addf %187, %268 : vector<32x128xf32>
    %cst_140 = arith.constant dense<0.000000e+00> : vector<32x128xf32>
    %270 = tpu.matmul %192, %269, %cst_140 {dimension_numbers = #tpu.dot_dimension_numbers<[1], [0], [0], [1], [0, 0, 1, 1], [], []>} : vector<32x32xf32>, vector<32x128xf32>, vector<32x128xf32> -> vector<32x128xf32>
    %271 = arith.addf %270, %196 : vector<32x128xf32>
    %272 = math.tanh %271 : vector<32x128xf32>
    %273 = arith.addf %187, %266 : vector<32x128xf32>
    %cst_141 = arith.constant 5.000000e-02 : f32
    %cst_142 = arith.constant 6.000000e+00 : f32
    %274 = arith.divf %cst_141, %cst_142 : f32
    %275 = vector.broadcast %274 : f32 to vector<32x128xf32>
    %276 = arith.mulf %275, %272 : vector<32x128xf32>
    %277 = arith.addf %273, %276 : vector<32x128xf32>
    %c3_143 = arith.constant 3 : index
    %c0_144 = arith.constant 0 : index
    %c128_145 = arith.constant 128 : index
    %278 = vector.load %arg8[%c3_143, %c0_144, %c128_145] : memref<5x32x256xf32, #tpu.memory_space<vmem>>, vector<1x32x128xf32>
    %279 = vector.shape_cast %278 : vector<1x32x128xf32> to vector<32x128xf32>
    %280 = vector.shape_cast %277 : vector<32x128xf32> to vector<1x32x128xf32>
    tpu.vector_store %arg8[%c3_143, %c0_144, %c128_145], %280 {strides = array<i32>} : memref<5x32x256xf32, #tpu.memory_space<vmem>>, vector<1x32x128xf32>,
    %c3_146 = arith.constant 3 : index
    %c0_147 = arith.constant 0 : index
    %c0_148 = arith.constant 0 : index
    %281 = vector.load %arg3[%c3_146, %c0_147, %c0_148] : memref<4x32x32xf32, #tpu.memory_space<vmem>>, vector<1x32x32xf32>
    %282 = vector.shape_cast %281 : vector<1x32x32xf32> to vector<32x32xf32>
    %c3_149 = arith.constant 3 : index
    %c0_150 = arith.constant 0 : index
    %c0_151 = arith.constant 0 : index
    %283 = vector.load %arg4[%c3_149, %c0_150, %c0_151] : memref<4x32x1xf32, #tpu.memory_space<vmem>>, vector<1x32x1xf32>
    %284 = vector.shape_cast %283 : vector<1x32x1xf32> to vector<32x1xf32>
    %285 = vector.shape_cast %284 : vector<32x1xf32> to vector<32x1xf32>
    %286 = vector.broadcast %285 : vector<32x1xf32> to vector<32x128xf32>
    %cst_152 = arith.constant dense<0.000000e+00> : vector<32x128xf32>
    %287 = tpu.matmul %282, %235, %cst_152 {dimension_numbers = #tpu.dot_dimension_numbers<[1], [0], [0], [1], [0, 0, 1, 1], [], []>} : vector<32x32xf32>, vector<32x128xf32>, vector<32x128xf32> -> vector<32x128xf32>
    %288 = arith.addf %287, %286 : vector<32x128xf32>
    %289 = math.tanh %288 : vector<32x128xf32>
    %cst_153 = arith.constant 5.000000e-02 : f32
    %cst_154 = arith.constant 6.000000e+00 : f32
    %290 = arith.divf %cst_153, %cst_154 : f32
    %291 = vector.broadcast %290 : f32 to vector<32x128xf32>
    %292 = arith.mulf %291, %289 : vector<32x128xf32>
    %cst_155 = arith.constant 5.000000e-01 : f32
    %cst_156 = arith.constant 5.000000e-02 : f32
    %293 = arith.mulf %cst_155, %cst_156 : f32
    %294 = vector.broadcast %293 : f32 to vector<32x128xf32>
    %295 = arith.mulf %294, %289 : vector<32x128xf32>
    %296 = arith.addf %235, %295 : vector<32x128xf32>
    %cst_157 = arith.constant dense<0.000000e+00> : vector<32x128xf32>
    %297 = tpu.matmul %282, %296, %cst_157 {dimension_numbers = #tpu.dot_dimension_numbers<[1], [0], [0], [1], [0, 0, 1, 1], [], []>} : vector<32x32xf32>, vector<32x128xf32>, vector<32x128xf32> -> vector<32x128xf32>
    %298 = arith.addf %297, %286 : vector<32x128xf32>
    %299 = math.tanh %298 : vector<32x128xf32>
    %cst_158 = arith.constant 5.000000e-02 : f32
    %cst_159 = arith.constant 3.000000e+00 : f32
    %300 = arith.divf %cst_158, %cst_159 : f32
    %301 = vector.broadcast %300 : f32 to vector<32x128xf32>
    %302 = arith.mulf %301, %299 : vector<32x128xf32>
    %303 = arith.addf %292, %302 : vector<32x128xf32>
    %cst_160 = arith.constant 5.000000e-01 : f32
    %cst_161 = arith.constant 5.000000e-02 : f32
    %304 = arith.mulf %cst_160, %cst_161 : f32
    %305 = vector.broadcast %304 : f32 to vector<32x128xf32>
    %306 = arith.mulf %305, %299 : vector<32x128xf32>
    %307 = arith.addf %235, %306 : vector<32x128xf32>
    %cst_162 = arith.constant dense<0.000000e+00> : vector<32x128xf32>
    %308 = tpu.matmul %282, %307, %cst_162 {dimension_numbers = #tpu.dot_dimension_numbers<[1], [0], [0], [1], [0, 0, 1, 1], [], []>} : vector<32x32xf32>, vector<32x128xf32>, vector<32x128xf32> -> vector<32x128xf32>
    %309 = arith.addf %308, %286 : vector<32x128xf32>
    %310 = math.tanh %309 : vector<32x128xf32>
    %cst_163 = arith.constant 5.000000e-02 : f32
    %cst_164 = arith.constant 3.000000e+00 : f32
    %311 = arith.divf %cst_163, %cst_164 : f32
    %312 = vector.broadcast %311 : f32 to vector<32x128xf32>
    %313 = arith.mulf %312, %310 : vector<32x128xf32>
    %314 = arith.addf %303, %313 : vector<32x128xf32>
    %cst_165 = arith.constant 5.000000e-02 : f32
    %315 = vector.broadcast %cst_165 : f32 to vector<32x128xf32>
    %316 = arith.mulf %315, %310 : vector<32x128xf32>
    %317 = arith.addf %235, %316 : vector<32x128xf32>
    %cst_166 = arith.constant dense<0.000000e+00> : vector<32x128xf32>
    %318 = tpu.matmul %282, %317, %cst_166 {dimension_numbers = #tpu.dot_dimension_numbers<[1], [0], [0], [1], [0, 0, 1, 1], [], []>} : vector<32x32xf32>, vector<32x128xf32>, vector<32x128xf32> -> vector<32x128xf32>
    %319 = arith.addf %318, %286 : vector<32x128xf32>
    %320 = math.tanh %319 : vector<32x128xf32>
    %321 = arith.addf %235, %314 : vector<32x128xf32>
    %cst_167 = arith.constant 5.000000e-02 : f32
    %cst_168 = arith.constant 6.000000e+00 : f32
    %322 = arith.divf %cst_167, %cst_168 : f32
    %323 = vector.broadcast %322 : f32 to vector<32x128xf32>
    %324 = arith.mulf %323, %320 : vector<32x128xf32>
    %325 = arith.addf %321, %324 : vector<32x128xf32>
    %c4 = arith.constant 4 : index
    %c0_169 = arith.constant 0 : index
    %c0_170 = arith.constant 0 : index
    %326 = vector.load %arg8[%c4, %c0_169, %c0_170] : memref<5x32x256xf32, #tpu.memory_space<vmem>>, vector<1x32x128xf32>
    %327 = vector.shape_cast %326 : vector<1x32x128xf32> to vector<32x128xf32>
    %328 = vector.shape_cast %325 : vector<32x128xf32> to vector<1x32x128xf32>
    tpu.vector_store %arg8[%c4, %c0_169, %c0_170], %328 {strides = array<i32>} : memref<5x32x256xf32, #tpu.memory_space<vmem>>, vector<1x32x128xf32>,
    %cst_171 = arith.constant dense<0.000000e+00> : vector<32x128xf32>
    %329 = tpu.matmul %282, %277, %cst_171 {dimension_numbers = #tpu.dot_dimension_numbers<[1], [0], [0], [1], [0, 0, 1, 1], [], []>} : vector<32x32xf32>, vector<32x128xf32>, vector<32x128xf32> -> vector<32x128xf32>
    %330 = arith.addf %329, %286 : vector<32x128xf32>
    %331 = math.tanh %330 : vector<32x128xf32>
    %cst_172 = arith.constant 5.000000e-02 : f32
    %cst_173 = arith.constant 6.000000e+00 : f32
    %332 = arith.divf %cst_172, %cst_173 : f32
    %333 = vector.broadcast %332 : f32 to vector<32x128xf32>
    %334 = arith.mulf %333, %331 : vector<32x128xf32>
    %cst_174 = arith.constant 5.000000e-01 : f32
    %cst_175 = arith.constant 5.000000e-02 : f32
    %335 = arith.mulf %cst_174, %cst_175 : f32
    %336 = vector.broadcast %335 : f32 to vector<32x128xf32>
    %337 = arith.mulf %336, %331 : vector<32x128xf32>
    %338 = arith.addf %277, %337 : vector<32x128xf32>
    %cst_176 = arith.constant dense<0.000000e+00> : vector<32x128xf32>
    %339 = tpu.matmul %282, %338, %cst_176 {dimension_numbers = #tpu.dot_dimension_numbers<[1], [0], [0], [1], [0, 0, 1, 1], [], []>} : vector<32x32xf32>, vector<32x128xf32>, vector<32x128xf32> -> vector<32x128xf32>
    %340 = arith.addf %339, %286 : vector<32x128xf32>
    %341 = math.tanh %340 : vector<32x128xf32>
    %cst_177 = arith.constant 5.000000e-02 : f32
    %cst_178 = arith.constant 3.000000e+00 : f32
    %342 = arith.divf %cst_177, %cst_178 : f32
    %343 = vector.broadcast %342 : f32 to vector<32x128xf32>
    %344 = arith.mulf %343, %341 : vector<32x128xf32>
    %345 = arith.addf %334, %344 : vector<32x128xf32>
    %cst_179 = arith.constant 5.000000e-01 : f32
    %cst_180 = arith.constant 5.000000e-02 : f32
    %346 = arith.mulf %cst_179, %cst_180 : f32
    %347 = vector.broadcast %346 : f32 to vector<32x128xf32>
    %348 = arith.mulf %347, %341 : vector<32x128xf32>
    %349 = arith.addf %277, %348 : vector<32x128xf32>
    %cst_181 = arith.constant dense<0.000000e+00> : vector<32x128xf32>
    %350 = tpu.matmul %282, %349, %cst_181 {dimension_numbers = #tpu.dot_dimension_numbers<[1], [0], [0], [1], [0, 0, 1, 1], [], []>} : vector<32x32xf32>, vector<32x128xf32>, vector<32x128xf32> -> vector<32x128xf32>
    %351 = arith.addf %350, %286 : vector<32x128xf32>
    %352 = math.tanh %351 : vector<32x128xf32>
    %cst_182 = arith.constant 5.000000e-02 : f32
    %cst_183 = arith.constant 3.000000e+00 : f32
    %353 = arith.divf %cst_182, %cst_183 : f32
    %354 = vector.broadcast %353 : f32 to vector<32x128xf32>
    %355 = arith.mulf %354, %352 : vector<32x128xf32>
    %356 = arith.addf %345, %355 : vector<32x128xf32>
    %cst_184 = arith.constant 5.000000e-02 : f32
    %357 = vector.broadcast %cst_184 : f32 to vector<32x128xf32>
    %358 = arith.mulf %357, %352 : vector<32x128xf32>
    %359 = arith.addf %277, %358 : vector<32x128xf32>
    %cst_185 = arith.constant dense<0.000000e+00> : vector<32x128xf32>
    %360 = tpu.matmul %282, %359, %cst_185 {dimension_numbers = #tpu.dot_dimension_numbers<[1], [0], [0], [1], [0, 0, 1, 1], [], []>} : vector<32x32xf32>, vector<32x128xf32>, vector<32x128xf32> -> vector<32x128xf32>
    %361 = arith.addf %360, %286 : vector<32x128xf32>
    %362 = math.tanh %361 : vector<32x128xf32>
    %363 = arith.addf %277, %356 : vector<32x128xf32>
    %cst_186 = arith.constant 5.000000e-02 : f32
    %cst_187 = arith.constant 6.000000e+00 : f32
    %364 = arith.divf %cst_186, %cst_187 : f32
    %365 = vector.broadcast %364 : f32 to vector<32x128xf32>
    %366 = arith.mulf %365, %362 : vector<32x128xf32>
    %367 = arith.addf %363, %366 : vector<32x128xf32>
    %c4_188 = arith.constant 4 : index
    %c0_189 = arith.constant 0 : index
    %c128_190 = arith.constant 128 : index
    %368 = vector.load %arg8[%c4_188, %c0_189, %c128_190] : memref<5x32x256xf32, #tpu.memory_space<vmem>>, vector<1x32x128xf32>
    %369 = vector.shape_cast %368 : vector<1x32x128xf32> to vector<32x128xf32>
    %370 = vector.shape_cast %367 : vector<32x128xf32> to vector<1x32x128xf32>
    tpu.vector_store %arg8[%c4_188, %c0_189, %c128_190], %370 {strides = array<i32>} : memref<5x32x256xf32, #tpu.memory_space<vmem>>, vector<1x32x128xf32>,
    %c0_191 = arith.constant 0 : index
    %c0_192 = arith.constant 0 : index
    %371 = vector.load %arg5[%c0_191, %c0_192] : memref<3x32xf32, #tpu.memory_space<vmem>>, vector<3x32xf32>
    %c0_193 = arith.constant 0 : index
    %c0_194 = arith.constant 0 : index
    %372 = vector.load %arg6[%c0_193, %c0_194] : memref<3x1xf32, #tpu.memory_space<vmem>>, vector<3x1xf32>
    %373 = vector.shape_cast %372 : vector<3x1xf32> to vector<3x1xf32>
    %374 = vector.broadcast %373 : vector<3x1xf32> to vector<3x128xf32>
    %cst_195 = arith.constant dense<0.000000e+00> : vector<3x128xf32>
    %375 = tpu.matmul %371, %325, %cst_195 {dimension_numbers = #tpu.dot_dimension_numbers<[1], [0], [0], [1], [0, 0, 1, 1], [], []>} : vector<3x32xf32>, vector<32x128xf32>, vector<3x128xf32> -> vector<3x128xf32>
    %376 = arith.addf %375, %374 : vector<3x128xf32>
    %c0_196 = arith.constant 0 : index
    %c0_197 = arith.constant 0 : index
    %377 = vector.load %arg7[%c0_196, %c0_197] : memref<3x256xf32, #tpu.memory_space<vmem>>, vector<3x128xf32>
    tpu.vector_store %arg7[%c0_196, %c0_197], %376 {strides = array<i32>} : memref<3x256xf32, #tpu.memory_space<vmem>>, vector<3x128xf32>,
    %cst_198 = arith.constant dense<0.000000e+00> : vector<3x128xf32>
    %378 = tpu.matmul %371, %367, %cst_198 {dimension_numbers = #tpu.dot_dimension_numbers<[1], [0], [0], [1], [0, 0, 1, 1], [], []>} : vector<3x32xf32>, vector<32x128xf32>, vector<3x128xf32> -> vector<3x128xf32>
    %379 = arith.addf %378, %374 : vector<3x128xf32>
    %c0_199 = arith.constant 0 : index
    %c128_200 = arith.constant 128 : index
    %380 = vector.load %arg7[%c0_199, %c128_200] : memref<3x256xf32, #tpu.memory_space<vmem>>, vector<3x128xf32>
    tpu.vector_store %arg7[%c0_199, %c128_200], %379 {strides = array<i32>} : memref<3x256xf32, #tpu.memory_space<vmem>>, vector<3x128xf32>,
    return
  }
  func.func @transform_0(%arg0: i32) -> (i32, i32) {
    %c0_i32 = arith.constant 0 : i32
    %c0_i32_0 = arith.constant 0 : i32
    return %c0_i32, %arg0 : i32, i32
  }
  func.func @transform_1(%arg0: i32) -> (i32, i32) {
    %c0_i32 = arith.constant 0 : i32
    %c0_i32_0 = arith.constant 0 : i32
    %c0_i32_1 = arith.constant 0 : i32
    return %c0_i32, %c0_i32_0 : i32, i32
  }
  func.func @transform_2(%arg0: i32) -> (i32, i32, i32) {
    %c0_i32 = arith.constant 0 : i32
    %c0_i32_0 = arith.constant 0 : i32
    %c0_i32_1 = arith.constant 0 : i32
    %c0_i32_2 = arith.constant 0 : i32
    return %c0_i32, %c0_i32_0, %c0_i32_1 : i32, i32, i32
  }
  func.func @transform_3(%arg0: i32) -> (i32, i32, i32) {
    %c0_i32 = arith.constant 0 : i32
    %c0_i32_0 = arith.constant 0 : i32
    %c0_i32_1 = arith.constant 0 : i32
    %c0_i32_2 = arith.constant 0 : i32
    return %c0_i32, %c0_i32_0, %c0_i32_1 : i32, i32, i32
  }
  func.func @transform_4(%arg0: i32) -> (i32, i32) {
    %c0_i32 = arith.constant 0 : i32
    %c0_i32_0 = arith.constant 0 : i32
    %c0_i32_1 = arith.constant 0 : i32
    return %c0_i32, %c0_i32_0 : i32, i32
  }
  func.func @transform_5(%arg0: i32) -> (i32, i32) {
    %c0_i32 = arith.constant 0 : i32
    %c0_i32_0 = arith.constant 0 : i32
    %c0_i32_1 = arith.constant 0 : i32
    return %c0_i32, %c0_i32_0 : i32, i32
  }
  func.func @transform_6(%arg0: i32) -> (i32, i32) {
    %c0_i32 = arith.constant 0 : i32
    %c0_i32_0 = arith.constant 0 : i32
    return %c0_i32, %arg0 : i32, i32
  }
  func.func @transform_7(%arg0: i32) -> (i32, i32, i32) {
    %c0_i32 = arith.constant 0 : i32
    %c0_i32_0 = arith.constant 0 : i32
    %c0_i32_1 = arith.constant 0 : i32
    return %c0_i32, %c0_i32_0, %arg0 : i32, i32, i32
  }
}

</mosaic_0001>

<llo_original>
// kernel: tpu_custom_call.1
$region0: #{tpu_custom_call.1}
  #allocation0 [shape = 'u32[]', space=smem, size = 0x4, offset = 0x4, fixed_abs, tag = 'smem constant byte address 0x4 - core index']
  #allocation1 [shape = 'u32[144,128]{1,0:T(1,128)}', space=vmem, size = 0x12000, scoped, tag = 'internal scratch']
  %s0 = inlined_call_operand.vmem [shape: f32[2,1024], index: 0, kind: input, shape index: {}]
  %s1 = inlined_call_operand.vmem [shape: f32[32,2], index: 1, kind: input, shape index: {}]
  %s2 = inlined_call_operand.vmem [shape: f32[4,32,32], index: 2, kind: input, shape index: {}]
  %s3 = inlined_call_operand.vmem [shape: f32[4,32,1], index: 3, kind: input, shape index: {}]
  %s4 = inlined_call_operand.vmem [shape: f32[3,32], index: 4, kind: input, shape index: {}]
  %s5 = inlined_call_operand.vmem [shape: f32[3,1], index: 5, kind: input, shape index: {}]
  %s6 = inlined_call_operand.hbm [shape: f32[3,1024], index: 6, kind: output, shape index: {0}]
  %s7 = inlined_call_operand.hbm [shape: f32[5,32,1024], index: 7, kind: output, shape index: {1}]
  %8 = xla_tuple %s6, %s7
  %s9 = sld [smem:[#allocation0]]
  $region65: #{tpu_custom_call.1} parent=0
    _
  %s11 = ssub.s32 1, %s9
  %s12 = scalar_select 0, %s11, %s9
  $region1: #{tpu_custom_call.1} parent=0
    #allocation2 [shape = 'u8[8192]{0}', space=vmem, size = 0x2000, scoped, tag = 'output window, operand 0']
    #allocation3 [shape = 's32[2]{0}', space=sflag, size = 0x8, scoped, tag = 'scoped memory for tpu_custom_call.1']
    #allocation4 [shape = 'u8[327680]{0}', space=vmem, size = 0x50000, scoped, tag = 'output window, operand 1']
    #allocation5 [shape = 's32[2]{0}', space=sflag, size = 0x8, scoped, tag = 'scoped memory for tpu_custom_call.1']
    %13 = vsyncpa [#allocation3], 0
    %s14 = scalar_lea.sflag [#allocation3], 1
    %15 = vsyncpa %s14, 0
    %16 = vsyncpa [#allocation5], 0
    %s17 = scalar_lea.sflag [#allocation5], 1
    %18 = vsyncpa %s17, 0
    loop: start=0, step=1, limit=6
    $region2: #{tpu_custom_call.1} parent=1 // loop_pre_header
      _
    $region3: #{tpu_custom_call.1} parent=1 // loop_header
      %s20 = sphi 0, %s24
      %p21 = scmp.ge.s32.totalorder %s20, 6
      %s30 = sphi 0, %s32
      %s33 = sphi 0, %s30
      %s34 = sphi 0, %s33
      %s50 = sphi 0, %s34
      %s54 = sphi 0, %s54
      %s56 = sphi 0, %s54
      %s57 = sphi 0, %s56
      %s71 = sphi 0, %s57
      %s75 = sphi 0, %s75
      %s77 = sphi 0, %s75
      %s78 = sphi 0, %s77
      %s92 = sphi 0, %s78
      %s96 = sphi 0, %s96
      %s98 = sphi 0, %s96
      %s99 = sphi 0, %s98
      %s113 = sphi 0, %s99
      %s117 = sphi 0, %s117
      %s119 = sphi 0, %s117
      %s120 = sphi 0, %s119
      %s134 = sphi 0, %s120
      %s138 = sphi 0, %s138
      %s140 = sphi 0, %s138
      %s141 = sphi 0, %s140
      %s155 = sphi 0, %s141
      %s161 = sphi 0, %s163
      %s164 = sphi 0, %s161
      %s165 = sphi 0, %s164
      %s181 = sphi 0, %s165
      %s187 = sphi 0, %s189
      %s190 = sphi 0, %s187
      %s191 = sphi 0, %s190
      %s207 = sphi 0, %s191
    $region4: #{tpu_custom_call.1} parent=1 // loop_header_branch
      %23 = sbr.rel (%p21) target = $region8
    $region5: #{tpu_custom_call.1} parent=1 // loop_body
      %s25 = ssub.s32 %s20, 1
      %s26 = ssub.s32 %s20, 2
      %s27 = sadd.s32 %s20, 1
      %s28 = ssub.s32 %s20, %s27
      %p29 = scmp.eq.s32.totalorder %s28, 0
      %s31 = sadd.s32 %s30, 1
      %s32 = scalar_select %p29, %s30, %s31
      %p35 = pneg %p29
      %p36 = scmp.eq.s32.totalorder %s20, 3
      %p37 = por %p35, %p36
      %p38 = scmp.ne.s32.totalorder %s30, %s33
      %p39 = scmp.eq.s32.totalorder %s20, 0
      %p40 = por %p38, %p39
      %p41 = scmp.ne.s32.totalorder %s30, %s33
      %p42 = scmp.eq.s32.totalorder %s25, 3
      %p43 = por %p41, %p42
      %p44 = scmp.ne.s32.totalorder %s33, %s34
      %p45 = scmp.eq.s32.totalorder %s25, 0
      %p46 = por %p44, %p45
      %p47 = scmp.ne.s32.totalorder %s33, %s34
      %p48 = scmp.eq.s32.totalorder %s26, 3
      %p49 = por %p47, %p48
      %p51 = scmp.ne.s32.totalorder %s34, %s50
      %p52 = scmp.eq.s32.totalorder %s26, 0
      %p53 = por %p51, %p52
      %s55 = sadd.s32 %s54, 1
      %p58 = scmp.eq.s32.totalorder %s20, 3
      %p59 = scmp.ne.s32.totalorder %s54, %s56
      %p60 = scmp.eq.s32.totalorder %s20, 0
      %p61 = por %p59, %p60
      %p62 = scmp.ne.s32.totalorder %s54, %s56
      %p63 = scmp.eq.s32.totalorder %s25, 3
      %p64 = por %p62, %p63
      %p65 = scmp.ne.s32.totalorder %s56, %s57
      %p66 = scmp.eq.s32.totalorder %s25, 0
      %p67 = por %p65, %p66
      %p68 = scmp.ne.s32.totalorder %s56, %s57
      %p69 = scmp.eq.s32.totalorder %s26, 3
      %p70 = por %p68, %p69
      %p72 = scmp.ne.s32.totalorder %s57, %s71
      %p73 = scmp.eq.s32.totalorder %s26, 0
      %p74 = por %p72, %p73
      %s76 = sadd.s32 %s75, 1
      %p79 = scmp.eq.s32.totalorder %s20, 3
      %p80 = scmp.ne.s32.totalorder %s75, %s77
      %p81 = scmp.eq.s32.totalorder %s20, 0
      %p82 = por %p80, %p81
      %p83 = scmp.ne.s32.totalorder %s75, %s77
      %p84 = scmp.eq.s32.totalorder %s25, 3
      %p85 = por %p83, %p84
      %p86 = scmp.ne.s32.totalorder %s77, %s78
      %p87 = scmp.eq.s32.totalorder %s25, 0
      %p88 = por %p86, %p87
      %p89 = scmp.ne.s32.totalorder %s77, %s78
      %p90 = scmp.eq.s32.totalorder %s26, 3
      %p91 = por %p89, %p90
      %p93 = scmp.ne.s32.totalorder %s78, %s92
      %p94 = scmp.eq.s32.totalorder %s26, 0
      %p95 = por %p93, %p94
      %s97 = sadd.s32 %s96, 1
      %p100 = scmp.eq.s32.totalorder %s20, 3
      %p101 = scmp.ne.s32.totalorder %s96, %s98
      %p102 = scmp.eq.s32.totalorder %s20, 0
      %p103 = por %p101, %p102
      %p104 = scmp.ne.s32.totalorder %s96, %s98
      %p105 = scmp.eq.s32.totalorder %s25, 3
      %p106 = por %p104, %p105
      %p107 = scmp.ne.s32.totalorder %s98, %s99
      %p108 = scmp.eq.s32.totalorder %s25, 0
      %p109 = por %p107, %p108
      %p110 = scmp.ne.s32.totalorder %s98, %s99
      %p111 = scmp.eq.s32.totalorder %s26, 3
      %p112 = por %p110, %p111
      %p114 = scmp.ne.s32.totalorder %s99, %s113
      %p115 = scmp.eq.s32.totalorder %s26, 0
      %p116 = por %p114, %p115
      %s118 = sadd.s32 %s117, 1
      %p121 = scmp.eq.s32.totalorder %s20, 3
      %p122 = scmp.ne.s32.totalorder %s117, %s119
      %p123 = scmp.eq.s32.totalorder %s20, 0
      %p124 = por %p122, %p123
      %p125 = scmp.ne.s32.totalorder %s117, %s119
      %p126 = scmp.eq.s32.totalorder %s25, 3
      %p127 = por %p125, %p126
      %p128 = scmp.ne.s32.totalorder %s119, %s120
      %p129 = scmp.eq.s32.totalorder %s25, 0
      %p130 = por %p128, %p129
      %p131 = scmp.ne.s32.totalorder %s119, %s120
      %p132 = scmp.eq.s32.totalorder %s26, 3
      %p133 = por %p131, %p132
      %p135 = scmp.ne.s32.totalorder %s120, %s134
      %p136 = scmp.eq.s32.totalorder %s26, 0
      %p137 = por %p135, %p136
      %s139 = sadd.s32 %s138, 1
      %p142 = scmp.eq.s32.totalorder %s20, 3
      %p143 = scmp.ne.s32.totalorder %s138, %s140
      %p144 = scmp.eq.s32.totalorder %s20, 0
      %p145 = por %p143, %p144
      %p146 = scmp.ne.s32.totalorder %s138, %s140
      %p147 = scmp.eq.s32.totalorder %s25, 3
      %p148 = por %p146, %p147
      %p149 = scmp.ne.s32.totalorder %s140, %s141
      %p150 = scmp.eq.s32.totalorder %s25, 0
      %p151 = por %p149, %p150
      %p152 = scmp.ne.s32.totalorder %s140, %s141
      %p153 = scmp.eq.s32.totalorder %s26, 3
      %p154 = por %p152, %p153
      %p156 = scmp.ne.s32.totalorder %s141, %s155
      %p157 = scmp.eq.s32.totalorder %s26, 0
      %p158 = por %p156, %p157
      %s159 = ssub.s32 %s20, %s27
      %p160 = scmp.eq.s32.totalorder %s159, 0
      %s162 = sadd.s32 %s161, 1
      %s163 = scalar_select %p160, %s161, %s162
      %p166 = pneg %p160
      %p167 = scmp.eq.s32.totalorder %s20, 3
      %p168 = por %p166, %p167
      %p169 = scmp.ne.s32.totalorder %s161, %s164
      %p170 = scmp.eq.s32.totalorder %s20, 0
      %p171 = por %p169, %p170
      %p172 = scmp.ne.s32.totalorder %s161, %s164
      %p173 = scmp.eq.s32.totalorder %s25, 3
      %p174 = por %p172, %p173
      %p175 = scmp.ne.s32.totalorder %s164, %s165
      %p176 = scmp.eq.s32.totalorder %s25, 0
      %p177 = por %p175, %p176
      %p178 = scmp.ne.s32.totalorder %s164, %s165
      %p179 = scmp.eq.s32.totalorder %s26, 3
      %p180 = por %p178, %p179
      %p182 = scmp.ne.s32.totalorder %s165, %s181
      %p183 = scmp.eq.s32.totalorder %s26, 0
      %p184 = por %p182, %p183
      %s185 = ssub.s32 %s20, %s27
      %p186 = scmp.eq.s32.totalorder %s185, 0
      %s188 = sadd.s32 %s187, 1
      %s189 = scalar_select %p186, %s187, %s188
      %p192 = pneg %p186
      %p193 = scmp.eq.s32.totalorder %s20, 3
      %p194 = por %p192, %p193
      %p195 = scmp.ne.s32.totalorder %s187, %s190
      %p196 = scmp.eq.s32.totalorder %s20, 0
      %p197 = por %p195, %p196
      %p198 = scmp.ne.s32.totalorder %s187, %s190
      %p199 = scmp.eq.s32.totalorder %s25, 3
      %p200 = por %p198, %p199
      %p201 = scmp.ne.s32.totalorder %s190, %s191
      %p202 = scmp.eq.s32.totalorder %s25, 0
      %p203 = por %p201, %p202
      %p204 = scmp.ne.s32.totalorder %s190, %s191
      %p205 = scmp.eq.s32.totalorder %s26, 3
      %p206 = por %p204, %p205
      %p208 = scmp.ne.s32.totalorder %s191, %s207
      %p209 = scmp.eq.s32.totalorder %s26, 0
      %p210 = por %p208, %p209
      %p211 = scmp.le.s32.totalorder 1, %s20
      %p212 = scmp.lt.s32.totalorder %s20, 5
      %p213 = pnand %p211, %p212
      %p214 = pneg %p213
      // Predicated region
      $region9: #{tpu_custom_call.1} parent=5 // pred_check
        _
      $region10: #{tpu_custom_call.1} parent=5 // pred_check_branch
        %216 = sbr.rel (%p213) target = $region12
      $region11: #{tpu_custom_call.1} parent=5 // pred_region
        %s217 = ssub.s32 %s20, 1
        // Predicated region
        $region13: #{tpu_custom_call.1} parent=11 // pred_check
          %p218 = pneg %p67
        $region14: #{tpu_custom_call.1} parent=11 // pred_check_branch
          %220 = sbr.rel (%p218) target = $region16
        $region15: #{tpu_custom_call.1} parent=11 // pred_region
          _
        $region16: #{tpu_custom_call.1} parent=11 // pred_fallthru
          _
        // Predicated region
        $region17: #{tpu_custom_call.1} parent=11 // pred_check
          %p221 = pneg %p88
        $region18: #{tpu_custom_call.1} parent=11 // pred_check_branch
          %223 = sbr.rel (%p221) target = $region20
        $region19: #{tpu_custom_call.1} parent=11 // pred_region
          _
        $region20: #{tpu_custom_call.1} parent=11 // pred_fallthru
          _
        // Predicated region
        $region21: #{tpu_custom_call.1} parent=11 // pred_check
          %p224 = pneg %p109
        $region22: #{tpu_custom_call.1} parent=11 // pred_check_branch
          %226 = sbr.rel (%p224) target = $region24
        $region23: #{tpu_custom_call.1} parent=11 // pred_region
          _
        $region24: #{tpu_custom_call.1} parent=11 // pred_fallthru
          _
        // Predicated region
        $region25: #{tpu_custom_call.1} parent=11 // pred_check
          %p227 = pneg %p130
        $region26: #{tpu_custom_call.1} parent=11 // pred_check_branch
          %229 = sbr.rel (%p227) target = $region28
        $region27: #{tpu_custom_call.1} parent=11 // pred_region
          _
        $region28: #{tpu_custom_call.1} parent=11 // pred_fallthru
          _
        // Predicated region
        $region29: #{tpu_custom_call.1} parent=11 // pred_check
          %p230 = pneg %p151
        $region30: #{tpu_custom_call.1} parent=11 // pred_check_branch
          %232 = sbr.rel (%p230) target = $region32
        $region31: #{tpu_custom_call.1} parent=11 // pred_region
          _
        $region32: #{tpu_custom_call.1} parent=11 // pred_fallthru
          _
      $region12: #{tpu_custom_call.1} parent=5 // pred_fallthru
        _
      %p233 = scmp.lt.s32.totalorder %s20, 4
      // Predicated region
      $region33: #{tpu_custom_call.1} parent=5 // pred_check
        %p234 = pneg %p233
      $region34: #{tpu_custom_call.1} parent=5 // pred_check_branch
        %236 = sbr.rel (%p234) target = $region36
      $region35: #{tpu_custom_call.1} parent=5 // pred_region
        // Predicated region
        $region37: #{tpu_custom_call.1} parent=35 // pred_check
          %p237 = pneg %p40
        $region38: #{tpu_custom_call.1} parent=35 // pred_check_branch
          %239 = sbr.rel (%p237) target = $region40
        $region39: #{tpu_custom_call.1} parent=35 // pred_region
          %s240 = smul.u32 2, %s20
          %p241 = scmp.lt.s32.totalorder %s240, 7
          %s242 = scalar_select %p241, %s240, 7
          %s243 = smul.addr %s242, 2
          %s244 = scalar_lea.vmem %s0, %s243
          %s245 = smul.u32 2, %s20
        $region40: #{tpu_custom_call.1} parent=35 // pred_fallthru
          _
      $region36: #{tpu_custom_call.1} parent=5 // pred_fallthru
        _
      %p246 = scmp.le.s32.totalorder 1, %s20
      %p247 = scmp.lt.s32.totalorder %s20, 5
      %p248 = pnand %p246, %p247
      %p249 = pneg %p248
      // Predicated region
      $region41: #{tpu_custom_call.1} parent=5 // pred_check
        _
      $region42: #{tpu_custom_call.1} parent=5 // pred_check_branch
        %251 = sbr.rel (%p248) target = $region44
      $region43: #{tpu_custom_call.1} parent=5 // pred_region
        %s252 = ssub.s32 %s20, 1
        %s253 = smul.u32 2, %s25
        %p254 = scmp.lt.s32.totalorder %s253, 7
        %s255 = scalar_select %p254, %s253, 7
        %s256 = smul.addr %s255, 2
        %s257 = scalar_lea.vmem %s0, %s256
        %p258 = pneg %p46
        %p259 = pneg %p43
        %p260 = pneg %p67
        %p261 = pneg %p64
        %p262 = pneg %p88
        %p263 = pneg %p85
        %p264 = pneg %p109
        %p265 = pneg %p106
        %p266 = pneg %p130
        %p267 = pneg %p127
        %p268 = pneg %p151
        %p269 = pneg %p148
        %p270 = pneg %p177
        %p271 = pneg %p174
        %s272 = sand.u32 %s164, 1
        %s273 = scalar_lea.sflag [#allocation3], %s272
        %s274 = sand.u32 %s164, 1
        %s275 = smul.addr %s274, 8
        %s276 = scalar_lea.vmem [#allocation2], %s275
        %p277 = pneg %p203
        %p278 = pneg %p200
        %s279 = sand.u32 %s190, 1
        %s280 = scalar_lea.sflag [#allocation5], %s279
        %s281 = sand.u32 %s190, 1
        %s282 = smul.addr %s281, 320
        %s283 = scalar_lea.vmem [#allocation4], %s282
        %s284 = smul.u32 2, %s25
        %p285 = scmp.lt.s32.totalorder %s284, 7
        %s286 = scalar_select %p285, %s284, 7
        %s287 = smul.addr %s286, 2
        %s288 = scalar_lea.vmem %s0, %s287
        %s289 = smul.u32 2, %s25
        %s290 = smul.u32 2, %s25
        %s291 = smul.u32 2, %s25
        %v292 = vld [vmem:[%s1] sm:$0xff]
        %v293 = vld [vmem:[%s1 + $0x8] sm:$0xff]
        %v294 = vld [vmem:[%s1 + $0x10] sm:$0xff]
        %v295 = vld [vmem:[%s1 + $0x18] sm:$0xff]
        %v296 = vld [vmem:[%s288] sm:$0x3]
        %vm297 = vcmask 15360
        %v299 = vsel %vm297, %v292, 0
        %v302 = vsel %vm297, %v293, 0
        %v305 = vsel %vm297, %v294, 0
        %v308 = vsel %vm297, %v295, 0
        %vm310 = vcmask 1041408
        %v312 = vsel %vm310, %v296, 0
        %314 = vmatprep.subr.mxu0 0.0
        %315 = vmatpush1.msra.mxu0 %v312
        %316 = vmatprep.subr.mxu0 0.0
        %317 = vmatpush1.msra.mxu0 0.0
        %318 = vmatprep.subr.mxu0 0.0
        %319 = vmatpush1.msra.mxu0 0.0
        %320 = vmatprep.subr.mxu0 0.0
        %321 = vmatpush1.msra.mxu0 0.0
        %322 = vmatprep.subr.mxu0 0.0
        %323 = vmatpush1.msra.mxu0 0.0
        %324 = vmatprep.subr.mxu0 0.0
        %325 = vmatpush1.msra.mxu0 0.0
        %326 = vmatprep.subr.mxu0 0.0
        %327 = vmatpush1.msra.mxu0 0.0
        %328 = vmatprep.subr.mxu0 0.0
        %329 = vmatpush1.msra.mxu0 0.0
        %330 = vmatprep.subr.mxu0 0.0
        %331 = vmatpush1.msra.mxu0 0.0
        %332 = vmatprep.subr.mxu0 0.0
        %333 = vmatpush1.msra.mxu0 0.0
        %334 = vmatprep.subr.mxu0 0.0
        %335 = vmatpush1.msra.mxu0 0.0
        %336 = vmatprep.subr.mxu0 0.0
        %337 = vmatpush1.msra.mxu0 0.0
        %338 = vmatprep.subr.mxu0 0.0
        %339 = vmatpush1.msra.mxu0 0.0
        %340 = vmatprep.subr.mxu0 0.0
        %341 = vmatpush1.msra.mxu0 0.0
        %342 = vmatprep.subr.mxu0 0.0
        %343 = vmatpush1.msra.mxu0 0.0
        %344 = vmatprep.subr.mxu0 0.0
        %345 = vmatpush1.msra.mxu0 0.0
        %346 = vmatprep.subr.mxu0 0.0
        %347 = vmatpush1.msra.mxu0 0.0
        %348 = vmatprep.subr.mxu0 0.0
        %349 = vmatpush1.msra.mxu0 0.0
        %350 = vmatprep.subr.mxu0 0.0
        %351 = vmatpush1.msra.mxu0 0.0
        %352 = vmatprep.subr.mxu0 0.0
        %353 = vmatpush1.msra.mxu0 0.0
        %354 = vmatprep.subr.mxu0 0.0
        %355 = vmatpush1.msra.mxu0 0.0
        %356 = vmatprep.subr.mxu0 0.0
        %357 = vmatpush1.msra.mxu0 0.0
        %358 = vmatprep.subr.mxu0 0.0
        %359 = vmatpush1.msra.mxu0 0.0
        %360 = vmatprep.subr.mxu0 0.0
        %361 = vmatpush1.msra.mxu0 0.0
        %362 = vmatprep.subr.mxu0 0.0
        %363 = vmatpush1.msra.mxu0 0.0
        %364 = vmatprep.subr.mxu0 0.0
        %365 = vmatpush1.msra.mxu0 0.0
        %366 = vmatprep.subr.mxu0 0.0
        %367 = vmatpush1.msra.mxu0 0.0
        %368 = vmatprep.subr.mxu0 0.0
        %369 = vmatpush1.msra.mxu0 0.0
        %370 = vmatprep.subr.mxu0 0.0
        %371 = vmatpush1.msra.mxu0 0.0
        %372 = vmatprep.subr.mxu0 0.0
        %373 = vmatpush1.msra.mxu0 0.0
        %374 = vmatprep.subr.mxu0 0.0
        %375 = vmatpush1.msra.mxu0 0.0
        %376 = vmatprep.subr.mxu0 0.0
        %377 = vmatpush1.msra.mxu0 0.0
        %378 = vmatprep.mubr.f32.mxu0 0.0
        %379 = vmatmul.mubr.f32.gmra.mrb[0].mxu0 %v299
        %v380 = vpop.f32.mrb[0].mxu0
        %v381 = vadd.f32 0.0, %v380
        %v382 = vpop.f32.mrb[0].mxu0
        %383 = vmatprep.mubr.f32.mxu0 0.0
        %384 = vmatmul.mubr.f32.gmra.mrb[0].mxu0 %v302
        %v385 = vpop.f32.mrb[0].mxu0
        %v386 = vadd.f32 0.0, %v385
        %v387 = vpop.f32.mrb[0].mxu0
        %388 = vmatprep.mubr.f32.mxu0 0.0
        %389 = vmatmul.mubr.f32.gmra.mrb[0].mxu0 %v305
        %v390 = vpop.f32.mrb[0].mxu0
        %v391 = vadd.f32 0.0, %v390
        %v392 = vpop.f32.mrb[0].mxu0
        %393 = vmatprep.mubr.f32.mxu0 0.0
        %394 = vmatmul.mubr.f32.gmra.mrb[0].mxu0 %v308
        %v395 = vpop.f32.mrb[0].mxu0
        %v396 = vadd.f32 0.0, %v395
        %v397 = vpop.f32.mrb[0].mxu0
        %398 = vdwg.mxu0
        %399 = vst [vmem:[%s283] sm:$0xff] %v381
        %400 = vst [vmem:[%s283 + $0x10] sm:$0xff] %v386
        %401 = vst [vmem:[%s283 + $0x20] sm:$0xff] %v391
        %402 = vst [vmem:[%s283 + $0x30] sm:$0xff] %v396
        %v403 = vld [vmem:[%s288 + $0x2] sm:$0x3]
        %v405 = vsel %vm310, %v403, 0
        %407 = vmatprep.subr.mxu0 0.0
        %408 = vmatpush1.msra.mxu0 %v405
        %409 = vmatprep.subr.mxu0 0.0
        %410 = vmatpush1.msra.mxu0 0.0
        %411 = vmatprep.subr.mxu0 0.0
        %412 = vmatpush1.msra.mxu0 0.0
        %413 = vmatprep.subr.mxu0 0.0
        %414 = vmatpush1.msra.mxu0 0.0
        %415 = vmatprep.subr.mxu0 0.0
        %416 = vmatpush1.msra.mxu0 0.0
        %417 = vmatprep.subr.mxu0 0.0
        %418 = vmatpush1.msra.mxu0 0.0
        %419 = vmatprep.subr.mxu0 0.0
        %420 = vmatpush1.msra.mxu0 0.0
        %421 = vmatprep.subr.mxu0 0.0
        %422 = vmatpush1.msra.mxu0 0.0
        %423 = vmatprep.subr.mxu0 0.0
        %424 = vmatpush1.msra.mxu0 0.0
        %425 = vmatprep.subr.mxu0 0.0
        %426 = vmatpush1.msra.mxu0 0.0
        %427 = vmatprep.subr.mxu0 0.0
        %428 = vmatpush1.msra.mxu0 0.0
        %429 = vmatprep.subr.mxu0 0.0
        %430 = vmatpush1.msra.mxu0 0.0
        %431 = vmatprep.subr.mxu0 0.0
        %432 = vmatpush1.msra.mxu0 0.0
        %433 = vmatprep.subr.mxu0 0.0
        %434 = vmatpush1.msra.mxu0 0.0
        %435 = vmatprep.subr.mxu0 0.0
        %436 = vmatpush1.msra.mxu0 0.0
        %437 = vmatprep.subr.mxu0 0.0
        %438 = vmatpush1.msra.mxu0 0.0
        %439 = vmatprep.subr.mxu0 0.0
        %440 = vmatpush1.msra.mxu0 0.0
        %441 = vmatprep.subr.mxu0 0.0
        %442 = vmatpush1.msra.mxu0 0.0
        %443 = vmatprep.subr.mxu0 0.0
        %444 = vmatpush1.msra.mxu0 0.0
        %445 = vmatprep.subr.mxu0 0.0
        %446 = vmatpush1.msra.mxu0 0.0
        %447 = vmatprep.subr.mxu0 0.0
        %448 = vmatpush1.msra.mxu0 0.0
        %449 = vmatprep.subr.mxu0 0.0
        %450 = vmatpush1.msra.mxu0 0.0
        %451 = vmatprep.subr.mxu0 0.0
        %452 = vmatpush1.msra.mxu0 0.0
        %453 = vmatprep.subr.mxu0 0.0
        %454 = vmatpush1.msra.mxu0 0.0
        %455 = vmatprep.subr.mxu0 0.0
        %456 = vmatpush1.msra.mxu0 0.0
        %457 = vmatprep.subr.mxu0 0.0
        %458 = vmatpush1.msra.mxu0 0.0
        %459 = vmatprep.subr.mxu0 0.0
        %460 = vmatpush1.msra.mxu0 0.0
        %461 = vmatprep.subr.mxu0 0.0
        %462 = vmatpush1.msra.mxu0 0.0
        %463 = vmatprep.subr.mxu0 0.0
        %464 = vmatpush1.msra.mxu0 0.0
        %465 = vmatprep.subr.mxu0 0.0
        %466 = vmatpush1.msra.mxu0 0.0
        %467 = vmatprep.subr.mxu0 0.0
        %468 = vmatpush1.msra.mxu0 0.0
        %469 = vmatprep.subr.mxu0 0.0
        %470 = vmatpush1.msra.mxu0 0.0
        %471 = vmatprep.mubr.f32.mxu0 0.0
        %472 = vmatmul.mubr.f32.gmra.mrb[0].mxu0 %v299
        %v473 = vpop.f32.mrb[0].mxu0
        %v474 = vadd.f32 0.0, %v473
        %v475 = vpop.f32.mrb[0].mxu0
        %476 = vmatprep.mubr.f32.mxu0 0.0
        %477 = vmatmul.mubr.f32.gmra.mrb[0].mxu0 %v302
        %v478 = vpop.f32.mrb[0].mxu0
        %v479 = vadd.f32 0.0, %v478
        %v480 = vpop.f32.mrb[0].mxu0
        %481 = vmatprep.mubr.f32.mxu0 0.0
        %482 = vmatmul.mubr.f32.gmra.mrb[0].mxu0 %v305
        %v483 = vpop.f32.mrb[0].mxu0
        %v484 = vadd.f32 0.0, %v483
        %v485 = vpop.f32.mrb[0].mxu0
        %486 = vmatprep.mubr.f32.mxu0 0.0
        %487 = vmatmul.mubr.f32.gmra.mrb[0].mxu0 %v308
        %v488 = vpop.f32.mrb[0].mxu0
        %v489 = vadd.f32 0.0, %v488
        %v490 = vpop.f32.mrb[0].mxu0
        %491 = vdwg.mxu0
        %492 = vst [vmem:[%s283 + $0x8] sm:$0xff] %v474
        %493 = vst [vmem:[%s283 + $0x18] sm:$0xff] %v479
        %494 = vst [vmem:[%s283 + $0x28] sm:$0xff] %v484
        %495 = vst [vmem:[%s283 + $0x38] sm:$0xff] %v489
        %v496 = vld [vmem:[%s2] sm:$0xff]
        %v497 = vld [vmem:[%s2 + $0x8] sm:$0xff]
        %v498 = vld [vmem:[%s2 + $0x10] sm:$0xff]
        %v499 = vld [vmem:[%s2 + $0x18] sm:$0xff]
        %v500 = vld [vmem:[%s3] sm:$0xff]
        %v501 = vld [vmem:[%s3 + $0x8] sm:$0xff]
        %v502 = vld [vmem:[%s3 + $0x10] sm:$0xff]
        %v503 = vld [vmem:[%s3 + $0x18] sm:$0xff]
        %505 = vset.pattern.permute.xlu0 0
        %506 = vperm.xlu0 %505, %v500
        %v507 = vpop.permute.xlu0 %506
        %510 = vset.pattern.permute.xlu0 0
        %511 = vperm.xlu0 %510, %v501
        %v512 = vpop.permute.xlu0 %511
        %515 = vset.pattern.permute.xlu0 0
        %516 = vperm.xlu0 %515, %v502
        %v517 = vpop.permute.xlu0 %516
        %520 = vset.pattern.permute.xlu0 0
        %521 = vperm.xlu0 %520, %v503
        %v522 = vpop.permute.xlu0 %521
        %vm524 = vcmask 261120
        %v526 = vsel %vm524, %v496, 0
        %v529 = vsel %vm524, %v497, 0
        %v532 = vsel %vm524, %v498, 0
        %v535 = vsel %vm524, %v499, 0
        %537 = vmatprep.subr.mxu0 0.0
        %538 = vmatpush1.msra.mxu0 %v381
        %539 = vmatprep.subr.mxu0 0.0
        %540 = vmatpush1.msra.mxu0 %v386
        %541 = vmatprep.subr.mxu0 0.0
        %542 = vmatpush1.msra.mxu0 %v391
        %543 = vmatprep.subr.mxu0 0.0
        %544 = vmatpush1.msra.mxu0 %v396
        %545 = vmatprep.subr.mxu0 0.0
        %546 = vmatpush1.msra.mxu0 0.0
        %547 = vmatprep.subr.mxu0 0.0
        %548 = vmatpush1.msra.mxu0 0.0
        %549 = vmatprep.subr.mxu0 0.0
        %550 = vmatpush1.msra.mxu0 0.0
        %551 = vmatprep.subr.mxu0 0.0
        %552 = vmatpush1.msra.mxu0 0.0
        %553 = vmatprep.subr.mxu0 0.0
        %554 = vmatpush1.msra.mxu0 0.0
        %555 = vmatprep.subr.mxu0 0.0
        %556 = vmatpush1.msra.mxu0 0.0
        %557 = vmatprep.subr.mxu0 0.0
        %558 = vmatpush1.msra.mxu0 0.0
        %559 = vmatprep.subr.mxu0 0.0
        %560 = vmatpush1.msra.mxu0 0.0
        %561 = vmatprep.subr.mxu0 0.0
        %562 = vmatpush1.msra.mxu0 0.0
        %563 = vmatprep.subr.mxu0 0.0
        %564 = vmatpush1.msra.mxu0 0.0
        %565 = vmatprep.subr.mxu0 0.0
        %566 = vmatpush1.msra.mxu0 0.0
        %567 = vmatprep.subr.mxu0 0.0
        %568 = vmatpush1.msra.mxu0 0.0
        %569 = vmatprep.subr.mxu0 0.0
        %570 = vmatpush1.msra.mxu0 0.0
        %571 = vmatprep.subr.mxu0 0.0
        %572 = vmatpush1.msra.mxu0 0.0
        %573 = vmatprep.subr.mxu0 0.0
        %574 = vmatpush1.msra.mxu0 0.0
        %575 = vmatprep.subr.mxu0 0.0
        %576 = vmatpush1.msra.mxu0 0.0
        %577 = vmatprep.subr.mxu0 0.0
        %578 = vmatpush1.msra.mxu0 0.0
        %579 = vmatprep.subr.mxu0 0.0
        %580 = vmatpush1.msra.mxu0 0.0
        %581 = vmatprep.subr.mxu0 0.0
        %582 = vmatpush1.msra.mxu0 0.0
        %583 = vmatprep.subr.mxu0 0.0
        %584 = vmatpush1.msra.mxu0 0.0
        %585 = vmatprep.subr.mxu0 0.0
        %586 = vmatpush1.msra.mxu0 0.0
        %587 = vmatprep.subr.mxu0 0.0
        %588 = vmatpush1.msra.mxu0 0.0
        %589 = vmatprep.subr.mxu0 0.0
        %590 = vmatpush1.msra.mxu0 0.0
        %591 = vmatprep.subr.mxu0 0.0
        %592 = vmatpush1.msra.mxu0 0.0
        %593 = vmatprep.subr.mxu0 0.0
        %594 = vmatpush1.msra.mxu0 0.0
        %595 = vmatprep.subr.mxu0 0.0
        %596 = vmatpush1.msra.mxu0 0.0
        %597 = vmatprep.subr.mxu0 0.0
        %598 = vmatpush1.msra.mxu0 0.0
        %599 = vmatprep.subr.mxu0 0.0
        %600 = vmatpush1.msra.mxu0 0.0
        %601 = vmatprep.mubr.f32.mxu0 0.0
        %602 = vmatmul.mubr.f32.gmra.mrb[0].mxu0 %v526
        %v603 = vpop.f32.mrb[0].mxu0
        %v604 = vadd.f32 %v507, %v603
        %v605 = vpop.f32.mrb[0].mxu0
        %606 = vmatprep.mubr.f32.mxu0 0.0
        %607 = vmatmul.mubr.f32.gmra.mrb[0].mxu0 %v529
        %v608 = vpop.f32.mrb[0].mxu0
        %v609 = vadd.f32 %v512, %v608
        %v610 = vpop.f32.mrb[0].mxu0
        %611 = vmatprep.mubr.f32.mxu0 0.0
        %612 = vmatmul.mubr.f32.gmra.mrb[0].mxu0 %v532
        %v613 = vpop.f32.mrb[0].mxu0
        %v614 = vadd.f32 %v517, %v613
        %v615 = vpop.f32.mrb[0].mxu0
        %616 = vmatprep.mubr.f32.mxu0 0.0
        %617 = vmatmul.mubr.f32.gmra.mrb[0].mxu0 %v535
        %v618 = vpop.f32.mrb[0].mxu0
        %v619 = vadd.f32 %v522, %v618
        %v620 = vpop.f32.mrb[0].mxu0
        %621 = vdwg.mxu0
        %v622 = vtanh.pop %v604
        %v623 = vtanh.pop %v609
        %v624 = vtanh.pop %v614
        %v625 = vtanh.pop %v619
        %v626 = vmul.f32 %v622, 0.008333334
        %v627 = vmul.f32 %v623, 0.008333334
        %v628 = vmul.f32 %v624, 0.008333334
        %v629 = vmul.f32 %v625, 0.008333334
        %v630 = vmul.f32 %v622, 0.025
        %v631 = vmul.f32 %v623, 0.025
        %v632 = vmul.f32 %v624, 0.025
        %v633 = vmul.f32 %v625, 0.025
        %v634 = vadd.f32 %v381, %v630
        %v635 = vadd.f32 %v386, %v631
        %v636 = vadd.f32 %v391, %v632
        %v637 = vadd.f32 %v396, %v633
        %638 = vmatprep.subr.mxu0 0.0
        %639 = vmatpush1.msra.mxu0 %v634
        %640 = vmatprep.subr.mxu0 0.0
        %641 = vmatpush1.msra.mxu0 %v635
        %642 = vmatprep.subr.mxu0 0.0
        %643 = vmatpush1.msra.mxu0 %v636
        %644 = vmatprep.subr.mxu0 0.0
        %645 = vmatpush1.msra.mxu0 %v637
        %646 = vmatprep.subr.mxu0 0.0
        %647 = vmatpush1.msra.mxu0 0.0
        %648 = vmatprep.subr.mxu0 0.0
        %649 = vmatpush1.msra.mxu0 0.0
        %650 = vmatprep.subr.mxu0 0.0
        %651 = vmatpush1.msra.mxu0 0.0
        %652 = vmatprep.subr.mxu0 0.0
        %653 = vmatpush1.msra.mxu0 0.0
        %654 = vmatprep.subr.mxu0 0.0
        %655 = vmatpush1.msra.mxu0 0.0
        %656 = vmatprep.subr.mxu0 0.0
        %657 = vmatpush1.msra.mxu0 0.0
        %658 = vmatprep.subr.mxu0 0.0
        %659 = vmatpush1.msra.mxu0 0.0
        %660 = vmatprep.subr.mxu0 0.0
        %661 = vmatpush1.msra.mxu0 0.0
        %662 = vmatprep.subr.mxu0 0.0
        %663 = vmatpush1.msra.mxu0 0.0
        %664 = vmatprep.subr.mxu0 0.0
        %665 = vmatpush1.msra.mxu0 0.0
        %666 = vmatprep.subr.mxu0 0.0
        %667 = vmatpush1.msra.mxu0 0.0
        %668 = vmatprep.subr.mxu0 0.0
        %669 = vmatpush1.msra.mxu0 0.0
        %670 = vmatprep.subr.mxu0 0.0
        %671 = vmatpush1.msra.mxu0 0.0
        %672 = vmatprep.subr.mxu0 0.0
        %673 = vmatpush1.msra.mxu0 0.0
        %674 = vmatprep.subr.mxu0 0.0
        %675 = vmatpush1.msra.mxu0 0.0
        %676 = vmatprep.subr.mxu0 0.0
        %677 = vmatpush1.msra.mxu0 0.0
        %678 = vmatprep.subr.mxu0 0.0
        %679 = vmatpush1.msra.mxu0 0.0
        %680 = vmatprep.subr.mxu0 0.0
        %681 = vmatpush1.msra.mxu0 0.0
        %682 = vmatprep.subr.mxu0 0.0
        %683 = vmatpush1.msra.mxu0 0.0
        %684 = vmatprep.subr.mxu0 0.0
        %685 = vmatpush1.msra.mxu0 0.0
        %686 = vmatprep.subr.mxu0 0.0
        %687 = vmatpush1.msra.mxu0 0.0
        %688 = vmatprep.subr.mxu0 0.0
        %689 = vmatpush1.msra.mxu0 0.0
        %690 = vmatprep.subr.mxu0 0.0
        %691 = vmatpush1.msra.mxu0 0.0
        %692 = vmatprep.subr.mxu0 0.0
        %693 = vmatpush1.msra.mxu0 0.0
        %694 = vmatprep.subr.mxu0 0.0
        %695 = vmatpush1.msra.mxu0 0.0
        %696 = vmatprep.subr.mxu0 0.0
        %697 = vmatpush1.msra.mxu0 0.0
        %698 = vmatprep.subr.mxu0 0.0
        %699 = vmatpush1.msra.mxu0 0.0
        %700 = vmatprep.subr.mxu0 0.0
        %701 = vmatpush1.msra.mxu0 0.0
        %702 = vmatprep.mubr.f32.mxu0 0.0
        %703 = vmatmul.mubr.f32.gmra.mrb[0].mxu0 %v526
        %v704 = vpop.f32.mrb[0].mxu0
        %v705 = vadd.f32 %v507, %v704
        %v706 = vpop.f32.mrb[0].mxu0
        %707 = vmatprep.mubr.f32.mxu0 0.0
        %708 = vmatmul.mubr.f32.gmra.mrb[0].mxu0 %v529
        %v709 = vpop.f32.mrb[0].mxu0
        %v710 = vadd.f32 %v512, %v709
        %v711 = vpop.f32.mrb[0].mxu0
        %712 = vmatprep.mubr.f32.mxu0 0.0
        %713 = vmatmul.mubr.f32.gmra.mrb[0].mxu0 %v532
        %v714 = vpop.f32.mrb[0].mxu0
        %v715 = vadd.f32 %v517, %v714
        %v716 = vpop.f32.mrb[0].mxu0
        %717 = vmatprep.mubr.f32.mxu0 0.0
        %718 = vmatmul.mubr.f32.gmra.mrb[0].mxu0 %v535
        %v719 = vpop.f32.mrb[0].mxu0
        %v720 = vadd.f32 %v522, %v719
        %v721 = vpop.f32.mrb[0].mxu0
        %722 = vdwg.mxu0
        %v723 = vtanh.pop %v705
        %v724 = vtanh.pop %v710
        %v725 = vtanh.pop %v715
        %v726 = vtanh.pop %v720
        %v727 = vmul.f32 %v723, 0.016666668
        %v728 = vmul.f32 %v724, 0.016666668
        %v729 = vmul.f32 %v725, 0.016666668
        %v730 = vmul.f32 %v726, 0.016666668
        %v731 = vadd.f32 %v626, %v727
        %v732 = vadd.f32 %v627, %v728
        %v733 = vadd.f32 %v628, %v729
        %v734 = vadd.f32 %v629, %v730
        %v735 = vmul.f32 %v723, 0.025
        %v736 = vmul.f32 %v724, 0.025
        %v737 = vmul.f32 %v725, 0.025
        %v738 = vmul.f32 %v726, 0.025
        %v739 = vadd.f32 %v381, %v735
        %v740 = vadd.f32 %v386, %v736
        %v741 = vadd.f32 %v391, %v737
        %v742 = vadd.f32 %v396, %v738
        %743 = vmatprep.subr.mxu0 0.0
        %744 = vmatpush1.msra.mxu0 %v739
        %745 = vmatprep.subr.mxu0 0.0
        %746 = vmatpush1.msra.mxu0 %v740
        %747 = vmatprep.subr.mxu0 0.0
        %748 = vmatpush1.msra.mxu0 %v741
        %749 = vmatprep.subr.mxu0 0.0
        %750 = vmatpush1.msra.mxu0 %v742
        %751 = vmatprep.subr.mxu0 0.0
        %752 = vmatpush1.msra.mxu0 0.0
        %753 = vmatprep.subr.mxu0 0.0
        %754 = vmatpush1.msra.mxu0 0.0
        %755 = vmatprep.subr.mxu0 0.0
        %756 = vmatpush1.msra.mxu0 0.0
        %757 = vmatprep.subr.mxu0 0.0
        %758 = vmatpush1.msra.mxu0 0.0
        %759 = vmatprep.subr.mxu0 0.0
        %760 = vmatpush1.msra.mxu0 0.0
        %761 = vmatprep.subr.mxu0 0.0
        %762 = vmatpush1.msra.mxu0 0.0
        %763 = vmatprep.subr.mxu0 0.0
        %764 = vmatpush1.msra.mxu0 0.0
        %765 = vmatprep.subr.mxu0 0.0
        %766 = vmatpush1.msra.mxu0 0.0
        %767 = vmatprep.subr.mxu0 0.0
        %768 = vmatpush1.msra.mxu0 0.0
        %769 = vmatprep.subr.mxu0 0.0
        %770 = vmatpush1.msra.mxu0 0.0
        %771 = vmatprep.subr.mxu0 0.0
        %772 = vmatpush1.msra.mxu0 0.0
        %773 = vmatprep.subr.mxu0 0.0
        %774 = vmatpush1.msra.mxu0 0.0
        %775 = vmatprep.subr.mxu0 0.0
        %776 = vmatpush1.msra.mxu0 0.0
        %777 = vmatprep.subr.mxu0 0.0
        %778 = vmatpush1.msra.mxu0 0.0
        %779 = vmatprep.subr.mxu0 0.0
        %780 = vmatpush1.msra.mxu0 0.0
        %781 = vmatprep.subr.mxu0 0.0
        %782 = vmatpush1.msra.mxu0 0.0
        %783 = vmatprep.subr.mxu0 0.0
        %784 = vmatpush1.msra.mxu0 0.0
        %785 = vmatprep.subr.mxu0 0.0
        %786 = vmatpush1.msra.mxu0 0.0
        %787 = vmatprep.subr.mxu0 0.0
        %788 = vmatpush1.msra.mxu0 0.0
        %789 = vmatprep.subr.mxu0 0.0
        %790 = vmatpush1.msra.mxu0 0.0
        %791 = vmatprep.subr.mxu0 0.0
        %792 = vmatpush1.msra.mxu0 0.0
        %793 = vmatprep.subr.mxu0 0.0
        %794 = vmatpush1.msra.mxu0 0.0
        %795 = vmatprep.subr.mxu0 0.0
        %796 = vmatpush1.msra.mxu0 0.0
        %797 = vmatprep.subr.mxu0 0.0
        %798 = vmatpush1.msra.mxu0 0.0
        %799 = vmatprep.subr.mxu0 0.0
        %800 = vmatpush1.msra.mxu0 0.0
        %801 = vmatprep.subr.mxu0 0.0
        %802 = vmatpush1.msra.mxu0 0.0
        %803 = vmatprep.subr.mxu0 0.0
        %804 = vmatpush1.msra.mxu0 0.0
        %805 = vmatprep.subr.mxu0 0.0
        %806 = vmatpush1.msra.mxu0 0.0
        %807 = vmatprep.mubr.f32.mxu0 0.0
        %808 = vmatmul.mubr.f32.gmra.mrb[0].mxu0 %v526
        %v809 = vpop.f32.mrb[0].mxu0
        %v810 = vadd.f32 %v507, %v809
        %v811 = vpop.f32.mrb[0].mxu0
        %812 = vmatprep.mubr.f32.mxu0 0.0
        %813 = vmatmul.mubr.f32.gmra.mrb[0].mxu0 %v529
        %v814 = vpop.f32.mrb[0].mxu0
        %v815 = vadd.f32 %v512, %v814
        %v816 = vpop.f32.mrb[0].mxu0
        %817 = vmatprep.mubr.f32.mxu0 0.0
        %818 = vmatmul.mubr.f32.gmra.mrb[0].mxu0 %v532
        %v819 = vpop.f32.mrb[0].mxu0
        %v820 = vadd.f32 %v517, %v819
        %v821 = vpop.f32.mrb[0].mxu0
        %822 = vmatprep.mubr.f32.mxu0 0.0
        %823 = vmatmul.mubr.f32.gmra.mrb[0].mxu0 %v535
        %v824 = vpop.f32.mrb[0].mxu0
        %v825 = vadd.f32 %v522, %v824
        %v826 = vpop.f32.mrb[0].mxu0
        %827 = vdwg.mxu0
        %v828 = vtanh.pop %v810
        %v829 = vtanh.pop %v815
        %v830 = vtanh.pop %v820
        %v831 = vtanh.pop %v825
        %v832 = vmul.f32 %v828, 0.016666668
        %v833 = vmul.f32 %v829, 0.016666668
        %v834 = vmul.f32 %v830, 0.016666668
        %v835 = vmul.f32 %v831, 0.016666668
        %v836 = vadd.f32 %v731, %v832
        %v837 = vadd.f32 %v732, %v833
        %v838 = vadd.f32 %v733, %v834
        %v839 = vadd.f32 %v734, %v835
        %v840 = vmul.f32 %v828, 0.05
        %v841 = vmul.f32 %v829, 0.05
        %v842 = vmul.f32 %v830, 0.05
        %v843 = vmul.f32 %v831, 0.05
        %v844 = vadd.f32 %v381, %v840
        %v845 = vadd.f32 %v386, %v841
        %v846 = vadd.f32 %v391, %v842
        %v847 = vadd.f32 %v396, %v843
        %848 = vmatprep.subr.mxu0 0.0
        %849 = vmatpush1.msra.mxu0 %v844
        %850 = vmatprep.subr.mxu0 0.0
        %851 = vmatpush1.msra.mxu0 %v845
        %852 = vmatprep.subr.mxu0 0.0
        %853 = vmatpush1.msra.mxu0 %v846
        %854 = vmatprep.subr.mxu0 0.0
        %855 = vmatpush1.msra.mxu0 %v847
        %856 = vmatprep.subr.mxu0 0.0
        %857 = vmatpush1.msra.mxu0 0.0
        %858 = vmatprep.subr.mxu0 0.0
        %859 = vmatpush1.msra.mxu0 0.0
        %860 = vmatprep.subr.mxu0 0.0
        %861 = vmatpush1.msra.mxu0 0.0
        %862 = vmatprep.subr.mxu0 0.0
        %863 = vmatpush1.msra.mxu0 0.0
        %864 = vmatprep.subr.mxu0 0.0
        %865 = vmatpush1.msra.mxu0 0.0
        %866 = vmatprep.subr.mxu0 0.0
        %867 = vmatpush1.msra.mxu0 0.0
        %868 = vmatprep.subr.mxu0 0.0
        %869 = vmatpush1.msra.mxu0 0.0
        %870 = vmatprep.subr.mxu0 0.0
        %871 = vmatpush1.msra.mxu0 0.0
        %872 = vmatprep.subr.mxu0 0.0
        %873 = vmatpush1.msra.mxu0 0.0
        %874 = vmatprep.subr.mxu0 0.0
        %875 = vmatpush1.msra.mxu0 0.0
        %876 = vmatprep.subr.mxu0 0.0
        %877 = vmatpush1.msra.mxu0 0.0
        %878 = vmatprep.subr.mxu0 0.0
        %879 = vmatpush1.msra.mxu0 0.0
        %880 = vmatprep.subr.mxu0 0.0
        %881 = vmatpush1.msra.mxu0 0.0
        %882 = vmatprep.subr.mxu0 0.0
        %883 = vmatpush1.msra.mxu0 0.0
        %884 = vmatprep.subr.mxu0 0.0
        %885 = vmatpush1.msra.mxu0 0.0
        %886 = vmatprep.subr.mxu0 0.0
        %887 = vmatpush1.msra.mxu0 0.0
        %888 = vmatprep.subr.mxu0 0.0
        %889 = vmatpush1.msra.mxu0 0.0
        %890 = vmatprep.subr.mxu0 0.0
        %891 = vmatpush1.msra.mxu0 0.0
        %892 = vmatprep.subr.mxu0 0.0
        %893 = vmatpush1.msra.mxu0 0.0
        %894 = vmatprep.subr.mxu0 0.0
        %895 = vmatpush1.msra.mxu0 0.0
        %896 = vmatprep.subr.mxu0 0.0
        %897 = vmatpush1.msra.mxu0 0.0
        %898 = vmatprep.subr.mxu0 0.0
        %899 = vmatpush1.msra.mxu0 0.0
        %900 = vmatprep.subr.mxu0 0.0
        %901 = vmatpush1.msra.mxu0 0.0
        %902 = vmatprep.subr.mxu0 0.0
        %903 = vmatpush1.msra.mxu0 0.0
        %904 = vmatprep.subr.mxu0 0.0
        %905 = vmatpush1.msra.mxu0 0.0
        %906 = vmatprep.subr.mxu0 0.0
        %907 = vmatpush1.msra.mxu0 0.0
        %908 = vmatprep.subr.mxu0 0.0
        %909 = vmatpush1.msra.mxu0 0.0
        %910 = vmatprep.subr.mxu0 0.0
        %911 = vmatpush1.msra.mxu0 0.0
        %912 = vmatprep.mubr.f32.mxu0 0.0
        %913 = vmatmul.mubr.f32.gmra.mrb[0].mxu0 %v526
        %v914 = vpop.f32.mrb[0].mxu0
        %v915 = vadd.f32 %v507, %v914
        %v916 = vpop.f32.mrb[0].mxu0
        %917 = vmatprep.mubr.f32.mxu0 0.0
        %918 = vmatmul.mubr.f32.gmra.mrb[0].mxu0 %v529
        %v919 = vpop.f32.mrb[0].mxu0
        %v920 = vadd.f32 %v512, %v919
        %v921 = vpop.f32.mrb[0].mxu0
        %922 = vmatprep.mubr.f32.mxu0 0.0
        %923 = vmatmul.mubr.f32.gmra.mrb[0].mxu0 %v532
        %v924 = vpop.f32.mrb[0].mxu0
        %v925 = vadd.f32 %v517, %v924
        %v926 = vpop.f32.mrb[0].mxu0
        %927 = vmatprep.mubr.f32.mxu0 0.0
        %928 = vmatmul.mubr.f32.gmra.mrb[0].mxu0 %v535
        %v929 = vpop.f32.mrb[0].mxu0
        %v930 = vadd.f32 %v522, %v929
        %v931 = vpop.f32.mrb[0].mxu0
        %932 = vdwg.mxu0
        %v933 = vtanh.pop %v915
        %v934 = vtanh.pop %v920
        %v935 = vtanh.pop %v925
        %v936 = vtanh.pop %v930
        %v937 = vadd.f32 %v381, %v836
        %v938 = vadd.f32 %v386, %v837
        %v939 = vadd.f32 %v391, %v838
        %v940 = vadd.f32 %v396, %v839
        %v941 = vmul.f32 %v933, 0.008333334
        %v942 = vmul.f32 %v934, 0.008333334
        %v943 = vmul.f32 %v935, 0.008333334
        %v944 = vmul.f32 %v936, 0.008333334
        %v945 = vadd.f32 %v937, %v941
        %v946 = vadd.f32 %v938, %v942
        %v947 = vadd.f32 %v939, %v943
        %v948 = vadd.f32 %v940, %v944
        %s949 = scalar_lea.vmem %s283, 64 [#allocation4]
        %950 = vst [vmem:[%s949] sm:$0xff] %v945
        %951 = vst [vmem:[%s949 + $0x10] sm:$0xff] %v946
        %952 = vst [vmem:[%s949 + $0x20] sm:$0xff] %v947
        %953 = vst [vmem:[%s949 + $0x30] sm:$0xff] %v948
        %954 = vmatprep.subr.mxu0 0.0
        %955 = vmatpush1.msra.mxu0 %v474
        %956 = vmatprep.subr.mxu0 0.0
        %957 = vmatpush1.msra.mxu0 %v479
        %958 = vmatprep.subr.mxu0 0.0
        %959 = vmatpush1.msra.mxu0 %v484
        %960 = vmatprep.subr.mxu0 0.0
        %961 = vmatpush1.msra.mxu0 %v489
        %962 = vmatprep.subr.mxu0 0.0
        %963 = vmatpush1.msra.mxu0 0.0
        %964 = vmatprep.subr.mxu0 0.0
        %965 = vmatpush1.msra.mxu0 0.0
        %966 = vmatprep.subr.mxu0 0.0
        %967 = vmatpush1.msra.mxu0 0.0
        %968 = vmatprep.subr.mxu0 0.0
        %969 = vmatpush1.msra.mxu0 0.0
        %970 = vmatprep.subr.mxu0 0.0
        %971 = vmatpush1.msra.mxu0 0.0
        %972 = vmatprep.subr.mxu0 0.0
        %973 = vmatpush1.msra.mxu0 0.0
        %974 = vmatprep.subr.mxu0 0.0
        %975 = vmatpush1.msra.mxu0 0.0
        %976 = vmatprep.subr.mxu0 0.0
        %977 = vmatpush1.msra.mxu0 0.0
        %978 = vmatprep.subr.mxu0 0.0
        %979 = vmatpush1.msra.mxu0 0.0
        %980 = vmatprep.subr.mxu0 0.0
        %981 = vmatpush1.msra.mxu0 0.0
        %982 = vmatprep.subr.mxu0 0.0
        %983 = vmatpush1.msra.mxu0 0.0
        %984 = vmatprep.subr.mxu0 0.0
        %985 = vmatpush1.msra.mxu0 0.0
        %986 = vmatprep.subr.mxu0 0.0
        %987 = vmatpush1.msra.mxu0 0.0
        %988 = vmatprep.subr.mxu0 0.0
        %989 = vmatpush1.msra.mxu0 0.0
        %990 = vmatprep.subr.mxu0 0.0
        %991 = vmatpush1.msra.mxu0 0.0
        %992 = vmatprep.subr.mxu0 0.0
        %993 = vmatpush1.msra.mxu0 0.0
        %994 = vmatprep.subr.mxu0 0.0
        %995 = vmatpush1.msra.mxu0 0.0
        %996 = vmatprep.subr.mxu0 0.0
        %997 = vmatpush1.msra.mxu0 0.0
        %998 = vmatprep.subr.mxu0 0.0
        %999 = vmatpush1.msra.mxu0 0.0
        %1000 = vmatprep.subr.mxu0 0.0
        %1001 = vmatpush1.msra.mxu0 0.0
        %1002 = vmatprep.subr.mxu0 0.0
        %1003 = vmatpush1.msra.mxu0 0.0
        %1004 = vmatprep.subr.mxu0 0.0
        %1005 = vmatpush1.msra.mxu0 0.0
        %1006 = vmatprep.subr.mxu0 0.0
        %1007 = vmatpush1.msra.mxu0 0.0
        %1008 = vmatprep.subr.mxu0 0.0
        %1009 = vmatpush1.msra.mxu0 0.0
        %1010 = vmatprep.subr.mxu0 0.0
        %1011 = vmatpush1.msra.mxu0 0.0
        %1012 = vmatprep.subr.mxu0 0.0
        %1013 = vmatpush1.msra.mxu0 0.0
        %1014 = vmatprep.subr.mxu0 0.0
        %1015 = vmatpush1.msra.mxu0 0.0
        %1016 = vmatprep.subr.mxu0 0.0
        %1017 = vmatpush1.msra.mxu0 0.0
        %1018 = vmatprep.mubr.f32.mxu0 0.0
        %1019 = vmatmul.mubr.f32.gmra.mrb[0].mxu0 %v526
        %v1020 = vpop.f32.mrb[0].mxu0
        %v1021 = vadd.f32 %v507, %v1020
        %v1022 = vpop.f32.mrb[0].mxu0
        %1023 = vmatprep.mubr.f32.mxu0 0.0
        %1024 = vmatmul.mubr.f32.gmra.mrb[0].mxu0 %v529
        %v1025 = vpop.f32.mrb[0].mxu0
        %v1026 = vadd.f32 %v512, %v1025
        %v1027 = vpop.f32.mrb[0].mxu0
        %1028 = vmatprep.mubr.f32.mxu0 0.0
        %1029 = vmatmul.mubr.f32.gmra.mrb[0].mxu0 %v532
        %v1030 = vpop.f32.mrb[0].mxu0
        %v1031 = vadd.f32 %v517, %v1030
        %v1032 = vpop.f32.mrb[0].mxu0
        %1033 = vmatprep.mubr.f32.mxu0 0.0
        %1034 = vmatmul.mubr.f32.gmra.mrb[0].mxu0 %v535
        %v1035 = vpop.f32.mrb[0].mxu0
        %v1036 = vadd.f32 %v522, %v1035
        %v1037 = vpop.f32.mrb[0].mxu0
        %1038 = vdwg.mxu0
        %v1039 = vtanh.pop %v1021
        %v1040 = vtanh.pop %v1026
        %v1041 = vtanh.pop %v1031
        %v1042 = vtanh.pop %v1036
        %v1043 = vmul.f32 %v1039, 0.008333334
        %v1044 = vmul.f32 %v1040, 0.008333334
        %v1045 = vmul.f32 %v1041, 0.008333334
        %v1046 = vmul.f32 %v1042, 0.008333334
        %v1047 = vmul.f32 %v1039, 0.025
        %v1048 = vmul.f32 %v1040, 0.025
        %v1049 = vmul.f32 %v1041, 0.025
        %v1050 = vmul.f32 %v1042, 0.025
        %v1051 = vadd.f32 %v474, %v1047
        %v1052 = vadd.f32 %v479, %v1048
        %v1053 = vadd.f32 %v484, %v1049
        %v1054 = vadd.f32 %v489, %v1050
        %1055 = vmatprep.subr.mxu0 0.0
        %1056 = vmatpush1.msra.mxu0 %v1051
        %1057 = vmatprep.subr.mxu0 0.0
        %1058 = vmatpush1.msra.mxu0 %v1052
        %1059 = vmatprep.subr.mxu0 0.0
        %1060 = vmatpush1.msra.mxu0 %v1053
        %1061 = vmatprep.subr.mxu0 0.0
        %1062 = vmatpush1.msra.mxu0 %v1054
        %1063 = vmatprep.subr.mxu0 0.0
        %1064 = vmatpush1.msra.mxu0 0.0
        %1065 = vmatprep.subr.mxu0 0.0
        %1066 = vmatpush1.msra.mxu0 0.0
        %1067 = vmatprep.subr.mxu0 0.0
        %1068 = vmatpush1.msra.mxu0 0.0
        %1069 = vmatprep.subr.mxu0 0.0
        %1070 = vmatpush1.msra.mxu0 0.0
        %1071 = vmatprep.subr.mxu0 0.0
        %1072 = vmatpush1.msra.mxu0 0.0
        %1073 = vmatprep.subr.mxu0 0.0
        %1074 = vmatpush1.msra.mxu0 0.0
        %1075 = vmatprep.subr.mxu0 0.0
        %1076 = vmatpush1.msra.mxu0 0.0
        %1077 = vmatprep.subr.mxu0 0.0
        %1078 = vmatpush1.msra.mxu0 0.0
        %1079 = vmatprep.subr.mxu0 0.0
        %1080 = vmatpush1.msra.mxu0 0.0
        %1081 = vmatprep.subr.mxu0 0.0
        %1082 = vmatpush1.msra.mxu0 0.0
        %1083 = vmatprep.subr.mxu0 0.0
        %1084 = vmatpush1.msra.mxu0 0.0
        %1085 = vmatprep.subr.mxu0 0.0
        %1086 = vmatpush1.msra.mxu0 0.0
        %1087 = vmatprep.subr.mxu0 0.0
        %1088 = vmatpush1.msra.mxu0 0.0
        %1089 = vmatprep.subr.mxu0 0.0
        %1090 = vmatpush1.msra.mxu0 0.0
        %1091 = vmatprep.subr.mxu0 0.0
        %1092 = vmatpush1.msra.mxu0 0.0
        %1093 = vmatprep.subr.mxu0 0.0
        %1094 = vmatpush1.msra.mxu0 0.0
        %1095 = vmatprep.subr.mxu0 0.0
        %1096 = vmatpush1.msra.mxu0 0.0
        %1097 = vmatprep.subr.mxu0 0.0
        %1098 = vmatpush1.msra.mxu0 0.0
        %1099 = vmatprep.subr.mxu0 0.0
        %1100 = vmatpush1.msra.mxu0 0.0
        %1101 = vmatprep.subr.mxu0 0.0
        %1102 = vmatpush1.msra.mxu0 0.0
        %1103 = vmatprep.subr.mxu0 0.0
        %1104 = vmatpush1.msra.mxu0 0.0
        %1105 = vmatprep.subr.mxu0 0.0
        %1106 = vmatpush1.msra.mxu0 0.0
        %1107 = vmatprep.subr.mxu0 0.0
        %1108 = vmatpush1.msra.mxu0 0.0
        %1109 = vmatprep.subr.mxu0 0.0
        %1110 = vmatpush1.msra.mxu0 0.0
        %1111 = vmatprep.subr.mxu0 0.0
        %1112 = vmatpush1.msra.mxu0 0.0
        %1113 = vmatprep.subr.mxu0 0.0
        %1114 = vmatpush1.msra.mxu0 0.0
        %1115 = vmatprep.subr.mxu0 0.0
        %1116 = vmatpush1.msra.mxu0 0.0
        %1117 = vmatprep.subr.mxu0 0.0
        %1118 = vmatpush1.msra.mxu0 0.0
        %1119 = vmatprep.mubr.f32.mxu0 0.0
        %1120 = vmatmul.mubr.f32.gmra.mrb[0].mxu0 %v526
        %v1121 = vpop.f32.mrb[0].mxu0
        %v1122 = vadd.f32 %v507, %v1121
        %v1123 = vpop.f32.mrb[0].mxu0
        %1124 = vmatprep.mubr.f32.mxu0 0.0
        %1125 = vmatmul.mubr.f32.gmra.mrb[0].mxu0 %v529
        %v1126 = vpop.f32.mrb[0].mxu0
        %v1127 = vadd.f32 %v512, %v1126
        %v1128 = vpop.f32.mrb[0].mxu0
        %1129 = vmatprep.mubr.f32.mxu0 0.0
        %1130 = vmatmul.mubr.f32.gmra.mrb[0].mxu0 %v532
        %v1131 = vpop.f32.mrb[0].mxu0
        %v1132 = vadd.f32 %v517, %v1131
        %v1133 = vpop.f32.mrb[0].mxu0
        %1134 = vmatprep.mubr.f32.mxu0 0.0
        %1135 = vmatmul.mubr.f32.gmra.mrb[0].mxu0 %v535
        %v1136 = vpop.f32.mrb[0].mxu0
        %v1137 = vadd.f32 %v522, %v1136
        %v1138 = vpop.f32.mrb[0].mxu0
        %1139 = vdwg.mxu0
        %v1140 = vtanh.pop %v1122
        %v1141 = vtanh.pop %v1127
        %v1142 = vtanh.pop %v1132
        %v1143 = vtanh.pop %v1137
        %v1144 = vmul.f32 %v1140, 0.016666668
        %v1145 = vmul.f32 %v1141, 0.016666668
        %v1146 = vmul.f32 %v1142, 0.016666668
        %v1147 = vmul.f32 %v1143, 0.016666668
        %v1148 = vadd.f32 %v1043, %v1144
        %v1149 = vadd.f32 %v1044, %v1145
        %v1150 = vadd.f32 %v1045, %v1146
        %v1151 = vadd.f32 %v1046, %v1147
        %v1152 = vmul.f32 %v1140, 0.025
        %v1153 = vmul.f32 %v1141, 0.025
        %v1154 = vmul.f32 %v1142, 0.025
        %v1155 = vmul.f32 %v1143, 0.025
        %v1156 = vadd.f32 %v474, %v1152
        %v1157 = vadd.f32 %v479, %v1153
        %v1158 = vadd.f32 %v484, %v1154
        %v1159 = vadd.f32 %v489, %v1155
        %1160 = vmatprep.subr.mxu0 0.0
        %1161 = vmatpush1.msra.mxu0 %v1156
        %1162 = vmatprep.subr.mxu0 0.0
        %1163 = vmatpush1.msra.mxu0 %v1157
        %1164 = vmatprep.subr.mxu0 0.0
        %1165 = vmatpush1.msra.mxu0 %v1158
        %1166 = vmatprep.subr.mxu0 0.0
        %1167 = vmatpush1.msra.mxu0 %v1159
        %1168 = vmatprep.subr.mxu0 0.0
        %1169 = vmatpush1.msra.mxu0 0.0
        %1170 = vmatprep.subr.mxu0 0.0
        %1171 = vmatpush1.msra.mxu0 0.0
        %1172 = vmatprep.subr.mxu0 0.0
        %1173 = vmatpush1.msra.mxu0 0.0
        %1174 = vmatprep.subr.mxu0 0.0
        %1175 = vmatpush1.msra.mxu0 0.0
        %1176 = vmatprep.subr.mxu0 0.0
        %1177 = vmatpush1.msra.mxu0 0.0
        %1178 = vmatprep.subr.mxu0 0.0
        %1179 = vmatpush1.msra.mxu0 0.0
        %1180 = vmatprep.subr.mxu0 0.0
        %1181 = vmatpush1.msra.mxu0 0.0
        %1182 = vmatprep.subr.mxu0 0.0
        %1183 = vmatpush1.msra.mxu0 0.0
        %1184 = vmatprep.subr.mxu0 0.0
        %1185 = vmatpush1.msra.mxu0 0.0
        %1186 = vmatprep.subr.mxu0 0.0
        %1187 = vmatpush1.msra.mxu0 0.0
        %1188 = vmatprep.subr.mxu0 0.0
        %1189 = vmatpush1.msra.mxu0 0.0
        %1190 = vmatprep.subr.mxu0 0.0
        %1191 = vmatpush1.msra.mxu0 0.0
        %1192 = vmatprep.subr.mxu0 0.0
        %1193 = vmatpush1.msra.mxu0 0.0
        %1194 = vmatprep.subr.mxu0 0.0
        %1195 = vmatpush1.msra.mxu0 0.0
        %1196 = vmatprep.subr.mxu0 0.0
        %1197 = vmatpush1.msra.mxu0 0.0
        %1198 = vmatprep.subr.mxu0 0.0
        %1199 = vmatpush1.msra.mxu0 0.0
        %1200 = vmatprep.subr.mxu0 0.0
        %1201 = vmatpush1.msra.mxu0 0.0
        %1202 = vmatprep.subr.mxu0 0.0
        %1203 = vmatpush1.msra.mxu0 0.0
        %1204 = vmatprep.subr.mxu0 0.0
        %1205 = vmatpush1.msra.mxu0 0.0
        %1206 = vmatprep.subr.mxu0 0.0
        %1207 = vmatpush1.msra.mxu0 0.0
        %1208 = vmatprep.subr.mxu0 0.0
        %1209 = vmatpush1.msra.mxu0 0.0
        %1210 = vmatprep.subr.mxu0 0.0
        %1211 = vmatpush1.msra.mxu0 0.0
        %1212 = vmatprep.subr.mxu0 0.0
        %1213 = vmatpush1.msra.mxu0 0.0
        %1214 = vmatprep.subr.mxu0 0.0
        %1215 = vmatpush1.msra.mxu0 0.0
        %1216 = vmatprep.subr.mxu0 0.0
        %1217 = vmatpush1.msra.mxu0 0.0
        %1218 = vmatprep.subr.mxu0 0.0
        %1219 = vmatpush1.msra.mxu0 0.0
        %1220 = vmatprep.subr.mxu0 0.0
        %1221 = vmatpush1.msra.mxu0 0.0
        %1222 = vmatprep.subr.mxu0 0.0
        %1223 = vmatpush1.msra.mxu0 0.0
        %1224 = vmatprep.mubr.f32.mxu0 0.0
        %1225 = vmatmul.mubr.f32.gmra.mrb[0].mxu0 %v526
        %v1226 = vpop.f32.mrb[0].mxu0
        %v1227 = vadd.f32 %v507, %v1226
        %v1228 = vpop.f32.mrb[0].mxu0
        %1229 = vmatprep.mubr.f32.mxu0 0.0
        %1230 = vmatmul.mubr.f32.gmra.mrb[0].mxu0 %v529
        %v1231 = vpop.f32.mrb[0].mxu0
        %v1232 = vadd.f32 %v512, %v1231
        %v1233 = vpop.f32.mrb[0].mxu0
        %1234 = vmatprep.mubr.f32.mxu0 0.0
        %1235 = vmatmul.mubr.f32.gmra.mrb[0].mxu0 %v532
        %v1236 = vpop.f32.mrb[0].mxu0
        %v1237 = vadd.f32 %v517, %v1236
        %v1238 = vpop.f32.mrb[0].mxu0
        %1239 = vmatprep.mubr.f32.mxu0 0.0
        %1240 = vmatmul.mubr.f32.gmra.mrb[0].mxu0 %v535
        %v1241 = vpop.f32.mrb[0].mxu0
        %v1242 = vadd.f32 %v522, %v1241
        %v1243 = vpop.f32.mrb[0].mxu0
        %1244 = vdwg.mxu0
        %v1245 = vtanh.pop %v1227
        %v1246 = vtanh.pop %v1232
        %v1247 = vtanh.pop %v1237
        %v1248 = vtanh.pop %v1242
        %v1249 = vmul.f32 %v1245, 0.016666668
        %v1250 = vmul.f32 %v1246, 0.016666668
        %v1251 = vmul.f32 %v1247, 0.016666668
        %v1252 = vmul.f32 %v1248, 0.016666668
        %v1253 = vadd.f32 %v1148, %v1249
        %v1254 = vadd.f32 %v1149, %v1250
        %v1255 = vadd.f32 %v1150, %v1251
        %v1256 = vadd.f32 %v1151, %v1252
        %v1257 = vmul.f32 %v1245, 0.05
        %v1258 = vmul.f32 %v1246, 0.05
        %v1259 = vmul.f32 %v1247, 0.05
        %v1260 = vmul.f32 %v1248, 0.05
        %v1261 = vadd.f32 %v474, %v1257
        %v1262 = vadd.f32 %v479, %v1258
        %v1263 = vadd.f32 %v484, %v1259
        %v1264 = vadd.f32 %v489, %v1260
        %1265 = vmatprep.subr.mxu0 0.0
        %1266 = vmatpush1.msra.mxu0 %v1261
        %1267 = vmatprep.subr.mxu0 0.0
        %1268 = vmatpush1.msra.mxu0 %v1262
        %1269 = vmatprep.subr.mxu0 0.0
        %1270 = vmatpush1.msra.mxu0 %v1263
        %1271 = vmatprep.subr.mxu0 0.0
        %1272 = vmatpush1.msra.mxu0 %v1264
        %1273 = vmatprep.subr.mxu0 0.0
        %1274 = vmatpush1.msra.mxu0 0.0
        %1275 = vmatprep.subr.mxu0 0.0
        %1276 = vmatpush1.msra.mxu0 0.0
        %1277 = vmatprep.subr.mxu0 0.0
        %1278 = vmatpush1.msra.mxu0 0.0
        %1279 = vmatprep.subr.mxu0 0.0
        %1280 = vmatpush1.msra.mxu0 0.0
        %1281 = vmatprep.subr.mxu0 0.0
        %1282 = vmatpush1.msra.mxu0 0.0
        %1283 = vmatprep.subr.mxu0 0.0
        %1284 = vmatpush1.msra.mxu0 0.0
        %1285 = vmatprep.subr.mxu0 0.0
        %1286 = vmatpush1.msra.mxu0 0.0
        %1287 = vmatprep.subr.mxu0 0.0
        %1288 = vmatpush1.msra.mxu0 0.0
        %1289 = vmatprep.subr.mxu0 0.0
        %1290 = vmatpush1.msra.mxu0 0.0
        %1291 = vmatprep.subr.mxu0 0.0
        %1292 = vmatpush1.msra.mxu0 0.0
        %1293 = vmatprep.subr.mxu0 0.0
        %1294 = vmatpush1.msra.mxu0 0.0
        %1295 = vmatprep.subr.mxu0 0.0
        %1296 = vmatpush1.msra.mxu0 0.0
        %1297 = vmatprep.subr.mxu0 0.0
        %1298 = vmatpush1.msra.mxu0 0.0
        %1299 = vmatprep.subr.mxu0 0.0
        %1300 = vmatpush1.msra.mxu0 0.0
        %1301 = vmatprep.subr.mxu0 0.0
        %1302 = vmatpush1.msra.mxu0 0.0
        %1303 = vmatprep.subr.mxu0 0.0
        %1304 = vmatpush1.msra.mxu0 0.0
        %1305 = vmatprep.subr.mxu0 0.0
        %1306 = vmatpush1.msra.mxu0 0.0
        %1307 = vmatprep.subr.mxu0 0.0
        %1308 = vmatpush1.msra.mxu0 0.0
        %1309 = vmatprep.subr.mxu0 0.0
        %1310 = vmatpush1.msra.mxu0 0.0
        %1311 = vmatprep.subr.mxu0 0.0
        %1312 = vmatpush1.msra.mxu0 0.0
        %1313 = vmatprep.subr.mxu0 0.0
        %1314 = vmatpush1.msra.mxu0 0.0
        %1315 = vmatprep.subr.mxu0 0.0
        %1316 = vmatpush1.msra.mxu0 0.0
        %1317 = vmatprep.subr.mxu0 0.0
        %1318 = vmatpush1.msra.mxu0 0.0
        %1319 = vmatprep.subr.mxu0 0.0
        %1320 = vmatpush1.msra.mxu0 0.0
        %1321 = vmatprep.subr.mxu0 0.0
        %1322 = vmatpush1.msra.mxu0 0.0
        %1323 = vmatprep.subr.mxu0 0.0
        %1324 = vmatpush1.msra.mxu0 0.0
        %1325 = vmatprep.subr.mxu0 0.0
        %1326 = vmatpush1.msra.mxu0 0.0
        %1327 = vmatprep.subr.mxu0 0.0
        %1328 = vmatpush1.msra.mxu0 0.0
        %1329 = vmatprep.mubr.f32.mxu0 0.0
        %1330 = vmatmul.mubr.f32.gmra.mrb[0].mxu0 %v526
        %v1331 = vpop.f32.mrb[0].mxu0
        %v1332 = vadd.f32 %v507, %v1331
        %v1333 = vpop.f32.mrb[0].mxu0
        %1334 = vmatprep.mubr.f32.mxu0 0.0
        %1335 = vmatmul.mubr.f32.gmra.mrb[0].mxu0 %v529
        %v1336 = vpop.f32.mrb[0].mxu0
        %v1337 = vadd.f32 %v512, %v1336
        %v1338 = vpop.f32.mrb[0].mxu0
        %1339 = vmatprep.mubr.f32.mxu0 0.0
        %1340 = vmatmul.mubr.f32.gmra.mrb[0].mxu0 %v532
        %v1341 = vpop.f32.mrb[0].mxu0
        %v1342 = vadd.f32 %v517, %v1341
        %v1343 = vpop.f32.mrb[0].mxu0
        %1344 = vmatprep.mubr.f32.mxu0 0.0
        %1345 = vmatmul.mubr.f32.gmra.mrb[0].mxu0 %v535
        %v1346 = vpop.f32.mrb[0].mxu0
        %v1347 = vadd.f32 %v522, %v1346
        %v1348 = vpop.f32.mrb[0].mxu0
        %1349 = vdwg.mxu0
        %v1350 = vtanh.pop %v1332
        %v1351 = vtanh.pop %v1337
        %v1352 = vtanh.pop %v1342
        %v1353 = vtanh.pop %v1347
        %v1354 = vadd.f32 %v474, %v1253
        %v1355 = vadd.f32 %v479, %v1254
        %v1356 = vadd.f32 %v484, %v1255
        %v1357 = vadd.f32 %v489, %v1256
        %v1358 = vmul.f32 %v1350, 0.008333334
        %v1359 = vmul.f32 %v1351, 0.008333334
        %v1360 = vmul.f32 %v1352, 0.008333334
        %v1361 = vmul.f32 %v1353, 0.008333334
        %v1362 = vadd.f32 %v1354, %v1358
        %v1363 = vadd.f32 %v1355, %v1359
        %v1364 = vadd.f32 %v1356, %v1360
        %v1365 = vadd.f32 %v1357, %v1361
        %1366 = vst [vmem:[%s949 + $0x8] sm:$0xff] %v1362
        %1367 = vst [vmem:[%s949 + $0x18] sm:$0xff] %v1363
        %1368 = vst [vmem:[%s949 + $0x28] sm:$0xff] %v1364
        %1369 = vst [vmem:[%s949 + $0x38] sm:$0xff] %v1365
        %s1370 = scalar_lea.vmem %s2, 32
        %v1371 = vld [vmem:[%s1370] sm:$0xff]
        %v1372 = vld [vmem:[%s1370 + $0x8] sm:$0xff]
        %v1373 = vld [vmem:[%s1370 + $0x10] sm:$0xff]
        %v1374 = vld [vmem:[%s1370 + $0x18] sm:$0xff]
        %s1375 = scalar_lea.vmem %s3, 32
        %v1376 = vld [vmem:[%s1375] sm:$0xff]
        %v1377 = vld [vmem:[%s1375 + $0x8] sm:$0xff]
        %v1378 = vld [vmem:[%s1375 + $0x10] sm:$0xff]
        %v1379 = vld [vmem:[%s1375 + $0x18] sm:$0xff]
        %1381 = vset.pattern.permute.xlu0 0
        %1382 = vperm.xlu0 %1381, %v1376
        %v1383 = vpop.permute.xlu0 %1382
        %1386 = vset.pattern.permute.xlu0 0
        %1387 = vperm.xlu0 %1386, %v1377
        %v1388 = vpop.permute.xlu0 %1387
        %1391 = vset.pattern.permute.xlu0 0
        %1392 = vperm.xlu0 %1391, %v1378
        %v1393 = vpop.permute.xlu0 %1392
        %1396 = vset.pattern.permute.xlu0 0
        %1397 = vperm.xlu0 %1396, %v1379
        %v1398 = vpop.permute.xlu0 %1397
        %v1401 = vsel %vm524, %v1371, 0
        %v1404 = vsel %vm524, %v1372, 0
        %v1407 = vsel %vm524, %v1373, 0
        %v1410 = vsel %vm524, %v1374, 0
        %1412 = vmatprep.subr.mxu0 0.0
        %1413 = vmatpush1.msra.mxu0 %v945
        %1414 = vmatprep.subr.mxu0 0.0
        %1415 = vmatpush1.msra.mxu0 %v946
        %1416 = vmatprep.subr.mxu0 0.0
        %1417 = vmatpush1.msra.mxu0 %v947
        %1418 = vmatprep.subr.mxu0 0.0
        %1419 = vmatpush1.msra.mxu0 %v948
        %1420 = vmatprep.subr.mxu0 0.0
        %1421 = vmatpush1.msra.mxu0 0.0
        %1422 = vmatprep.subr.mxu0 0.0
        %1423 = vmatpush1.msra.mxu0 0.0
        %1424 = vmatprep.subr.mxu0 0.0
        %1425 = vmatpush1.msra.mxu0 0.0
        %1426 = vmatprep.subr.mxu0 0.0
        %1427 = vmatpush1.msra.mxu0 0.0
        %1428 = vmatprep.subr.mxu0 0.0
        %1429 = vmatpush1.msra.mxu0 0.0
        %1430 = vmatprep.subr.mxu0 0.0
        %1431 = vmatpush1.msra.mxu0 0.0
        %1432 = vmatprep.subr.mxu0 0.0
        %1433 = vmatpush1.msra.mxu0 0.0
        %1434 = vmatprep.subr.mxu0 0.0
        %1435 = vmatpush1.msra.mxu0 0.0
        %1436 = vmatprep.subr.mxu0 0.0
        %1437 = vmatpush1.msra.mxu0 0.0
        %1438 = vmatprep.subr.mxu0 0.0
        %1439 = vmatpush1.msra.mxu0 0.0
        %1440 = vmatprep.subr.mxu0 0.0
        %1441 = vmatpush1.msra.mxu0 0.0
        %1442 = vmatprep.subr.mxu0 0.0
        %1443 = vmatpush1.msra.mxu0 0.0
        %1444 = vmatprep.subr.mxu0 0.0
        %1445 = vmatpush1.msra.mxu0 0.0
        %1446 = vmatprep.subr.mxu0 0.0
        %1447 = vmatpush1.msra.mxu0 0.0
        %1448 = vmatprep.subr.mxu0 0.0
        %1449 = vmatpush1.msra.mxu0 0.0
        %1450 = vmatprep.subr.mxu0 0.0
        %1451 = vmatpush1.msra.mxu0 0.0
        %1452 = vmatprep.subr.mxu0 0.0
        %1453 = vmatpush1.msra.mxu0 0.0
        %1454 = vmatprep.subr.mxu0 0.0
        %1455 = vmatpush1.msra.mxu0 0.0
        %1456 = vmatprep.subr.mxu0 0.0
        %1457 = vmatpush1.msra.mxu0 0.0
        %1458 = vmatprep.subr.mxu0 0.0
        %1459 = vmatpush1.msra.mxu0 0.0
        %1460 = vmatprep.subr.mxu0 0.0
        %1461 = vmatpush1.msra.mxu0 0.0
        %1462 = vmatprep.subr.mxu0 0.0
        %1463 = vmatpush1.msra.mxu0 0.0
        %1464 = vmatprep.subr.mxu0 0.0
        %1465 = vmatpush1.msra.mxu0 0.0
        %1466 = vmatprep.subr.mxu0 0.0
        %1467 = vmatpush1.msra.mxu0 0.0
        %1468 = vmatprep.subr.mxu0 0.0
        %1469 = vmatpush1.msra.mxu0 0.0
        %1470 = vmatprep.subr.mxu0 0.0
        %1471 = vmatpush1.msra.mxu0 0.0
        %1472 = vmatprep.subr.mxu0 0.0
        %1473 = vmatpush1.msra.mxu0 0.0
        %1474 = vmatprep.subr.mxu0 0.0
        %1475 = vmatpush1.msra.mxu0 0.0
        %1476 = vmatprep.mubr.f32.mxu0 0.0
        %1477 = vmatmul.mubr.f32.gmra.mrb[0].mxu0 %v1401
        %v1478 = vpop.f32.mrb[0].mxu0
        %v1479 = vadd.f32 %v1383, %v1478
        %v1480 = vpop.f32.mrb[0].mxu0
        %1481 = vmatprep.mubr.f32.mxu0 0.0
        %1482 = vmatmul.mubr.f32.gmra.mrb[0].mxu0 %v1404
        %v1483 = vpop.f32.mrb[0].mxu0
        %v1484 = vadd.f32 %v1388, %v1483
        %v1485 = vpop.f32.mrb[0].mxu0
        %1486 = vmatprep.mubr.f32.mxu0 0.0
        %1487 = vmatmul.mubr.f32.gmra.mrb[0].mxu0 %v1407
        %v1488 = vpop.f32.mrb[0].mxu0
        %v1489 = vadd.f32 %v1393, %v1488
        %v1490 = vpop.f32.mrb[0].mxu0
        %1491 = vmatprep.mubr.f32.mxu0 0.0
        %1492 = vmatmul.mubr.f32.gmra.mrb[0].mxu0 %v1410
        %v1493 = vpop.f32.mrb[0].mxu0
        %v1494 = vadd.f32 %v1398, %v1493
        %v1495 = vpop.f32.mrb[0].mxu0
        %1496 = vdwg.mxu0
        %v1497 = vtanh.pop %v1479
        %v1498 = vtanh.pop %v1484
        %v1499 = vtanh.pop %v1489
        %v1500 = vtanh.pop %v1494
        %v1501 = vmul.f32 %v1497, 0.008333334
        %v1502 = vmul.f32 %v1498, 0.008333334
        %v1503 = vmul.f32 %v1499, 0.008333334
        %v1504 = vmul.f32 %v1500, 0.008333334
        %v1505 = vmul.f32 %v1497, 0.025
        %v1506 = vmul.f32 %v1498, 0.025
        %v1507 = vmul.f32 %v1499, 0.025
        %v1508 = vmul.f32 %v1500, 0.025
        %v1509 = vadd.f32 %v945, %v1505
        %v1510 = vadd.f32 %v946, %v1506
        %v1511 = vadd.f32 %v947, %v1507
        %v1512 = vadd.f32 %v948, %v1508
        %1513 = vmatprep.subr.mxu0 0.0
        %1514 = vmatpush1.msra.mxu0 %v1509
        %1515 = vmatprep.subr.mxu0 0.0
        %1516 = vmatpush1.msra.mxu0 %v1510
        %1517 = vmatprep.subr.mxu0 0.0
        %1518 = vmatpush1.msra.mxu0 %v1511
        %1519 = vmatprep.subr.mxu0 0.0
        %1520 = vmatpush1.msra.mxu0 %v1512
        %1521 = vmatprep.subr.mxu0 0.0
        %1522 = vmatpush1.msra.mxu0 0.0
        %1523 = vmatprep.subr.mxu0 0.0
        %1524 = vmatpush1.msra.mxu0 0.0
        %1525 = vmatprep.subr.mxu0 0.0
        %1526 = vmatpush1.msra.mxu0 0.0
        %1527 = vmatprep.subr.mxu0 0.0
        %1528 = vmatpush1.msra.mxu0 0.0
        %1529 = vmatprep.subr.mxu0 0.0
        %1530 = vmatpush1.msra.mxu0 0.0
        %1531 = vmatprep.subr.mxu0 0.0
        %1532 = vmatpush1.msra.mxu0 0.0
        %1533 = vmatprep.subr.mxu0 0.0
        %1534 = vmatpush1.msra.mxu0 0.0
        %1535 = vmatprep.subr.mxu0 0.0
        %1536 = vmatpush1.msra.mxu0 0.0
        %1537 = vmatprep.subr.mxu0 0.0
        %1538 = vmatpush1.msra.mxu0 0.0
        %1539 = vmatprep.subr.mxu0 0.0
        %1540 = vmatpush1.msra.mxu0 0.0
        %1541 = vmatprep.subr.mxu0 0.0
        %1542 = vmatpush1.msra.mxu0 0.0
        %1543 = vmatprep.subr.mxu0 0.0
        %1544 = vmatpush1.msra.mxu0 0.0
        %1545 = vmatprep.subr.mxu0 0.0
        %1546 = vmatpush1.msra.mxu0 0.0
        %1547 = vmatprep.subr.mxu0 0.0
        %1548 = vmatpush1.msra.mxu0 0.0
        %1549 = vmatprep.subr.mxu0 0.0
        %1550 = vmatpush1.msra.mxu0 0.0
        %1551 = vmatprep.subr.mxu0 0.0
        %1552 = vmatpush1.msra.mxu0 0.0
        %1553 = vmatprep.subr.mxu0 0.0
        %1554 = vmatpush1.msra.mxu0 0.0
        %1555 = vmatprep.subr.mxu0 0.0
        %1556 = vmatpush1.msra.mxu0 0.0
        %1557 = vmatprep.subr.mxu0 0.0
        %1558 = vmatpush1.msra.mxu0 0.0
        %1559 = vmatprep.subr.mxu0 0.0
        %1560 = vmatpush1.msra.mxu0 0.0
        %1561 = vmatprep.subr.mxu0 0.0
        %1562 = vmatpush1.msra.mxu0 0.0
        %1563 = vmatprep.subr.mxu0 0.0
        %1564 = vmatpush1.msra.mxu0 0.0
        %1565 = vmatprep.subr.mxu0 0.0
        %1566 = vmatpush1.msra.mxu0 0.0
        %1567 = vmatprep.subr.mxu0 0.0
        %1568 = vmatpush1.msra.mxu0 0.0
        %1569 = vmatprep.subr.mxu0 0.0
        %1570 = vmatpush1.msra.mxu0 0.0
        %1571 = vmatprep.subr.mxu0 0.0
        %1572 = vmatpush1.msra.mxu0 0.0
        %1573 = vmatprep.subr.mxu0 0.0
        %1574 = vmatpush1.msra.mxu0 0.0
        %1575 = vmatprep.subr.mxu0 0.0
        %1576 = vmatpush1.msra.mxu0 0.0
        %1577 = vmatprep.mubr.f32.mxu0 0.0
        %1578 = vmatmul.mubr.f32.gmra.mrb[0].mxu0 %v1401
        %v1579 = vpop.f32.mrb[0].mxu0
        %v1580 = vadd.f32 %v1383, %v1579
        %v1581 = vpop.f32.mrb[0].mxu0
        %1582 = vmatprep.mubr.f32.mxu0 0.0
        %1583 = vmatmul.mubr.f32.gmra.mrb[0].mxu0 %v1404
        %v1584 = vpop.f32.mrb[0].mxu0
        %v1585 = vadd.f32 %v1388, %v1584
        %v1586 = vpop.f32.mrb[0].mxu0
        %1587 = vmatprep.mubr.f32.mxu0 0.0
        %1588 = vmatmul.mubr.f32.gmra.mrb[0].mxu0 %v1407
        %v1589 = vpop.f32.mrb[0].mxu0
        %v1590 = vadd.f32 %v1393, %v1589
        %v1591 = vpop.f32.mrb[0].mxu0
        %1592 = vmatprep.mubr.f32.mxu0 0.0
        %1593 = vmatmul.mubr.f32.gmra.mrb[0].mxu0 %v1410
        %v1594 = vpop.f32.mrb[0].mxu0
        %v1595 = vadd.f32 %v1398, %v1594
        %v1596 = vpop.f32.mrb[0].mxu0
        %1597 = vdwg.mxu0
        %v1598 = vtanh.pop %v1580
        %v1599 = vtanh.pop %v1585
        %v1600 = vtanh.pop %v1590
        %v1601 = vtanh.pop %v1595
        %v1602 = vmul.f32 %v1598, 0.016666668
        %v1603 = vmul.f32 %v1599, 0.016666668
        %v1604 = vmul.f32 %v1600, 0.016666668
        %v1605 = vmul.f32 %v1601, 0.016666668
        %v1606 = vadd.f32 %v1501, %v1602
        %v1607 = vadd.f32 %v1502, %v1603
        %v1608 = vadd.f32 %v1503, %v1604
        %v1609 = vadd.f32 %v1504, %v1605
        %v1610 = vmul.f32 %v1598, 0.025
        %v1611 = vmul.f32 %v1599, 0.025
        %v1612 = vmul.f32 %v1600, 0.025
        %v1613 = vmul.f32 %v1601, 0.025
        %v1614 = vadd.f32 %v945, %v1610
        %v1615 = vadd.f32 %v946, %v1611
        %v1616 = vadd.f32 %v947, %v1612
        %v1617 = vadd.f32 %v948, %v1613
        %1618 = vmatprep.subr.mxu0 0.0
        %1619 = vmatpush1.msra.mxu0 %v1614
        %1620 = vmatprep.subr.mxu0 0.0
        %1621 = vmatpush1.msra.mxu0 %v1615
        %1622 = vmatprep.subr.mxu0 0.0
        %1623 = vmatpush1.msra.mxu0 %v1616
        %1624 = vmatprep.subr.mxu0 0.0
        %1625 = vmatpush1.msra.mxu0 %v1617
        %1626 = vmatprep.subr.mxu0 0.0
        %1627 = vmatpush1.msra.mxu0 0.0
        %1628 = vmatprep.subr.mxu0 0.0
        %1629 = vmatpush1.msra.mxu0 0.0
        %1630 = vmatprep.subr.mxu0 0.0
        %1631 = vmatpush1.msra.mxu0 0.0
        %1632 = vmatprep.subr.mxu0 0.0
        %1633 = vmatpush1.msra.mxu0 0.0
        %1634 = vmatprep.subr.mxu0 0.0
        %1635 = vmatpush1.msra.mxu0 0.0
        %1636 = vmatprep.subr.mxu0 0.0
        %1637 = vmatpush1.msra.mxu0 0.0
        %1638 = vmatprep.subr.mxu0 0.0
        %1639 = vmatpush1.msra.mxu0 0.0
        %1640 = vmatprep.subr.mxu0 0.0
        %1641 = vmatpush1.msra.mxu0 0.0
        %1642 = vmatprep.subr.mxu0 0.0
        %1643 = vmatpush1.msra.mxu0 0.0
        %1644 = vmatprep.subr.mxu0 0.0
        %1645 = vmatpush1.msra.mxu0 0.0
        %1646 = vmatprep.subr.mxu0 0.0
        %1647 = vmatpush1.msra.mxu0 0.0
        %1648 = vmatprep.subr.mxu0 0.0
        %1649 = vmatpush1.msra.mxu0 0.0
        %1650 = vmatprep.subr.mxu0 0.0
        %1651 = vmatpush1.msra.mxu0 0.0
        %1652 = vmatprep.subr.mxu0 0.0
        %1653 = vmatpush1.msra.mxu0 0.0
        %1654 = vmatprep.subr.mxu0 0.0
        %1655 = vmatpush1.msra.mxu0 0.0
        %1656 = vmatprep.subr.mxu0 0.0
        %1657 = vmatpush1.msra.mxu0 0.0
        %1658 = vmatprep.subr.mxu0 0.0
        %1659 = vmatpush1.msra.mxu0 0.0
        %1660 = vmatprep.subr.mxu0 0.0
        %1661 = vmatpush1.msra.mxu0 0.0
        %1662 = vmatprep.subr.mxu0 0.0
        %1663 = vmatpush1.msra.mxu0 0.0
        %1664 = vmatprep.subr.mxu0 0.0
        %1665 = vmatpush1.msra.mxu0 0.0
        %1666 = vmatprep.subr.mxu0 0.0
        %1667 = vmatpush1.msra.mxu0 0.0
        %1668 = vmatprep.subr.mxu0 0.0
        %1669 = vmatpush1.msra.mxu0 0.0
        %1670 = vmatprep.subr.mxu0 0.0
        %1671 = vmatpush1.msra.mxu0 0.0
        %1672 = vmatprep.subr.mxu0 0.0
        %1673 = vmatpush1.msra.mxu0 0.0
        %1674 = vmatprep.subr.mxu0 0.0
        %1675 = vmatpush1.msra.mxu0 0.0
        %1676 = vmatprep.subr.mxu0 0.0
        %1677 = vmatpush1.msra.mxu0 0.0
        %1678 = vmatprep.subr.mxu0 0.0
        %1679 = vmatpush1.msra.mxu0 0.0
        %1680 = vmatprep.subr.mxu0 0.0
        %1681 = vmatpush1.msra.mxu0 0.0
        %1682 = vmatprep.mubr.f32.mxu0 0.0
        %1683 = vmatmul.mubr.f32.gmra.mrb[0].mxu0 %v1401
        %v1684 = vpop.f32.mrb[0].mxu0
        %v1685 = vadd.f32 %v1383, %v1684
        %v1686 = vpop.f32.mrb[0].mxu0
        %1687 = vmatprep.mubr.f32.mxu0 0.0
        %1688 = vmatmul.mubr.f32.gmra.mrb[0].mxu0 %v1404
        %v1689 = vpop.f32.mrb[0].mxu0
        %v1690 = vadd.f32 %v1388, %v1689
        %v1691 = vpop.f32.mrb[0].mxu0
        %1692 = vmatprep.mubr.f32.mxu0 0.0
        %1693 = vmatmul.mubr.f32.gmra.mrb[0].mxu0 %v1407
        %v1694 = vpop.f32.mrb[0].mxu0
        %v1695 = vadd.f32 %v1393, %v1694
        %v1696 = vpop.f32.mrb[0].mxu0
        %1697 = vmatprep.mubr.f32.mxu0 0.0
        %1698 = vmatmul.mubr.f32.gmra.mrb[0].mxu0 %v1410
        %v1699 = vpop.f32.mrb[0].mxu0
        %v1700 = vadd.f32 %v1398, %v1699
        %v1701 = vpop.f32.mrb[0].mxu0
        %1702 = vdwg.mxu0
        %v1703 = vtanh.pop %v1685
        %v1704 = vtanh.pop %v1690
        %v1705 = vtanh.pop %v1695
        %v1706 = vtanh.pop %v1700
        %v1707 = vmul.f32 %v1703, 0.016666668
        %v1708 = vmul.f32 %v1704, 0.016666668
        %v1709 = vmul.f32 %v1705, 0.016666668
        %v1710 = vmul.f32 %v1706, 0.016666668
        %v1711 = vadd.f32 %v1606, %v1707
        %v1712 = vadd.f32 %v1607, %v1708
        %v1713 = vadd.f32 %v1608, %v1709
        %v1714 = vadd.f32 %v1609, %v1710
        %v1715 = vmul.f32 %v1703, 0.05
        %v1716 = vmul.f32 %v1704, 0.05
        %v1717 = vmul.f32 %v1705, 0.05
        %v1718 = vmul.f32 %v1706, 0.05
        %v1719 = vadd.f32 %v945, %v1715
        %v1720 = vadd.f32 %v946, %v1716
        %v1721 = vadd.f32 %v947, %v1717
        %v1722 = vadd.f32 %v948, %v1718
        %1723 = vmatprep.subr.mxu0 0.0
        %1724 = vmatpush1.msra.mxu0 %v1719
        %1725 = vmatprep.subr.mxu0 0.0
        %1726 = vmatpush1.msra.mxu0 %v1720
        %1727 = vmatprep.subr.mxu0 0.0
        %1728 = vmatpush1.msra.mxu0 %v1721
        %1729 = vmatprep.subr.mxu0 0.0
        %1730 = vmatpush1.msra.mxu0 %v1722
        %1731 = vmatprep.subr.mxu0 0.0
        %1732 = vmatpush1.msra.mxu0 0.0
        %1733 = vmatprep.subr.mxu0 0.0
        %1734 = vmatpush1.msra.mxu0 0.0
        %1735 = vmatprep.subr.mxu0 0.0
        %1736 = vmatpush1.msra.mxu0 0.0
        %1737 = vmatprep.subr.mxu0 0.0
        %1738 = vmatpush1.msra.mxu0 0.0
        %1739 = vmatprep.subr.mxu0 0.0
        %1740 = vmatpush1.msra.mxu0 0.0
        %1741 = vmatprep.subr.mxu0 0.0
        %1742 = vmatpush1.msra.mxu0 0.0
        %1743 = vmatprep.subr.mxu0 0.0
        %1744 = vmatpush1.msra.mxu0 0.0
        %1745 = vmatprep.subr.mxu0 0.0
        %1746 = vmatpush1.msra.mxu0 0.0
        %1747 = vmatprep.subr.mxu0 0.0
        %1748 = vmatpush1.msra.mxu0 0.0
        %1749 = vmatprep.subr.mxu0 0.0
        %1750 = vmatpush1.msra.mxu0 0.0
        %1751 = vmatprep.subr.mxu0 0.0
        %1752 = vmatpush1.msra.mxu0 0.0
        %1753 = vmatprep.subr.mxu0 0.0
        %1754 = vmatpush1.msra.mxu0 0.0
        %1755 = vmatprep.subr.mxu0 0.0
        %1756 = vmatpush1.msra.mxu0 0.0
        %1757 = vmatprep.subr.mxu0 0.0
        %1758 = vmatpush1.msra.mxu0 0.0
        %1759 = vmatprep.subr.mxu0 0.0
        %1760 = vmatpush1.msra.mxu0 0.0
        %1761 = vmatprep.subr.mxu0 0.0
        %1762 = vmatpush1.msra.mxu0 0.0
        %1763 = vmatprep.subr.mxu0 0.0
        %1764 = vmatpush1.msra.mxu0 0.0
        %1765 = vmatprep.subr.mxu0 0.0
        %1766 = vmatpush1.msra.mxu0 0.0
        %1767 = vmatprep.subr.mxu0 0.0
        %1768 = vmatpush1.msra.mxu0 0.0
        %1769 = vmatprep.subr.mxu0 0.0
        %1770 = vmatpush1.msra.mxu0 0.0
        %1771 = vmatprep.subr.mxu0 0.0
        %1772 = vmatpush1.msra.mxu0 0.0
        %1773 = vmatprep.subr.mxu0 0.0
        %1774 = vmatpush1.msra.mxu0 0.0
        %1775 = vmatprep.subr.mxu0 0.0
        %1776 = vmatpush1.msra.mxu0 0.0
        %1777 = vmatprep.subr.mxu0 0.0
        %1778 = vmatpush1.msra.mxu0 0.0
        %1779 = vmatprep.subr.mxu0 0.0
        %1780 = vmatpush1.msra.mxu0 0.0
        %1781 = vmatprep.subr.mxu0 0.0
        %1782 = vmatpush1.msra.mxu0 0.0
        %1783 = vmatprep.subr.mxu0 0.0
        %1784 = vmatpush1.msra.mxu0 0.0
        %1785 = vmatprep.subr.mxu0 0.0
        %1786 = vmatpush1.msra.mxu0 0.0
        %1787 = vmatprep.mubr.f32.mxu0 0.0
        %1788 = vmatmul.mubr.f32.gmra.mrb[0].mxu0 %v1401
        %v1789 = vpop.f32.mrb[0].mxu0
        %v1790 = vadd.f32 %v1383, %v1789
        %v1791 = vpop.f32.mrb[0].mxu0
        %1792 = vmatprep.mubr.f32.mxu0 0.0
        %1793 = vmatmul.mubr.f32.gmra.mrb[0].mxu0 %v1404
        %v1794 = vpop.f32.mrb[0].mxu0
        %v1795 = vadd.f32 %v1388, %v1794
        %v1796 = vpop.f32.mrb[0].mxu0
        %1797 = vmatprep.mubr.f32.mxu0 0.0
        %1798 = vmatmul.mubr.f32.gmra.mrb[0].mxu0 %v1407
        %v1799 = vpop.f32.mrb[0].mxu0
        %v1800 = vadd.f32 %v1393, %v1799
        %v1801 = vpop.f32.mrb[0].mxu0
        %1802 = vmatprep.mubr.f32.mxu0 0.0
        %1803 = vmatmul.mubr.f32.gmra.mrb[0].mxu0 %v1410
        %v1804 = vpop.f32.mrb[0].mxu0
        %v1805 = vadd.f32 %v1398, %v1804
        %v1806 = vpop.f32.mrb[0].mxu0
        %1807 = vdwg.mxu0
        %v1808 = vtanh.pop %v1790
        %v1809 = vtanh.pop %v1795
        %v1810 = vtanh.pop %v1800
        %v1811 = vtanh.pop %v1805
        %v1812 = vadd.f32 %v945, %v1711
        %v1813 = vadd.f32 %v946, %v1712
        %v1814 = vadd.f32 %v947, %v1713
        %v1815 = vadd.f32 %v948, %v1714
        %v1816 = vmul.f32 %v1808, 0.008333334
        %v1817 = vmul.f32 %v1809, 0.008333334
        %v1818 = vmul.f32 %v1810, 0.008333334
        %v1819 = vmul.f32 %v1811, 0.008333334
        %v1820 = vadd.f32 %v1812, %v1816
        %v1821 = vadd.f32 %v1813, %v1817
        %v1822 = vadd.f32 %v1814, %v1818
        %v1823 = vadd.f32 %v1815, %v1819
        %s1824 = scalar_lea.vmem %s283, 128 [#allocation4]
        %1825 = vst [vmem:[%s1824] sm:$0xff] %v1820
        %1826 = vst [vmem:[%s1824 + $0x10] sm:$0xff] %v1821
        %1827 = vst [vmem:[%s1824 + $0x20] sm:$0xff] %v1822
        %1828 = vst [vmem:[%s1824 + $0x30] sm:$0xff] %v1823
        %1829 = vmatprep.subr.mxu0 0.0
        %1830 = vmatpush1.msra.mxu0 %v1362
        %1831 = vmatprep.subr.mxu0 0.0
        %1832 = vmatpush1.msra.mxu0 %v1363
        %1833 = vmatprep.subr.mxu0 0.0
        %1834 = vmatpush1.msra.mxu0 %v1364
        %1835 = vmatprep.subr.mxu0 0.0
        %1836 = vmatpush1.msra.mxu0 %v1365
        %1837 = vmatprep.subr.mxu0 0.0
        %1838 = vmatpush1.msra.mxu0 0.0
        %1839 = vmatprep.subr.mxu0 0.0
        %1840 = vmatpush1.msra.mxu0 0.0
        %1841 = vmatprep.subr.mxu0 0.0
        %1842 = vmatpush1.msra.mxu0 0.0
        %1843 = vmatprep.subr.mxu0 0.0
        %1844 = vmatpush1.msra.mxu0 0.0
        %1845 = vmatprep.subr.mxu0 0.0
        %1846 = vmatpush1.msra.mxu0 0.0
        %1847 = vmatprep.subr.mxu0 0.0
        %1848 = vmatpush1.msra.mxu0 0.0
        %1849 = vmatprep.subr.mxu0 0.0
        %1850 = vmatpush1.msra.mxu0 0.0
        %1851 = vmatprep.subr.mxu0 0.0
        %1852 = vmatpush1.msra.mxu0 0.0
        %1853 = vmatprep.subr.mxu0 0.0
        %1854 = vmatpush1.msra.mxu0 0.0
        %1855 = vmatprep.subr.mxu0 0.0
        %1856 = vmatpush1.msra.mxu0 0.0
        %1857 = vmatprep.subr.mxu0 0.0
        %1858 = vmatpush1.msra.mxu0 0.0
        %1859 = vmatprep.subr.mxu0 0.0
        %1860 = vmatpush1.msra.mxu0 0.0
        %1861 = vmatprep.subr.mxu0 0.0
        %1862 = vmatpush1.msra.mxu0 0.0
        %1863 = vmatprep.subr.mxu0 0.0
        %1864 = vmatpush1.msra.mxu0 0.0
        %1865 = vmatprep.subr.mxu0 0.0
        %1866 = vmatpush1.msra.mxu0 0.0
        %1867 = vmatprep.subr.mxu0 0.0
        %1868 = vmatpush1.msra.mxu0 0.0
        %1869 = vmatprep.subr.mxu0 0.0
        %1870 = vmatpush1.msra.mxu0 0.0
        %1871 = vmatprep.subr.mxu0 0.0
        %1872 = vmatpush1.msra.mxu0 0.0
        %1873 = vmatprep.subr.mxu0 0.0
        %1874 = vmatpush1.msra.mxu0 0.0
        %1875 = vmatprep.subr.mxu0 0.0
        %1876 = vmatpush1.msra.mxu0 0.0
        %1877 = vmatprep.subr.mxu0 0.0
        %1878 = vmatpush1.msra.mxu0 0.0
        %1879 = vmatprep.subr.mxu0 0.0
        %1880 = vmatpush1.msra.mxu0 0.0
        %1881 = vmatprep.subr.mxu0 0.0
        %1882 = vmatpush1.msra.mxu0 0.0
        %1883 = vmatprep.subr.mxu0 0.0
        %1884 = vmatpush1.msra.mxu0 0.0
        %1885 = vmatprep.subr.mxu0 0.0
        %1886 = vmatpush1.msra.mxu0 0.0
        %1887 = vmatprep.subr.mxu0 0.0
        %1888 = vmatpush1.msra.mxu0 0.0
        %1889 = vmatprep.subr.mxu0 0.0
        %1890 = vmatpush1.msra.mxu0 0.0
        %1891 = vmatprep.subr.mxu0 0.0
        %1892 = vmatpush1.msra.mxu0 0.0
        %1893 = vmatprep.mubr.f32.mxu0 0.0
        %1894 = vmatmul.mubr.f32.gmra.mrb[0].mxu0 %v1401
        %v1895 = vpop.f32.mrb[0].mxu0
        %v1896 = vadd.f32 %v1383, %v1895
        %v1897 = vpop.f32.mrb[0].mxu0
        %1898 = vmatprep.mubr.f32.mxu0 0.0
        %1899 = vmatmul.mubr.f32.gmra.mrb[0].mxu0 %v1404
        %v1900 = vpop.f32.mrb[0].mxu0
        %v1901 = vadd.f32 %v1388, %v1900
        %v1902 = vpop.f32.mrb[0].mxu0
        %1903 = vmatprep.mubr.f32.mxu0 0.0
        %1904 = vmatmul.mubr.f32.gmra.mrb[0].mxu0 %v1407
        %v1905 = vpop.f32.mrb[0].mxu0
        %v1906 = vadd.f32 %v1393, %v1905
        %v1907 = vpop.f32.mrb[0].mxu0
        %1908 = vmatprep.mubr.f32.mxu0 0.0
        %1909 = vmatmul.mubr.f32.gmra.mrb[0].mxu0 %v1410
        %v1910 = vpop.f32.mrb[0].mxu0
        %v1911 = vadd.f32 %v1398, %v1910
        %v1912 = vpop.f32.mrb[0].mxu0
        %1913 = vdwg.mxu0
        %v1914 = vtanh.pop %v1896
        %v1915 = vtanh.pop %v1901
        %v1916 = vtanh.pop %v1906
        %v1917 = vtanh.pop %v1911
        %v1918 = vmul.f32 %v1914, 0.008333334
        %v1919 = vmul.f32 %v1915, 0.008333334
        %v1920 = vmul.f32 %v1916, 0.008333334
        %v1921 = vmul.f32 %v1917, 0.008333334
        %v1922 = vmul.f32 %v1914, 0.025
        %v1923 = vmul.f32 %v1915, 0.025
        %v1924 = vmul.f32 %v1916, 0.025
        %v1925 = vmul.f32 %v1917, 0.025
        %v1926 = vadd.f32 %v1362, %v1922
        %v1927 = vadd.f32 %v1363, %v1923
        %v1928 = vadd.f32 %v1364, %v1924
        %v1929 = vadd.f32 %v1365, %v1925
        %1930 = vmatprep.subr.mxu0 0.0
        %1931 = vmatpush1.msra.mxu0 %v1926
        %1932 = vmatprep.subr.mxu0 0.0
        %1933 = vmatpush1.msra.mxu0 %v1927
        %1934 = vmatprep.subr.mxu0 0.0
        %1935 = vmatpush1.msra.mxu0 %v1928
        %1936 = vmatprep.subr.mxu0 0.0
        %1937 = vmatpush1.msra.mxu0 %v1929
        %1938 = vmatprep.subr.mxu0 0.0
        %1939 = vmatpush1.msra.mxu0 0.0
        %1940 = vmatprep.subr.mxu0 0.0
        %1941 = vmatpush1.msra.mxu0 0.0
        %1942 = vmatprep.subr.mxu0 0.0
        %1943 = vmatpush1.msra.mxu0 0.0
        %1944 = vmatprep.subr.mxu0 0.0
        %1945 = vmatpush1.msra.mxu0 0.0
        %1946 = vmatprep.subr.mxu0 0.0
        %1947 = vmatpush1.msra.mxu0 0.0
        %1948 = vmatprep.subr.mxu0 0.0
        %1949 = vmatpush1.msra.mxu0 0.0
        %1950 = vmatprep.subr.mxu0 0.0
        %1951 = vmatpush1.msra.mxu0 0.0
        %1952 = vmatprep.subr.mxu0 0.0
        %1953 = vmatpush1.msra.mxu0 0.0
        %1954 = vmatprep.subr.mxu0 0.0
        %1955 = vmatpush1.msra.mxu0 0.0
        %1956 = vmatprep.subr.mxu0 0.0
        %1957 = vmatpush1.msra.mxu0 0.0
        %1958 = vmatprep.subr.mxu0 0.0
        %1959 = vmatpush1.msra.mxu0 0.0
        %1960 = vmatprep.subr.mxu0 0.0
        %1961 = vmatpush1.msra.mxu0 0.0
        %1962 = vmatprep.subr.mxu0 0.0
        %1963 = vmatpush1.msra.mxu0 0.0
        %1964 = vmatprep.subr.mxu0 0.0
        %1965 = vmatpush1.msra.mxu0 0.0
        %1966 = vmatprep.subr.mxu0 0.0
        %1967 = vmatpush1.msra.mxu0 0.0
        %1968 = vmatprep.subr.mxu0 0.0
        %1969 = vmatpush1.msra.mxu0 0.0
        %1970 = vmatprep.subr.mxu0 0.0
        %1971 = vmatpush1.msra.mxu0 0.0
        %1972 = vmatprep.subr.mxu0 0.0
        %1973 = vmatpush1.msra.mxu0 0.0
        %1974 = vmatprep.subr.mxu0 0.0
        %1975 = vmatpush1.msra.mxu0 0.0
        %1976 = vmatprep.subr.mxu0 0.0
        %1977 = vmatpush1.msra.mxu0 0.0
        %1978 = vmatprep.subr.mxu0 0.0
        %1979 = vmatpush1.msra.mxu0 0.0
        %1980 = vmatprep.subr.mxu0 0.0
        %1981 = vmatpush1.msra.mxu0 0.0
        %1982 = vmatprep.subr.mxu0 0.0
        %1983 = vmatpush1.msra.mxu0 0.0
        %1984 = vmatprep.subr.mxu0 0.0
        %1985 = vmatpush1.msra.mxu0 0.0
        %1986 = vmatprep.subr.mxu0 0.0
        %1987 = vmatpush1.msra.mxu0 0.0
        %1988 = vmatprep.subr.mxu0 0.0
        %1989 = vmatpush1.msra.mxu0 0.0
        %1990 = vmatprep.subr.mxu0 0.0
        %1991 = vmatpush1.msra.mxu0 0.0
        %1992 = vmatprep.subr.mxu0 0.0
        %1993 = vmatpush1.msra.mxu0 0.0
        %1994 = vmatprep.mubr.f32.mxu0 0.0
        %1995 = vmatmul.mubr.f32.gmra.mrb[0].mxu0 %v1401
        %v1996 = vpop.f32.mrb[0].mxu0
        %v1997 = vadd.f32 %v1383, %v1996
        %v1998 = vpop.f32.mrb[0].mxu0
        %1999 = vmatprep.mubr.f32.mxu0 0.0
        %2000 = vmatmul.mubr.f32.gmra.mrb[0].mxu0 %v1404
        %v2001 = vpop.f32.mrb[0].mxu0
        %v2002 = vadd.f32 %v1388, %v2001
        %v2003 = vpop.f32.mrb[0].mxu0
        %2004 = vmatprep.mubr.f32.mxu0 0.0
        %2005 = vmatmul.mubr.f32.gmra.mrb[0].mxu0 %v1407
        %v2006 = vpop.f32.mrb[0].mxu0
        %v2007 = vadd.f32 %v1393, %v2006
        %v2008 = vpop.f32.mrb[0].mxu0
        %2009 = vmatprep.mubr.f32.mxu0 0.0
        %2010 = vmatmul.mubr.f32.gmra.mrb[0].mxu0 %v1410
        %v2011 = vpop.f32.mrb[0].mxu0
        %v2012 = vadd.f32 %v1398, %v2011
        %v2013 = vpop.f32.mrb[0].mxu0
        %2014 = vdwg.mxu0
        %v2015 = vtanh.pop %v1997
        %v2016 = vtanh.pop %v2002
        %v2017 = vtanh.pop %v2007
        %v2018 = vtanh.pop %v2012
        %v2019 = vmul.f32 %v2015, 0.016666668
        %v2020 = vmul.f32 %v2016, 0.016666668
        %v2021 = vmul.f32 %v2017, 0.016666668
        %v2022 = vmul.f32 %v2018, 0.016666668
        %v2023 = vadd.f32 %v1918, %v2019
        %v2024 = vadd.f32 %v1919, %v2020
        %v2025 = vadd.f32 %v1920, %v2021
        %v2026 = vadd.f32 %v1921, %v2022
        %v2027 = vmul.f32 %v2015, 0.025
        %v2028 = vmul.f32 %v2016, 0.025
        %v2029 = vmul.f32 %v2017, 0.025
        %v2030 = vmul.f32 %v2018, 0.025
        %v2031 = vadd.f32 %v1362, %v2027
        %v2032 = vadd.f32 %v1363, %v2028
        %v2033 = vadd.f32 %v1364, %v2029
        %v2034 = vadd.f32 %v1365, %v2030
        %2035 = vmatprep.subr.mxu0 0.0
        %2036 = vmatpush1.msra.mxu0 %v2031
        %2037 = vmatprep.subr.mxu0 0.0
        %2038 = vmatpush1.msra.mxu0 %v2032
        %2039 = vmatprep.subr.mxu0 0.0
        %2040 = vmatpush1.msra.mxu0 %v2033
        %2041 = vmatprep.subr.mxu0 0.0
        %2042 = vmatpush1.msra.mxu0 %v2034
        %2043 = vmatprep.subr.mxu0 0.0
        %2044 = vmatpush1.msra.mxu0 0.0
        %2045 = vmatprep.subr.mxu0 0.0
        %2046 = vmatpush1.msra.mxu0 0.0
        %2047 = vmatprep.subr.mxu0 0.0
        %2048 = vmatpush1.msra.mxu0 0.0
        %2049 = vmatprep.subr.mxu0 0.0
        %2050 = vmatpush1.msra.mxu0 0.0
        %2051 = vmatprep.subr.mxu0 0.0
        %2052 = vmatpush1.msra.mxu0 0.0
        %2053 = vmatprep.subr.mxu0 0.0
        %2054 = vmatpush1.msra.mxu0 0.0
        %2055 = vmatprep.subr.mxu0 0.0
        %2056 = vmatpush1.msra.mxu0 0.0
        %2057 = vmatprep.subr.mxu0 0.0
        %2058 = vmatpush1.msra.mxu0 0.0
        %2059 = vmatprep.subr.mxu0 0.0
        %2060 = vmatpush1.msra.mxu0 0.0
        %2061 = vmatprep.subr.mxu0 0.0
        %2062 = vmatpush1.msra.mxu0 0.0
        %2063 = vmatprep.subr.mxu0 0.0
        %2064 = vmatpush1.msra.mxu0 0.0
        %2065 = vmatprep.subr.mxu0 0.0
        %2066 = vmatpush1.msra.mxu0 0.0
        %2067 = vmatprep.subr.mxu0 0.0
        %2068 = vmatpush1.msra.mxu0 0.0
        %2069 = vmatprep.subr.mxu0 0.0
        %2070 = vmatpush1.msra.mxu0 0.0
        %2071 = vmatprep.subr.mxu0 0.0
        %2072 = vmatpush1.msra.mxu0 0.0
        %2073 = vmatprep.subr.mxu0 0.0
        %2074 = vmatpush1.msra.mxu0 0.0
        %2075 = vmatprep.subr.mxu0 0.0
        %2076 = vmatpush1.msra.mxu0 0.0
        %2077 = vmatprep.subr.mxu0 0.0
        %2078 = vmatpush1.msra.mxu0 0.0
        %2079 = vmatprep.subr.mxu0 0.0
        %2080 = vmatpush1.msra.mxu0 0.0
        %2081 = vmatprep.subr.mxu0 0.0
        %2082 = vmatpush1.msra.mxu0 0.0
        %2083 = vmatprep.subr.mxu0 0.0
        %2084 = vmatpush1.msra.mxu0 0.0
        %2085 = vmatprep.subr.mxu0 0.0
        %2086 = vmatpush1.msra.mxu0 0.0
        %2087 = vmatprep.subr.mxu0 0.0
        %2088 = vmatpush1.msra.mxu0 0.0
        %2089 = vmatprep.subr.mxu0 0.0
        %2090 = vmatpush1.msra.mxu0 0.0
        %2091 = vmatprep.subr.mxu0 0.0
        %2092 = vmatpush1.msra.mxu0 0.0
        %2093 = vmatprep.subr.mxu0 0.0
        %2094 = vmatpush1.msra.mxu0 0.0
        %2095 = vmatprep.subr.mxu0 0.0
        %2096 = vmatpush1.msra.mxu0 0.0
        %2097 = vmatprep.subr.mxu0 0.0
        %2098 = vmatpush1.msra.mxu0 0.0
        %2099 = vmatprep.mubr.f32.mxu0 0.0
        %2100 = vmatmul.mubr.f32.gmra.mrb[0].mxu0 %v1401
        %v2101 = vpop.f32.mrb[0].mxu0
        %v2102 = vadd.f32 %v1383, %v2101
        %v2103 = vpop.f32.mrb[0].mxu0
        %2104 = vmatprep.mubr.f32.mxu0 0.0
        %2105 = vmatmul.mubr.f32.gmra.mrb[0].mxu0 %v1404
        %v2106 = vpop.f32.mrb[0].mxu0
        %v2107 = vadd.f32 %v1388, %v2106
        %v2108 = vpop.f32.mrb[0].mxu0
        %2109 = vmatprep.mubr.f32.mxu0 0.0
        %2110 = vmatmul.mubr.f32.gmra.mrb[0].mxu0 %v1407
        %v2111 = vpop.f32.mrb[0].mxu0
        %v2112 = vadd.f32 %v1393, %v2111
        %v2113 = vpop.f32.mrb[0].mxu0
        %2114 = vmatprep.mubr.f32.mxu0 0.0
        %2115 = vmatmul.mubr.f32.gmra.mrb[0].mxu0 %v1410
        %v2116 = vpop.f32.mrb[0].mxu0
        %v2117 = vadd.f32 %v1398, %v2116
        %v2118 = vpop.f32.mrb[0].mxu0
        %2119 = vdwg.mxu0
        %v2120 = vtanh.pop %v2102
        %v2121 = vtanh.pop %v2107
        %v2122 = vtanh.pop %v2112
        %v2123 = vtanh.pop %v2117
        %v2124 = vmul.f32 %v2120, 0.016666668
        %v2125 = vmul.f32 %v2121, 0.016666668
        %v2126 = vmul.f32 %v2122, 0.016666668
        %v2127 = vmul.f32 %v2123, 0.016666668
        %v2128 = vadd.f32 %v2023, %v2124
        %v2129 = vadd.f32 %v2024, %v2125
        %v2130 = vadd.f32 %v2025, %v2126
        %v2131 = vadd.f32 %v2026, %v2127
        %v2132 = vmul.f32 %v2120, 0.05
        %v2133 = vmul.f32 %v2121, 0.05
        %v2134 = vmul.f32 %v2122, 0.05
        %v2135 = vmul.f32 %v2123, 0.05
        %v2136 = vadd.f32 %v1362, %v2132
        %v2137 = vadd.f32 %v1363, %v2133
        %v2138 = vadd.f32 %v1364, %v2134
        %v2139 = vadd.f32 %v1365, %v2135
        %2140 = vmatprep.subr.mxu0 0.0
        %2141 = vmatpush1.msra.mxu0 %v2136
        %2142 = vmatprep.subr.mxu0 0.0
        %2143 = vmatpush1.msra.mxu0 %v2137
        %2144 = vmatprep.subr.mxu0 0.0
        %2145 = vmatpush1.msra.mxu0 %v2138
        %2146 = vmatprep.subr.mxu0 0.0
        %2147 = vmatpush1.msra.mxu0 %v2139
        %2148 = vmatprep.subr.mxu0 0.0
        %2149 = vmatpush1.msra.mxu0 0.0
        %2150 = vmatprep.subr.mxu0 0.0
        %2151 = vmatpush1.msra.mxu0 0.0
        %2152 = vmatprep.subr.mxu0 0.0
        %2153 = vmatpush1.msra.mxu0 0.0
        %2154 = vmatprep.subr.mxu0 0.0
        %2155 = vmatpush1.msra.mxu0 0.0
        %2156 = vmatprep.subr.mxu0 0.0
        %2157 = vmatpush1.msra.mxu0 0.0
        %2158 = vmatprep.subr.mxu0 0.0
        %2159 = vmatpush1.msra.mxu0 0.0
        %2160 = vmatprep.subr.mxu0 0.0
        %2161 = vmatpush1.msra.mxu0 0.0
        %2162 = vmatprep.subr.mxu0 0.0
        %2163 = vmatpush1.msra.mxu0 0.0
        %2164 = vmatprep.subr.mxu0 0.0
        %2165 = vmatpush1.msra.mxu0 0.0
        %2166 = vmatprep.subr.mxu0 0.0
        %2167 = vmatpush1.msra.mxu0 0.0
        %2168 = vmatprep.subr.mxu0 0.0
        %2169 = vmatpush1.msra.mxu0 0.0
        %2170 = vmatprep.subr.mxu0 0.0
        %2171 = vmatpush1.msra.mxu0 0.0
        %2172 = vmatprep.subr.mxu0 0.0
        %2173 = vmatpush1.msra.mxu0 0.0
        %2174 = vmatprep.subr.mxu0 0.0
        %2175 = vmatpush1.msra.mxu0 0.0
        %2176 = vmatprep.subr.mxu0 0.0
        %2177 = vmatpush1.msra.mxu0 0.0
        %2178 = vmatprep.subr.mxu0 0.0
        %2179 = vmatpush1.msra.mxu0 0.0
        %2180 = vmatprep.subr.mxu0 0.0
        %2181 = vmatpush1.msra.mxu0 0.0
        %2182 = vmatprep.subr.mxu0 0.0
        %2183 = vmatpush1.msra.mxu0 0.0
        %2184 = vmatprep.subr.mxu0 0.0
        %2185 = vmatpush1.msra.mxu0 0.0
        %2186 = vmatprep.subr.mxu0 0.0
        %2187 = vmatpush1.msra.mxu0 0.0
        %2188 = vmatprep.subr.mxu0 0.0
        %2189 = vmatpush1.msra.mxu0 0.0
        %2190 = vmatprep.subr.mxu0 0.0
        %2191 = vmatpush1.msra.mxu0 0.0
        %2192 = vmatprep.subr.mxu0 0.0
        %2193 = vmatpush1.msra.mxu0 0.0
        %2194 = vmatprep.subr.mxu0 0.0
        %2195 = vmatpush1.msra.mxu0 0.0
        %2196 = vmatprep.subr.mxu0 0.0
        %2197 = vmatpush1.msra.mxu0 0.0
        %2198 = vmatprep.subr.mxu0 0.0
        %2199 = vmatpush1.msra.mxu0 0.0
        %2200 = vmatprep.subr.mxu0 0.0
        %2201 = vmatpush1.msra.mxu0 0.0
        %2202 = vmatprep.subr.mxu0 0.0
        %2203 = vmatpush1.msra.mxu0 0.0
        %2204 = vmatprep.mubr.f32.mxu0 0.0
        %2205 = vmatmul.mubr.f32.gmra.mrb[0].mxu0 %v1401
        %v2206 = vpop.f32.mrb[0].mxu0
        %v2207 = vadd.f32 %v1383, %v2206
        %v2208 = vpop.f32.mrb[0].mxu0
        %2209 = vmatprep.mubr.f32.mxu0 0.0
        %2210 = vmatmul.mubr.f32.gmra.mrb[0].mxu0 %v1404
        %v2211 = vpop.f32.mrb[0].mxu0
        %v2212 = vadd.f32 %v1388, %v2211
        %v2213 = vpop.f32.mrb[0].mxu0
        %2214 = vmatprep.mubr.f32.mxu0 0.0
        %2215 = vmatmul.mubr.f32.gmra.mrb[0].mxu0 %v1407
        %v2216 = vpop.f32.mrb[0].mxu0
        %v2217 = vadd.f32 %v1393, %v2216
        %v2218 = vpop.f32.mrb[0].mxu0
        %2219 = vmatprep.mubr.f32.mxu0 0.0
        %2220 = vmatmul.mubr.f32.gmra.mrb[0].mxu0 %v1410
        %v2221 = vpop.f32.mrb[0].mxu0
        %v2222 = vadd.f32 %v1398, %v2221
        %v2223 = vpop.f32.mrb[0].mxu0
        %2224 = vdwg.mxu0
        %v2225 = vtanh.pop %v2207
        %v2226 = vtanh.pop %v2212
        %v2227 = vtanh.pop %v2217
        %v2228 = vtanh.pop %v2222
        %v2229 = vadd.f32 %v1362, %v2128
        %v2230 = vadd.f32 %v1363, %v2129
        %v2231 = vadd.f32 %v1364, %v2130
        %v2232 = vadd.f32 %v1365, %v2131
        %v2233 = vmul.f32 %v2225, 0.008333334
        %v2234 = vmul.f32 %v2226, 0.008333334
        %v2235 = vmul.f32 %v2227, 0.008333334
        %v2236 = vmul.f32 %v2228, 0.008333334
        %v2237 = vadd.f32 %v2229, %v2233
        %v2238 = vadd.f32 %v2230, %v2234
        %v2239 = vadd.f32 %v2231, %v2235
        %v2240 = vadd.f32 %v2232, %v2236
        %2241 = vst [vmem:[%s1824 + $0x8] sm:$0xff] %v2237
        %2242 = vst [vmem:[%s1824 + $0x18] sm:$0xff] %v2238
        %2243 = vst [vmem:[%s1824 + $0x28] sm:$0xff] %v2239
        %2244 = vst [vmem:[%s1824 + $0x38] sm:$0xff] %v2240
        %s2245 = scalar_lea.vmem %s2, 64
        %v2246 = vld [vmem:[%s2245] sm:$0xff]
        %v2247 = vld [vmem:[%s2245 + $0x8] sm:$0xff]
        %v2248 = vld [vmem:[%s2245 + $0x10] sm:$0xff]
        %v2249 = vld [vmem:[%s2245 + $0x18] sm:$0xff]
        %s2250 = scalar_lea.vmem %s3, 64
        %v2251 = vld [vmem:[%s2250] sm:$0xff]
        %v2252 = vld [vmem:[%s2250 + $0x8] sm:$0xff]
        %v2253 = vld [vmem:[%s2250 + $0x10] sm:$0xff]
        %v2254 = vld [vmem:[%s2250 + $0x18] sm:$0xff]
        %2256 = vset.pattern.permute.xlu0 0
        %2257 = vperm.xlu0 %2256, %v2251
        %v2258 = vpop.permute.xlu0 %2257
        %2261 = vset.pattern.permute.xlu0 0
        %2262 = vperm.xlu0 %2261, %v2252
        %v2263 = vpop.permute.xlu0 %2262
        %2266 = vset.pattern.permute.xlu0 0
        %2267 = vperm.xlu0 %2266, %v2253
        %v2268 = vpop.permute.xlu0 %2267
        %2271 = vset.pattern.permute.xlu0 0
        %2272 = vperm.xlu0 %2271, %v2254
        %v2273 = vpop.permute.xlu0 %2272
        %v2276 = vsel %vm524, %v2246, 0
        %v2279 = vsel %vm524, %v2247, 0
        %v2282 = vsel %vm524, %v2248, 0
        %v2285 = vsel %vm524, %v2249, 0
        %2287 = vmatprep.subr.mxu0 0.0
        %2288 = vmatpush1.msra.mxu0 %v1820
        %2289 = vmatprep.subr.mxu0 0.0
        %2290 = vmatpush1.msra.mxu0 %v1821
        %2291 = vmatprep.subr.mxu0 0.0
        %2292 = vmatpush1.msra.mxu0 %v1822
        %2293 = vmatprep.subr.mxu0 0.0
        %2294 = vmatpush1.msra.mxu0 %v1823
        %2295 = vmatprep.subr.mxu0 0.0
        %2296 = vmatpush1.msra.mxu0 0.0
        %2297 = vmatprep.subr.mxu0 0.0
        %2298 = vmatpush1.msra.mxu0 0.0
        %2299 = vmatprep.subr.mxu0 0.0
        %2300 = vmatpush1.msra.mxu0 0.0
        %2301 = vmatprep.subr.mxu0 0.0
        %2302 = vmatpush1.msra.mxu0 0.0
        %2303 = vmatprep.subr.mxu0 0.0
        %2304 = vmatpush1.msra.mxu0 0.0
        %2305 = vmatprep.subr.mxu0 0.0
        %2306 = vmatpush1.msra.mxu0 0.0
        %2307 = vmatprep.subr.mxu0 0.0
        %2308 = vmatpush1.msra.mxu0 0.0
        %2309 = vmatprep.subr.mxu0 0.0
        %2310 = vmatpush1.msra.mxu0 0.0
        %2311 = vmatprep.subr.mxu0 0.0
        %2312 = vmatpush1.msra.mxu0 0.0
        %2313 = vmatprep.subr.mxu0 0.0
        %2314 = vmatpush1.msra.mxu0 0.0
        %2315 = vmatprep.subr.mxu0 0.0
        %2316 = vmatpush1.msra.mxu0 0.0
        %2317 = vmatprep.subr.mxu0 0.0
        %2318 = vmatpush1.msra.mxu0 0.0
        %2319 = vmatprep.subr.mxu0 0.0
        %2320 = vmatpush1.msra.mxu0 0.0
        %2321 = vmatprep.subr.mxu0 0.0
        %2322 = vmatpush1.msra.mxu0 0.0
        %2323 = vmatprep.subr.mxu0 0.0
        %2324 = vmatpush1.msra.mxu0 0.0
        %2325 = vmatprep.subr.mxu0 0.0
        %2326 = vmatpush1.msra.mxu0 0.0
        %2327 = vmatprep.subr.mxu0 0.0
        %2328 = vmatpush1.msra.mxu0 0.0
        %2329 = vmatprep.subr.mxu0 0.0
        %2330 = vmatpush1.msra.mxu0 0.0
        %2331 = vmatprep.subr.mxu0 0.0
        %2332 = vmatpush1.msra.mxu0 0.0
        %2333 = vmatprep.subr.mxu0 0.0
        %2334 = vmatpush1.msra.mxu0 0.0
        %2335 = vmatprep.subr.mxu0 0.0
        %2336 = vmatpush1.msra.mxu0 0.0
        %2337 = vmatprep.subr.mxu0 0.0
        %2338 = vmatpush1.msra.mxu0 0.0
        %2339 = vmatprep.subr.mxu0 0.0
        %2340 = vmatpush1.msra.mxu0 0.0
        %2341 = vmatprep.subr.mxu0 0.0
        %2342 = vmatpush1.msra.mxu0 0.0
        %2343 = vmatprep.subr.mxu0 0.0
        %2344 = vmatpush1.msra.mxu0 0.0
        %2345 = vmatprep.subr.mxu0 0.0
        %2346 = vmatpush1.msra.mxu0 0.0
        %2347 = vmatprep.subr.mxu0 0.0
        %2348 = vmatpush1.msra.mxu0 0.0
        %2349 = vmatprep.subr.mxu0 0.0
        %2350 = vmatpush1.msra.mxu0 0.0
        %2351 = vmatprep.mubr.f32.mxu0 0.0
        %2352 = vmatmul.mubr.f32.gmra.mrb[0].mxu0 %v2276
        %v2353 = vpop.f32.mrb[0].mxu0
        %v2354 = vadd.f32 %v2258, %v2353
        %v2355 = vpop.f32.mrb[0].mxu0
        %2356 = vmatprep.mubr.f32.mxu0 0.0
        %2357 = vmatmul.mubr.f32.gmra.mrb[0].mxu0 %v2279
        %v2358 = vpop.f32.mrb[0].mxu0
        %v2359 = vadd.f32 %v2263, %v2358
        %v2360 = vpop.f32.mrb[0].mxu0
        %2361 = vmatprep.mubr.f32.mxu0 0.0
        %2362 = vmatmul.mubr.f32.gmra.mrb[0].mxu0 %v2282
        %v2363 = vpop.f32.mrb[0].mxu0
        %v2364 = vadd.f32 %v2268, %v2363
        %v2365 = vpop.f32.mrb[0].mxu0
        %2366 = vmatprep.mubr.f32.mxu0 0.0
        %2367 = vmatmul.mubr.f32.gmra.mrb[0].mxu0 %v2285
        %v2368 = vpop.f32.mrb[0].mxu0
        %v2369 = vadd.f32 %v2273, %v2368
        %v2370 = vpop.f32.mrb[0].mxu0
        %2371 = vdwg.mxu0
        %v2372 = vtanh.pop %v2354
        %v2373 = vtanh.pop %v2359
        %v2374 = vtanh.pop %v2364
        %v2375 = vtanh.pop %v2369
        %v2376 = vmul.f32 %v2372, 0.008333334
        %v2377 = vmul.f32 %v2373, 0.008333334
        %v2378 = vmul.f32 %v2374, 0.008333334
        %v2379 = vmul.f32 %v2375, 0.008333334
        %v2380 = vmul.f32 %v2372, 0.025
        %v2381 = vmul.f32 %v2373, 0.025
        %v2382 = vmul.f32 %v2374, 0.025
        %v2383 = vmul.f32 %v2375, 0.025
        %v2384 = vadd.f32 %v1820, %v2380
        %v2385 = vadd.f32 %v1821, %v2381
        %v2386 = vadd.f32 %v1822, %v2382
        %v2387 = vadd.f32 %v1823, %v2383
        %2388 = vmatprep.subr.mxu0 0.0
        %2389 = vmatpush1.msra.mxu0 %v2384
        %2390 = vmatprep.subr.mxu0 0.0
        %2391 = vmatpush1.msra.mxu0 %v2385
        %2392 = vmatprep.subr.mxu0 0.0
        %2393 = vmatpush1.msra.mxu0 %v2386
        %2394 = vmatprep.subr.mxu0 0.0
        %2395 = vmatpush1.msra.mxu0 %v2387
        %2396 = vmatprep.subr.mxu0 0.0
        %2397 = vmatpush1.msra.mxu0 0.0
        %2398 = vmatprep.subr.mxu0 0.0
        %2399 = vmatpush1.msra.mxu0 0.0
        %2400 = vmatprep.subr.mxu0 0.0
        %2401 = vmatpush1.msra.mxu0 0.0
        %2402 = vmatprep.subr.mxu0 0.0
        %2403 = vmatpush1.msra.mxu0 0.0
        %2404 = vmatprep.subr.mxu0 0.0
        %2405 = vmatpush1.msra.mxu0 0.0
        %2406 = vmatprep.subr.mxu0 0.0
        %2407 = vmatpush1.msra.mxu0 0.0
        %2408 = vmatprep.subr.mxu0 0.0
        %2409 = vmatpush1.msra.mxu0 0.0
        %2410 = vmatprep.subr.mxu0 0.0
        %2411 = vmatpush1.msra.mxu0 0.0
        %2412 = vmatprep.subr.mxu0 0.0
        %2413 = vmatpush1.msra.mxu0 0.0
        %2414 = vmatprep.subr.mxu0 0.0
        %2415 = vmatpush1.msra.mxu0 0.0
        %2416 = vmatprep.subr.mxu0 0.0
        %2417 = vmatpush1.msra.mxu0 0.0
        %2418 = vmatprep.subr.mxu0 0.0
        %2419 = vmatpush1.msra.mxu0 0.0
        %2420 = vmatprep.subr.mxu0 0.0
        %2421 = vmatpush1.msra.mxu0 0.0
        %2422 = vmatprep.subr.mxu0 0.0
        %2423 = vmatpush1.msra.mxu0 0.0
        %2424 = vmatprep.subr.mxu0 0.0
        %2425 = vmatpush1.msra.mxu0 0.0
        %2426 = vmatprep.subr.mxu0 0.0
        %2427 = vmatpush1.msra.mxu0 0.0
        %2428 = vmatprep.subr.mxu0 0.0
        %2429 = vmatpush1.msra.mxu0 0.0
        %2430 = vmatprep.subr.mxu0 0.0
        %2431 = vmatpush1.msra.mxu0 0.0
        %2432 = vmatprep.subr.mxu0 0.0
        %2433 = vmatpush1.msra.mxu0 0.0
        %2434 = vmatprep.subr.mxu0 0.0
        %2435 = vmatpush1.msra.mxu0 0.0
        %2436 = vmatprep.subr.mxu0 0.0
        %2437 = vmatpush1.msra.mxu0 0.0
        %2438 = vmatprep.subr.mxu0 0.0
        %2439 = vmatpush1.msra.mxu0 0.0
        %2440 = vmatprep.subr.mxu0 0.0
        %2441 = vmatpush1.msra.mxu0 0.0
        %2442 = vmatprep.subr.mxu0 0.0
        %2443 = vmatpush1.msra.mxu0 0.0
        %2444 = vmatprep.subr.mxu0 0.0
        %2445 = vmatpush1.msra.mxu0 0.0
        %2446 = vmatprep.subr.mxu0 0.0
        %2447 = vmatpush1.msra.mxu0 0.0
        %2448 = vmatprep.subr.mxu0 0.0
        %2449 = vmatpush1.msra.mxu0 0.0
        %2450 = vmatprep.subr.mxu0 0.0
        %2451 = vmatpush1.msra.mxu0 0.0
        %2452 = vmatprep.mubr.f32.mxu0 0.0
        %2453 = vmatmul.mubr.f32.gmra.mrb[0].mxu0 %v2276
        %v2454 = vpop.f32.mrb[0].mxu0
        %v2455 = vadd.f32 %v2258, %v2454
        %v2456 = vpop.f32.mrb[0].mxu0
        %2457 = vmatprep.mubr.f32.mxu0 0.0
        %2458 = vmatmul.mubr.f32.gmra.mrb[0].mxu0 %v2279
        %v2459 = vpop.f32.mrb[0].mxu0
        %v2460 = vadd.f32 %v2263, %v2459
        %v2461 = vpop.f32.mrb[0].mxu0
        %2462 = vmatprep.mubr.f32.mxu0 0.0
        %2463 = vmatmul.mubr.f32.gmra.mrb[0].mxu0 %v2282
        %v2464 = vpop.f32.mrb[0].mxu0
        %v2465 = vadd.f32 %v2268, %v2464
        %v2466 = vpop.f32.mrb[0].mxu0
        %2467 = vmatprep.mubr.f32.mxu0 0.0
        %2468 = vmatmul.mubr.f32.gmra.mrb[0].mxu0 %v2285
        %v2469 = vpop.f32.mrb[0].mxu0
        %v2470 = vadd.f32 %v2273, %v2469
        %v2471 = vpop.f32.mrb[0].mxu0
        %2472 = vdwg.mxu0
        %v2473 = vtanh.pop %v2455
        %v2474 = vtanh.pop %v2460
        %v2475 = vtanh.pop %v2465
        %v2476 = vtanh.pop %v2470
        %v2477 = vmul.f32 %v2473, 0.016666668
        %v2478 = vmul.f32 %v2474, 0.016666668
        %v2479 = vmul.f32 %v2475, 0.016666668
        %v2480 = vmul.f32 %v2476, 0.016666668
        %v2481 = vadd.f32 %v2376, %v2477
        %v2482 = vadd.f32 %v2377, %v2478
        %v2483 = vadd.f32 %v2378, %v2479
        %v2484 = vadd.f32 %v2379, %v2480
        %v2485 = vmul.f32 %v2473, 0.025
        %v2486 = vmul.f32 %v2474, 0.025
        %v2487 = vmul.f32 %v2475, 0.025
        %v2488 = vmul.f32 %v2476, 0.025
        %v2489 = vadd.f32 %v1820, %v2485
        %v2490 = vadd.f32 %v1821, %v2486
        %v2491 = vadd.f32 %v1822, %v2487
        %v2492 = vadd.f32 %v1823, %v2488
        %2493 = vmatprep.subr.mxu0 0.0
        %2494 = vmatpush1.msra.mxu0 %v2489
        %2495 = vmatprep.subr.mxu0 0.0
        %2496 = vmatpush1.msra.mxu0 %v2490
        %2497 = vmatprep.subr.mxu0 0.0
        %2498 = vmatpush1.msra.mxu0 %v2491
        %2499 = vmatprep.subr.mxu0 0.0
        %2500 = vmatpush1.msra.mxu0 %v2492
        %2501 = vmatprep.subr.mxu0 0.0
        %2502 = vmatpush1.msra.mxu0 0.0
        %2503 = vmatprep.subr.mxu0 0.0
        %2504 = vmatpush1.msra.mxu0 0.0
        %2505 = vmatprep.subr.mxu0 0.0
        %2506 = vmatpush1.msra.mxu0 0.0
        %2507 = vmatprep.subr.mxu0 0.0
        %2508 = vmatpush1.msra.mxu0 0.0
        %2509 = vmatprep.subr.mxu0 0.0
        %2510 = vmatpush1.msra.mxu0 0.0
        %2511 = vmatprep.subr.mxu0 0.0
        %2512 = vmatpush1.msra.mxu0 0.0
        %2513 = vmatprep.subr.mxu0 0.0
        %2514 = vmatpush1.msra.mxu0 0.0
        %2515 = vmatprep.subr.mxu0 0.0
        %2516 = vmatpush1.msra.mxu0 0.0
        %2517 = vmatprep.subr.mxu0 0.0
        %2518 = vmatpush1.msra.mxu0 0.0
        %2519 = vmatprep.subr.mxu0 0.0
        %2520 = vmatpush1.msra.mxu0 0.0
        %2521 = vmatprep.subr.mxu0 0.0
        %2522 = vmatpush1.msra.mxu0 0.0
        %2523 = vmatprep.subr.mxu0 0.0
        %2524 = vmatpush1.msra.mxu0 0.0
        %2525 = vmatprep.subr.mxu0 0.0
        %2526 = vmatpush1.msra.mxu0 0.0
        %2527 = vmatprep.subr.mxu0 0.0
        %2528 = vmatpush1.msra.mxu0 0.0
        %2529 = vmatprep.subr.mxu0 0.0
        %2530 = vmatpush1.msra.mxu0 0.0
        %2531 = vmatprep.subr.mxu0 0.0
        %2532 = vmatpush1.msra.mxu0 0.0
        %2533 = vmatprep.subr.mxu0 0.0
        %2534 = vmatpush1.msra.mxu0 0.0
        %2535 = vmatprep.subr.mxu0 0.0
        %2536 = vmatpush1.msra.mxu0 0.0
        %2537 = vmatprep.subr.mxu0 0.0
        %2538 = vmatpush1.msra.mxu0 0.0
        %2539 = vmatprep.subr.mxu0 0.0
        %2540 = vmatpush1.msra.mxu0 0.0
        %2541 = vmatprep.subr.mxu0 0.0
        %2542 = vmatpush1.msra.mxu0 0.0
        %2543 = vmatprep.subr.mxu0 0.0
        %2544 = vmatpush1.msra.mxu0 0.0
        %2545 = vmatprep.subr.mxu0 0.0
        %2546 = vmatpush1.msra.mxu0 0.0
        %2547 = vmatprep.subr.mxu0 0.0
        %2548 = vmatpush1.msra.mxu0 0.0
        %2549 = vmatprep.subr.mxu0 0.0
        %2550 = vmatpush1.msra.mxu0 0.0
        %2551 = vmatprep.subr.mxu0 0.0
        %2552 = vmatpush1.msra.mxu0 0.0
        %2553 = vmatprep.subr.mxu0 0.0
        %2554 = vmatpush1.msra.mxu0 0.0
        %2555 = vmatprep.subr.mxu0 0.0
        %2556 = vmatpush1.msra.mxu0 0.0
        %2557 = vmatprep.mubr.f32.mxu0 0.0
        %2558 = vmatmul.mubr.f32.gmra.mrb[0].mxu0 %v2276
        %v2559 = vpop.f32.mrb[0].mxu0
        %v2560 = vadd.f32 %v2258, %v2559
        %v2561 = vpop.f32.mrb[0].mxu0
        %2562 = vmatprep.mubr.f32.mxu0 0.0
        %2563 = vmatmul.mubr.f32.gmra.mrb[0].mxu0 %v2279
        %v2564 = vpop.f32.mrb[0].mxu0
        %v2565 = vadd.f32 %v2263, %v2564
        %v2566 = vpop.f32.mrb[0].mxu0
        %2567 = vmatprep.mubr.f32.mxu0 0.0
        %2568 = vmatmul.mubr.f32.gmra.mrb[0].mxu0 %v2282
        %v2569 = vpop.f32.mrb[0].mxu0
        %v2570 = vadd.f32 %v2268, %v2569
        %v2571 = vpop.f32.mrb[0].mxu0
        %2572 = vmatprep.mubr.f32.mxu0 0.0
        %2573 = vmatmul.mubr.f32.gmra.mrb[0].mxu0 %v2285
        %v2574 = vpop.f32.mrb[0].mxu0
        %v2575 = vadd.f32 %v2273, %v2574
        %v2576 = vpop.f32.mrb[0].mxu0
        %2577 = vdwg.mxu0
        %v2578 = vtanh.pop %v2560
        %v2579 = vtanh.pop %v2565
        %v2580 = vtanh.pop %v2570
        %v2581 = vtanh.pop %v2575
        %v2582 = vmul.f32 %v2578, 0.016666668
        %v2583 = vmul.f32 %v2579, 0.016666668
        %v2584 = vmul.f32 %v2580, 0.016666668
        %v2585 = vmul.f32 %v2581, 0.016666668
        %v2586 = vadd.f32 %v2481, %v2582
        %v2587 = vadd.f32 %v2482, %v2583
        %v2588 = vadd.f32 %v2483, %v2584
        %v2589 = vadd.f32 %v2484, %v2585
        %v2590 = vmul.f32 %v2578, 0.05
        %v2591 = vmul.f32 %v2579, 0.05
        %v2592 = vmul.f32 %v2580, 0.05
        %v2593 = vmul.f32 %v2581, 0.05
        %v2594 = vadd.f32 %v1820, %v2590
        %v2595 = vadd.f32 %v1821, %v2591
        %v2596 = vadd.f32 %v1822, %v2592
        %v2597 = vadd.f32 %v1823, %v2593
        %2598 = vmatprep.subr.mxu0 0.0
        %2599 = vmatpush1.msra.mxu0 %v2594
        %2600 = vmatprep.subr.mxu0 0.0
        %2601 = vmatpush1.msra.mxu0 %v2595
        %2602 = vmatprep.subr.mxu0 0.0
        %2603 = vmatpush1.msra.mxu0 %v2596
        %2604 = vmatprep.subr.mxu0 0.0
        %2605 = vmatpush1.msra.mxu0 %v2597
        %2606 = vmatprep.subr.mxu0 0.0
        %2607 = vmatpush1.msra.mxu0 0.0
        %2608 = vmatprep.subr.mxu0 0.0
        %2609 = vmatpush1.msra.mxu0 0.0
        %2610 = vmatprep.subr.mxu0 0.0
        %2611 = vmatpush1.msra.mxu0 0.0
        %2612 = vmatprep.subr.mxu0 0.0
        %2613 = vmatpush1.msra.mxu0 0.0
        %2614 = vmatprep.subr.mxu0 0.0
        %2615 = vmatpush1.msra.mxu0 0.0
        %2616 = vmatprep.subr.mxu0 0.0
        %2617 = vmatpush1.msra.mxu0 0.0
        %2618 = vmatprep.subr.mxu0 0.0
        %2619 = vmatpush1.msra.mxu0 0.0
        %2620 = vmatprep.subr.mxu0 0.0
        %2621 = vmatpush1.msra.mxu0 0.0
        %2622 = vmatprep.subr.mxu0 0.0
        %2623 = vmatpush1.msra.mxu0 0.0
        %2624 = vmatprep.subr.mxu0 0.0
        %2625 = vmatpush1.msra.mxu0 0.0
        %2626 = vmatprep.subr.mxu0 0.0
        %2627 = vmatpush1.msra.mxu0 0.0
        %2628 = vmatprep.subr.mxu0 0.0
        %2629 = vmatpush1.msra.mxu0 0.0
        %2630 = vmatprep.subr.mxu0 0.0
        %2631 = vmatpush1.msra.mxu0 0.0
        %2632 = vmatprep.subr.mxu0 0.0
        %2633 = vmatpush1.msra.mxu0 0.0
        %2634 = vmatprep.subr.mxu0 0.0
        %2635 = vmatpush1.msra.mxu0 0.0
        %2636 = vmatprep.subr.mxu0 0.0
        %2637 = vmatpush1.msra.mxu0 0.0
        %2638 = vmatprep.subr.mxu0 0.0
        %2639 = vmatpush1.msra.mxu0 0.0
        %2640 = vmatprep.subr.mxu0 0.0
        %2641 = vmatpush1.msra.mxu0 0.0
        %2642 = vmatprep.subr.mxu0 0.0
        %2643 = vmatpush1.msra.mxu0 0.0
        %2644 = vmatprep.subr.mxu0 0.0
        %2645 = vmatpush1.msra.mxu0 0.0
        %2646 = vmatprep.subr.mxu0 0.0
        %2647 = vmatpush1.msra.mxu0 0.0
        %2648 = vmatprep.subr.mxu0 0.0
        %2649 = vmatpush1.msra.mxu0 0.0
        %2650 = vmatprep.subr.mxu0 0.0
        %2651 = vmatpush1.msra.mxu0 0.0
        %2652 = vmatprep.subr.mxu0 0.0
        %2653 = vmatpush1.msra.mxu0 0.0
        %2654 = vmatprep.subr.mxu0 0.0
        %2655 = vmatpush1.msra.mxu0 0.0
        %2656 = vmatprep.subr.mxu0 0.0
        %2657 = vmatpush1.msra.mxu0 0.0
        %2658 = vmatprep.subr.mxu0 0.0
        %2659 = vmatpush1.msra.mxu0 0.0
        %2660 = vmatprep.subr.mxu0 0.0
        %2661 = vmatpush1.msra.mxu0 0.0
        %2662 = vmatprep.mubr.f32.mxu0 0.0
        %2663 = vmatmul.mubr.f32.gmra.mrb[0].mxu0 %v2276
        %v2664 = vpop.f32.mrb[0].mxu0
        %v2665 = vadd.f32 %v2258, %v2664
        %v2666 = vpop.f32.mrb[0].mxu0
        %2667 = vmatprep.mubr.f32.mxu0 0.0
        %2668 = vmatmul.mubr.f32.gmra.mrb[0].mxu0 %v2279
        %v2669 = vpop.f32.mrb[0].mxu0
        %v2670 = vadd.f32 %v2263, %v2669
        %v2671 = vpop.f32.mrb[0].mxu0
        %2672 = vmatprep.mubr.f32.mxu0 0.0
        %2673 = vmatmul.mubr.f32.gmra.mrb[0].mxu0 %v2282
        %v2674 = vpop.f32.mrb[0].mxu0
        %v2675 = vadd.f32 %v2268, %v2674
        %v2676 = vpop.f32.mrb[0].mxu0
        %2677 = vmatprep.mubr.f32.mxu0 0.0
        %2678 = vmatmul.mubr.f32.gmra.mrb[0].mxu0 %v2285
        %v2679 = vpop.f32.mrb[0].mxu0
        %v2680 = vadd.f32 %v2273, %v2679
        %v2681 = vpop.f32.mrb[0].mxu0
        %2682 = vdwg.mxu0
        %v2683 = vtanh.pop %v2665
        %v2684 = vtanh.pop %v2670
        %v2685 = vtanh.pop %v2675
        %v2686 = vtanh.pop %v2680
        %v2687 = vadd.f32 %v1820, %v2586
        %v2688 = vadd.f32 %v1821, %v2587
        %v2689 = vadd.f32 %v1822, %v2588
        %v2690 = vadd.f32 %v1823, %v2589
        %v2691 = vmul.f32 %v2683, 0.008333334
        %v2692 = vmul.f32 %v2684, 0.008333334
        %v2693 = vmul.f32 %v2685, 0.008333334
        %v2694 = vmul.f32 %v2686, 0.008333334
        %v2695 = vadd.f32 %v2687, %v2691
        %v2696 = vadd.f32 %v2688, %v2692
        %v2697 = vadd.f32 %v2689, %v2693
        %v2698 = vadd.f32 %v2690, %v2694
        %s2699 = scalar_lea.vmem %s283, 192 [#allocation4]
        %2700 = vst [vmem:[%s2699] sm:$0xff] %v2695
        %2701 = vst [vmem:[%s2699 + $0x10] sm:$0xff] %v2696
        %2702 = vst [vmem:[%s2699 + $0x20] sm:$0xff] %v2697
        %2703 = vst [vmem:[%s2699 + $0x30] sm:$0xff] %v2698
        %2704 = vmatprep.subr.mxu0 0.0
        %2705 = vmatpush1.msra.mxu0 %v2237
        %2706 = vmatprep.subr.mxu0 0.0
        %2707 = vmatpush1.msra.mxu0 %v2238
        %2708 = vmatprep.subr.mxu0 0.0
        %2709 = vmatpush1.msra.mxu0 %v2239
        %2710 = vmatprep.subr.mxu0 0.0
        %2711 = vmatpush1.msra.mxu0 %v2240
        %2712 = vmatprep.subr.mxu0 0.0
        %2713 = vmatpush1.msra.mxu0 0.0
        %2714 = vmatprep.subr.mxu0 0.0
        %2715 = vmatpush1.msra.mxu0 0.0
        %2716 = vmatprep.subr.mxu0 0.0
        %2717 = vmatpush1.msra.mxu0 0.0
        %2718 = vmatprep.subr.mxu0 0.0
        %2719 = vmatpush1.msra.mxu0 0.0
        %2720 = vmatprep.subr.mxu0 0.0
        %2721 = vmatpush1.msra.mxu0 0.0
        %2722 = vmatprep.subr.mxu0 0.0
        %2723 = vmatpush1.msra.mxu0 0.0
        %2724 = vmatprep.subr.mxu0 0.0
        %2725 = vmatpush1.msra.mxu0 0.0
        %2726 = vmatprep.subr.mxu0 0.0
        %2727 = vmatpush1.msra.mxu0 0.0
        %2728 = vmatprep.subr.mxu0 0.0
        %2729 = vmatpush1.msra.mxu0 0.0
        %2730 = vmatprep.subr.mxu0 0.0
        %2731 = vmatpush1.msra.mxu0 0.0
        %2732 = vmatprep.subr.mxu0 0.0
        %2733 = vmatpush1.msra.mxu0 0.0
        %2734 = vmatprep.subr.mxu0 0.0
        %2735 = vmatpush1.msra.mxu0 0.0
        %2736 = vmatprep.subr.mxu0 0.0
        %2737 = vmatpush1.msra.mxu0 0.0
        %2738 = vmatprep.subr.mxu0 0.0
        %2739 = vmatpush1.msra.mxu0 0.0
        %2740 = vmatprep.subr.mxu0 0.0
        %2741 = vmatpush1.msra.mxu0 0.0
        %2742 = vmatprep.subr.mxu0 0.0
        %2743 = vmatpush1.msra.mxu0 0.0
        %2744 = vmatprep.subr.mxu0 0.0
        %2745 = vmatpush1.msra.mxu0 0.0
        %2746 = vmatprep.subr.mxu0 0.0
        %2747 = vmatpush1.msra.mxu0 0.0
        %2748 = vmatprep.subr.mxu0 0.0
        %2749 = vmatpush1.msra.mxu0 0.0
        %2750 = vmatprep.subr.mxu0 0.0
        %2751 = vmatpush1.msra.mxu0 0.0
        %2752 = vmatprep.subr.mxu0 0.0
        %2753 = vmatpush1.msra.mxu0 0.0
        %2754 = vmatprep.subr.mxu0 0.0
        %2755 = vmatpush1.msra.mxu0 0.0
        %2756 = vmatprep.subr.mxu0 0.0
        %2757 = vmatpush1.msra.mxu0 0.0
        %2758 = vmatprep.subr.mxu0 0.0
        %2759 = vmatpush1.msra.mxu0 0.0
        %2760 = vmatprep.subr.mxu0 0.0
        %2761 = vmatpush1.msra.mxu0 0.0
        %2762 = vmatprep.subr.mxu0 0.0
        %2763 = vmatpush1.msra.mxu0 0.0
        %2764 = vmatprep.subr.mxu0 0.0
        %2765 = vmatpush1.msra.mxu0 0.0
        %2766 = vmatprep.subr.mxu0 0.0
        %2767 = vmatpush1.msra.mxu0 0.0
        %2768 = vmatprep.mubr.f32.mxu0 0.0
        %2769 = vmatmul.mubr.f32.gmra.mrb[0].mxu0 %v2276
        %v2770 = vpop.f32.mrb[0].mxu0
        %v2771 = vadd.f32 %v2258, %v2770
        %v2772 = vpop.f32.mrb[0].mxu0
        %2773 = vmatprep.mubr.f32.mxu0 0.0
        %2774 = vmatmul.mubr.f32.gmra.mrb[0].mxu0 %v2279
        %v2775 = vpop.f32.mrb[0].mxu0
        %v2776 = vadd.f32 %v2263, %v2775
        %v2777 = vpop.f32.mrb[0].mxu0
        %2778 = vmatprep.mubr.f32.mxu0 0.0
        %2779 = vmatmul.mubr.f32.gmra.mrb[0].mxu0 %v2282
        %v2780 = vpop.f32.mrb[0].mxu0
        %v2781 = vadd.f32 %v2268, %v2780
        %v2782 = vpop.f32.mrb[0].mxu0
        %2783 = vmatprep.mubr.f32.mxu0 0.0
        %2784 = vmatmul.mubr.f32.gmra.mrb[0].mxu0 %v2285
        %v2785 = vpop.f32.mrb[0].mxu0
        %v2786 = vadd.f32 %v2273, %v2785
        %v2787 = vpop.f32.mrb[0].mxu0
        %2788 = vdwg.mxu0
        %v2789 = vtanh.pop %v2771
        %v2790 = vtanh.pop %v2776
        %v2791 = vtanh.pop %v2781
        %v2792 = vtanh.pop %v2786
        %v2793 = vmul.f32 %v2789, 0.008333334
        %v2794 = vmul.f32 %v2790, 0.008333334
        %v2795 = vmul.f32 %v2791, 0.008333334
        %v2796 = vmul.f32 %v2792, 0.008333334
        %v2797 = vmul.f32 %v2789, 0.025
        %v2798 = vmul.f32 %v2790, 0.025
        %v2799 = vmul.f32 %v2791, 0.025
        %v2800 = vmul.f32 %v2792, 0.025
        %v2801 = vadd.f32 %v2237, %v2797
        %v2802 = vadd.f32 %v2238, %v2798
        %v2803 = vadd.f32 %v2239, %v2799
        %v2804 = vadd.f32 %v2240, %v2800
        %2805 = vmatprep.subr.mxu0 0.0
        %2806 = vmatpush1.msra.mxu0 %v2801
        %2807 = vmatprep.subr.mxu0 0.0
        %2808 = vmatpush1.msra.mxu0 %v2802
        %2809 = vmatprep.subr.mxu0 0.0
        %2810 = vmatpush1.msra.mxu0 %v2803
        %2811 = vmatprep.subr.mxu0 0.0
        %2812 = vmatpush1.msra.mxu0 %v2804
        %2813 = vmatprep.subr.mxu0 0.0
        %2814 = vmatpush1.msra.mxu0 0.0
        %2815 = vmatprep.subr.mxu0 0.0
        %2816 = vmatpush1.msra.mxu0 0.0
        %2817 = vmatprep.subr.mxu0 0.0
        %2818 = vmatpush1.msra.mxu0 0.0
        %2819 = vmatprep.subr.mxu0 0.0
        %2820 = vmatpush1.msra.mxu0 0.0
        %2821 = vmatprep.subr.mxu0 0.0
        %2822 = vmatpush1.msra.mxu0 0.0
        %2823 = vmatprep.subr.mxu0 0.0
        %2824 = vmatpush1.msra.mxu0 0.0
        %2825 = vmatprep.subr.mxu0 0.0
        %2826 = vmatpush1.msra.mxu0 0.0
        %2827 = vmatprep.subr.mxu0 0.0
        %2828 = vmatpush1.msra.mxu0 0.0
        %2829 = vmatprep.subr.mxu0 0.0
        %2830 = vmatpush1.msra.mxu0 0.0
        %2831 = vmatprep.subr.mxu0 0.0
        %2832 = vmatpush1.msra.mxu0 0.0
        %2833 = vmatprep.subr.mxu0 0.0
        %2834 = vmatpush1.msra.mxu0 0.0
        %2835 = vmatprep.subr.mxu0 0.0
        %2836 = vmatpush1.msra.mxu0 0.0
        %2837 = vmatprep.subr.mxu0 0.0
        %2838 = vmatpush1.msra.mxu0 0.0
        %2839 = vmatprep.subr.mxu0 0.0
        %2840 = vmatpush1.msra.mxu0 0.0
        %2841 = vmatprep.subr.mxu0 0.0
        %2842 = vmatpush1.msra.mxu0 0.0
        %2843 = vmatprep.subr.mxu0 0.0
        %2844 = vmatpush1.msra.mxu0 0.0
        %2845 = vmatprep.subr.mxu0 0.0
        %2846 = vmatpush1.msra.mxu0 0.0
        %2847 = vmatprep.subr.mxu0 0.0
        %2848 = vmatpush1.msra.mxu0 0.0
        %2849 = vmatprep.subr.mxu0 0.0
        %2850 = vmatpush1.msra.mxu0 0.0
        %2851 = vmatprep.subr.mxu0 0.0
        %2852 = vmatpush1.msra.mxu0 0.0
        %2853 = vmatprep.subr.mxu0 0.0
        %2854 = vmatpush1.msra.mxu0 0.0
        %2855 = vmatprep.subr.mxu0 0.0
        %2856 = vmatpush1.msra.mxu0 0.0
        %2857 = vmatprep.subr.mxu0 0.0
        %2858 = vmatpush1.msra.mxu0 0.0
        %2859 = vmatprep.subr.mxu0 0.0
        %2860 = vmatpush1.msra.mxu0 0.0
        %2861 = vmatprep.subr.mxu0 0.0
        %2862 = vmatpush1.msra.mxu0 0.0
        %2863 = vmatprep.subr.mxu0 0.0
        %2864 = vmatpush1.msra.mxu0 0.0
        %2865 = vmatprep.subr.mxu0 0.0
        %2866 = vmatpush1.msra.mxu0 0.0
        %2867 = vmatprep.subr.mxu0 0.0
        %2868 = vmatpush1.msra.mxu0 0.0
        %2869 = vmatprep.mubr.f32.mxu0 0.0
        %2870 = vmatmul.mubr.f32.gmra.mrb[0].mxu0 %v2276
        %v2871 = vpop.f32.mrb[0].mxu0
        %v2872 = vadd.f32 %v2258, %v2871
        %v2873 = vpop.f32.mrb[0].mxu0
        %2874 = vmatprep.mubr.f32.mxu0 0.0
        %2875 = vmatmul.mubr.f32.gmra.mrb[0].mxu0 %v2279
        %v2876 = vpop.f32.mrb[0].mxu0
        %v2877 = vadd.f32 %v2263, %v2876
        %v2878 = vpop.f32.mrb[0].mxu0
        %2879 = vmatprep.mubr.f32.mxu0 0.0
        %2880 = vmatmul.mubr.f32.gmra.mrb[0].mxu0 %v2282
        %v2881 = vpop.f32.mrb[0].mxu0
        %v2882 = vadd.f32 %v2268, %v2881
        %v2883 = vpop.f32.mrb[0].mxu0
        %2884 = vmatprep.mubr.f32.mxu0 0.0
        %2885 = vmatmul.mubr.f32.gmra.mrb[0].mxu0 %v2285
        %v2886 = vpop.f32.mrb[0].mxu0
        %v2887 = vadd.f32 %v2273, %v2886
        %v2888 = vpop.f32.mrb[0].mxu0
        %2889 = vdwg.mxu0
        %v2890 = vtanh.pop %v2872
        %v2891 = vtanh.pop %v2877
        %v2892 = vtanh.pop %v2882
        %v2893 = vtanh.pop %v2887
        %v2894 = vmul.f32 %v2890, 0.016666668
        %v2895 = vmul.f32 %v2891, 0.016666668
        %v2896 = vmul.f32 %v2892, 0.016666668
        %v2897 = vmul.f32 %v2893, 0.016666668
        %v2898 = vadd.f32 %v2793, %v2894
        %v2899 = vadd.f32 %v2794, %v2895
        %v2900 = vadd.f32 %v2795, %v2896
        %v2901 = vadd.f32 %v2796, %v2897
        %v2902 = vmul.f32 %v2890, 0.025
        %v2903 = vmul.f32 %v2891, 0.025
        %v2904 = vmul.f32 %v2892, 0.025
        %v2905 = vmul.f32 %v2893, 0.025
        %v2906 = vadd.f32 %v2237, %v2902
        %v2907 = vadd.f32 %v2238, %v2903
        %v2908 = vadd.f32 %v2239, %v2904
        %v2909 = vadd.f32 %v2240, %v2905
        %2910 = vmatprep.subr.mxu0 0.0
        %2911 = vmatpush1.msra.mxu0 %v2906
        %2912 = vmatprep.subr.mxu0 0.0
        %2913 = vmatpush1.msra.mxu0 %v2907
        %2914 = vmatprep.subr.mxu0 0.0
        %2915 = vmatpush1.msra.mxu0 %v2908
        %2916 = vmatprep.subr.mxu0 0.0
        %2917 = vmatpush1.msra.mxu0 %v2909
        %2918 = vmatprep.subr.mxu0 0.0
        %2919 = vmatpush1.msra.mxu0 0.0
        %2920 = vmatprep.subr.mxu0 0.0
        %2921 = vmatpush1.msra.mxu0 0.0
        %2922 = vmatprep.subr.mxu0 0.0
        %2923 = vmatpush1.msra.mxu0 0.0
        %2924 = vmatprep.subr.mxu0 0.0
        %2925 = vmatpush1.msra.mxu0 0.0
        %2926 = vmatprep.subr.mxu0 0.0
        %2927 = vmatpush1.msra.mxu0 0.0
        %2928 = vmatprep.subr.mxu0 0.0
        %2929 = vmatpush1.msra.mxu0 0.0
        %2930 = vmatprep.subr.mxu0 0.0
        %2931 = vmatpush1.msra.mxu0 0.0
        %2932 = vmatprep.subr.mxu0 0.0
        %2933 = vmatpush1.msra.mxu0 0.0
        %2934 = vmatprep.subr.mxu0 0.0
        %2935 = vmatpush1.msra.mxu0 0.0
        %2936 = vmatprep.subr.mxu0 0.0
        %2937 = vmatpush1.msra.mxu0 0.0
        %2938 = vmatprep.subr.mxu0 0.0
        %2939 = vmatpush1.msra.mxu0 0.0
        %2940 = vmatprep.subr.mxu0 0.0
        %2941 = vmatpush1.msra.mxu0 0.0
        %2942 = vmatprep.subr.mxu0 0.0
        %2943 = vmatpush1.msra.mxu0 0.0
        %2944 = vmatprep.subr.mxu0 0.0
        %2945 = vmatpush1.msra.mxu0 0.0
        %2946 = vmatprep.subr.mxu0 0.0
        %2947 = vmatpush1.msra.mxu0 0.0
        %2948 = vmatprep.subr.mxu0 0.0
        %2949 = vmatpush1.msra.mxu0 0.0
        %2950 = vmatprep.subr.mxu0 0.0
        %2951 = vmatpush1.msra.mxu0 0.0
        %2952 = vmatprep.subr.mxu0 0.0
        %2953 = vmatpush1.msra.mxu0 0.0
        %2954 = vmatprep.subr.mxu0 0.0
        %2955 = vmatpush1.msra.mxu0 0.0
        %2956 = vmatprep.subr.mxu0 0.0
        %2957 = vmatpush1.msra.mxu0 0.0
        %2958 = vmatprep.subr.mxu0 0.0
        %2959 = vmatpush1.msra.mxu0 0.0
        %2960 = vmatprep.subr.mxu0 0.0
        %2961 = vmatpush1.msra.mxu0 0.0
        %2962 = vmatprep.subr.mxu0 0.0
        %2963 = vmatpush1.msra.mxu0 0.0
        %2964 = vmatprep.subr.mxu0 0.0
        %2965 = vmatpush1.msra.mxu0 0.0
        %2966 = vmatprep.subr.mxu0 0.0
        %2967 = vmatpush1.msra.mxu0 0.0
        %2968 = vmatprep.subr.mxu0 0.0
        %2969 = vmatpush1.msra.mxu0 0.0
        %2970 = vmatprep.subr.mxu0 0.0
        %2971 = vmatpush1.msra.mxu0 0.0
        %2972 = vmatprep.subr.mxu0 0.0
        %2973 = vmatpush1.msra.mxu0 0.0
        %2974 = vmatprep.mubr.f32.mxu0 0.0
        %2975 = vmatmul.mubr.f32.gmra.mrb[0].mxu0 %v2276
        %v2976 = vpop.f32.mrb[0].mxu0
        %v2977 = vadd.f32 %v2258, %v2976
        %v2978 = vpop.f32.mrb[0].mxu0
        %2979 = vmatprep.mubr.f32.mxu0 0.0
        %2980 = vmatmul.mubr.f32.gmra.mrb[0].mxu0 %v2279
        %v2981 = vpop.f32.mrb[0].mxu0
        %v2982 = vadd.f32 %v2263, %v2981
        %v2983 = vpop.f32.mrb[0].mxu0
        %2984 = vmatprep.mubr.f32.mxu0 0.0
        %2985 = vmatmul.mubr.f32.gmra.mrb[0].mxu0 %v2282
        %v2986 = vpop.f32.mrb[0].mxu0
        %v2987 = vadd.f32 %v2268, %v2986
        %v2988 = vpop.f32.mrb[0].mxu0
        %2989 = vmatprep.mubr.f32.mxu0 0.0
        %2990 = vmatmul.mubr.f32.gmra.mrb[0].mxu0 %v2285
        %v2991 = vpop.f32.mrb[0].mxu0
        %v2992 = vadd.f32 %v2273, %v2991
        %v2993 = vpop.f32.mrb[0].mxu0
        %2994 = vdwg.mxu0
        %v2995 = vtanh.pop %v2977
        %v2996 = vtanh.pop %v2982
        %v2997 = vtanh.pop %v2987
        %v2998 = vtanh.pop %v2992
        %v2999 = vmul.f32 %v2995, 0.016666668
        %v3000 = vmul.f32 %v2996, 0.016666668
        %v3001 = vmul.f32 %v2997, 0.016666668
        %v3002 = vmul.f32 %v2998, 0.016666668
        %v3003 = vadd.f32 %v2898, %v2999
        %v3004 = vadd.f32 %v2899, %v3000
        %v3005 = vadd.f32 %v2900, %v3001
        %v3006 = vadd.f32 %v2901, %v3002
        %v3007 = vmul.f32 %v2995, 0.05
        %v3008 = vmul.f32 %v2996, 0.05
        %v3009 = vmul.f32 %v2997, 0.05
        %v3010 = vmul.f32 %v2998, 0.05
        %v3011 = vadd.f32 %v2237, %v3007
        %v3012 = vadd.f32 %v2238, %v3008
        %v3013 = vadd.f32 %v2239, %v3009
        %v3014 = vadd.f32 %v2240, %v3010
        %3015 = vmatprep.subr.mxu0 0.0
        %3016 = vmatpush1.msra.mxu0 %v3011
        %3017 = vmatprep.subr.mxu0 0.0
        %3018 = vmatpush1.msra.mxu0 %v3012
        %3019 = vmatprep.subr.mxu0 0.0
        %3020 = vmatpush1.msra.mxu0 %v3013
        %3021 = vmatprep.subr.mxu0 0.0
        %3022 = vmatpush1.msra.mxu0 %v3014
        %3023 = vmatprep.subr.mxu0 0.0
        %3024 = vmatpush1.msra.mxu0 0.0
        %3025 = vmatprep.subr.mxu0 0.0
        %3026 = vmatpush1.msra.mxu0 0.0
        %3027 = vmatprep.subr.mxu0 0.0
        %3028 = vmatpush1.msra.mxu0 0.0
        %3029 = vmatprep.subr.mxu0 0.0
        %3030 = vmatpush1.msra.mxu0 0.0
        %3031 = vmatprep.subr.mxu0 0.0
        %3032 = vmatpush1.msra.mxu0 0.0
        %3033 = vmatprep.subr.mxu0 0.0
        %3034 = vmatpush1.msra.mxu0 0.0
        %3035 = vmatprep.subr.mxu0 0.0
        %3036 = vmatpush1.msra.mxu0 0.0
        %3037 = vmatprep.subr.mxu0 0.0
        %3038 = vmatpush1.msra.mxu0 0.0
        %3039 = vmatprep.subr.mxu0 0.0
        %3040 = vmatpush1.msra.mxu0 0.0
        %3041 = vmatprep.subr.mxu0 0.0
        %3042 = vmatpush1.msra.mxu0 0.0
        %3043 = vmatprep.subr.mxu0 0.0
        %3044 = vmatpush1.msra.mxu0 0.0
        %3045 = vmatprep.subr.mxu0 0.0
        %3046 = vmatpush1.msra.mxu0 0.0
        %3047 = vmatprep.subr.mxu0 0.0
        %3048 = vmatpush1.msra.mxu0 0.0
        %3049 = vmatprep.subr.mxu0 0.0
        %3050 = vmatpush1.msra.mxu0 0.0
        %3051 = vmatprep.subr.mxu0 0.0
        %3052 = vmatpush1.msra.mxu0 0.0
        %3053 = vmatprep.subr.mxu0 0.0
        %3054 = vmatpush1.msra.mxu0 0.0
        %3055 = vmatprep.subr.mxu0 0.0
        %3056 = vmatpush1.msra.mxu0 0.0
        %3057 = vmatprep.subr.mxu0 0.0
        %3058 = vmatpush1.msra.mxu0 0.0
        %3059 = vmatprep.subr.mxu0 0.0
        %3060 = vmatpush1.msra.mxu0 0.0
        %3061 = vmatprep.subr.mxu0 0.0
        %3062 = vmatpush1.msra.mxu0 0.0
        %3063 = vmatprep.subr.mxu0 0.0
        %3064 = vmatpush1.msra.mxu0 0.0
        %3065 = vmatprep.subr.mxu0 0.0
        %3066 = vmatpush1.msra.mxu0 0.0
        %3067 = vmatprep.subr.mxu0 0.0
        %3068 = vmatpush1.msra.mxu0 0.0
        %3069 = vmatprep.subr.mxu0 0.0
        %3070 = vmatpush1.msra.mxu0 0.0
        %3071 = vmatprep.subr.mxu0 0.0
        %3072 = vmatpush1.msra.mxu0 0.0
        %3073 = vmatprep.subr.mxu0 0.0
        %3074 = vmatpush1.msra.mxu0 0.0
        %3075 = vmatprep.subr.mxu0 0.0
        %3076 = vmatpush1.msra.mxu0 0.0
        %3077 = vmatprep.subr.mxu0 0.0
        %3078 = vmatpush1.msra.mxu0 0.0
        %3079 = vmatprep.mubr.f32.mxu0 0.0
        %3080 = vmatmul.mubr.f32.gmra.mrb[0].mxu0 %v2276
        %v3081 = vpop.f32.mrb[0].mxu0
        %v3082 = vadd.f32 %v2258, %v3081
        %v3083 = vpop.f32.mrb[0].mxu0
        %3084 = vmatprep.mubr.f32.mxu0 0.0
        %3085 = vmatmul.mubr.f32.gmra.mrb[0].mxu0 %v2279
        %v3086 = vpop.f32.mrb[0].mxu0
        %v3087 = vadd.f32 %v2263, %v3086
        %v3088 = vpop.f32.mrb[0].mxu0
        %3089 = vmatprep.mubr.f32.mxu0 0.0
        %3090 = vmatmul.mubr.f32.gmra.mrb[0].mxu0 %v2282
        %v3091 = vpop.f32.mrb[0].mxu0
        %v3092 = vadd.f32 %v2268, %v3091
        %v3093 = vpop.f32.mrb[0].mxu0
        %3094 = vmatprep.mubr.f32.mxu0 0.0
        %3095 = vmatmul.mubr.f32.gmra.mrb[0].mxu0 %v2285
        %v3096 = vpop.f32.mrb[0].mxu0
        %v3097 = vadd.f32 %v2273, %v3096
        %v3098 = vpop.f32.mrb[0].mxu0
        %3099 = vdwg.mxu0
        %v3100 = vtanh.pop %v3082
        %v3101 = vtanh.pop %v3087
        %v3102 = vtanh.pop %v3092
        %v3103 = vtanh.pop %v3097
        %v3104 = vadd.f32 %v2237, %v3003
        %v3105 = vadd.f32 %v2238, %v3004
        %v3106 = vadd.f32 %v2239, %v3005
        %v3107 = vadd.f32 %v2240, %v3006
        %v3108 = vmul.f32 %v3100, 0.008333334
        %v3109 = vmul.f32 %v3101, 0.008333334
        %v3110 = vmul.f32 %v3102, 0.008333334
        %v3111 = vmul.f32 %v3103, 0.008333334
        %v3112 = vadd.f32 %v3104, %v3108
        %v3113 = vadd.f32 %v3105, %v3109
        %v3114 = vadd.f32 %v3106, %v3110
        %v3115 = vadd.f32 %v3107, %v3111
        %3116 = vst [vmem:[%s2699 + $0x8] sm:$0xff] %v3112
        %3117 = vst [vmem:[%s2699 + $0x18] sm:$0xff] %v3113
        %3118 = vst [vmem:[%s2699 + $0x28] sm:$0xff] %v3114
        %3119 = vst [vmem:[%s2699 + $0x38] sm:$0xff] %v3115
        %s3120 = scalar_lea.vmem %s2, 96
        %v3121 = vld [vmem:[%s3120] sm:$0xff]
        %v3122 = vld [vmem:[%s3120 + $0x8] sm:$0xff]
        %v3123 = vld [vmem:[%s3120 + $0x10] sm:$0xff]
        %v3124 = vld [vmem:[%s3120 + $0x18] sm:$0xff]
        %s3125 = scalar_lea.vmem %s3, 96
        %v3126 = vld [vmem:[%s3125] sm:$0xff]
        %v3127 = vld [vmem:[%s3125 + $0x8] sm:$0xff]
        %v3128 = vld [vmem:[%s3125 + $0x10] sm:$0xff]
        %v3129 = vld [vmem:[%s3125 + $0x18] sm:$0xff]
        %3131 = vset.pattern.permute.xlu0 0
        %3132 = vperm.xlu0 %3131, %v3126
        %v3133 = vpop.permute.xlu0 %3132
        %3136 = vset.pattern.permute.xlu0 0
        %3137 = vperm.xlu0 %3136, %v3127
        %v3138 = vpop.permute.xlu0 %3137
        %3141 = vset.pattern.permute.xlu0 0
        %3142 = vperm.xlu0 %3141, %v3128
        %v3143 = vpop.permute.xlu0 %3142
        %3146 = vset.pattern.permute.xlu0 0
        %3147 = vperm.xlu0 %3146, %v3129
        %v3148 = vpop.permute.xlu0 %3147
        %v3151 = vsel %vm524, %v3121, 0
        %v3154 = vsel %vm524, %v3122, 0
        %v3157 = vsel %vm524, %v3123, 0
        %v3160 = vsel %vm524, %v3124, 0
        %3162 = vmatprep.subr.mxu0 0.0
        %3163 = vmatpush1.msra.mxu0 %v2695
        %3164 = vmatprep.subr.mxu0 0.0
        %3165 = vmatpush1.msra.mxu0 %v2696
        %3166 = vmatprep.subr.mxu0 0.0
        %3167 = vmatpush1.msra.mxu0 %v2697
        %3168 = vmatprep.subr.mxu0 0.0
        %3169 = vmatpush1.msra.mxu0 %v2698
        %3170 = vmatprep.subr.mxu0 0.0
        %3171 = vmatpush1.msra.mxu0 0.0
        %3172 = vmatprep.subr.mxu0 0.0
        %3173 = vmatpush1.msra.mxu0 0.0
        %3174 = vmatprep.subr.mxu0 0.0
        %3175 = vmatpush1.msra.mxu0 0.0
        %3176 = vmatprep.subr.mxu0 0.0
        %3177 = vmatpush1.msra.mxu0 0.0
        %3178 = vmatprep.subr.mxu0 0.0
        %3179 = vmatpush1.msra.mxu0 0.0
        %3180 = vmatprep.subr.mxu0 0.0
        %3181 = vmatpush1.msra.mxu0 0.0
        %3182 = vmatprep.subr.mxu0 0.0
        %3183 = vmatpush1.msra.mxu0 0.0
        %3184 = vmatprep.subr.mxu0 0.0
        %3185 = vmatpush1.msra.mxu0 0.0
        %3186 = vmatprep.subr.mxu0 0.0
        %3187 = vmatpush1.msra.mxu0 0.0
        %3188 = vmatprep.subr.mxu0 0.0
        %3189 = vmatpush1.msra.mxu0 0.0
        %3190 = vmatprep.subr.mxu0 0.0
        %3191 = vmatpush1.msra.mxu0 0.0
        %3192 = vmatprep.subr.mxu0 0.0
        %3193 = vmatpush1.msra.mxu0 0.0
        %3194 = vmatprep.subr.mxu0 0.0
        %3195 = vmatpush1.msra.mxu0 0.0
        %3196 = vmatprep.subr.mxu0 0.0
        %3197 = vmatpush1.msra.mxu0 0.0
        %3198 = vmatprep.subr.mxu0 0.0
        %3199 = vmatpush1.msra.mxu0 0.0
        %3200 = vmatprep.subr.mxu0 0.0
        %3201 = vmatpush1.msra.mxu0 0.0
        %3202 = vmatprep.subr.mxu0 0.0
        %3203 = vmatpush1.msra.mxu0 0.0
        %3204 = vmatprep.subr.mxu0 0.0
        %3205 = vmatpush1.msra.mxu0 0.0
        %3206 = vmatprep.subr.mxu0 0.0
        %3207 = vmatpush1.msra.mxu0 0.0
        %3208 = vmatprep.subr.mxu0 0.0
        %3209 = vmatpush1.msra.mxu0 0.0
        %3210 = vmatprep.subr.mxu0 0.0
        %3211 = vmatpush1.msra.mxu0 0.0
        %3212 = vmatprep.subr.mxu0 0.0
        %3213 = vmatpush1.msra.mxu0 0.0
        %3214 = vmatprep.subr.mxu0 0.0
        %3215 = vmatpush1.msra.mxu0 0.0
        %3216 = vmatprep.subr.mxu0 0.0
        %3217 = vmatpush1.msra.mxu0 0.0
        %3218 = vmatprep.subr.mxu0 0.0
        %3219 = vmatpush1.msra.mxu0 0.0
        %3220 = vmatprep.subr.mxu0 0.0
        %3221 = vmatpush1.msra.mxu0 0.0
        %3222 = vmatprep.subr.mxu0 0.0
        %3223 = vmatpush1.msra.mxu0 0.0
        %3224 = vmatprep.subr.mxu0 0.0
        %3225 = vmatpush1.msra.mxu0 0.0
        %3226 = vmatprep.mubr.f32.mxu0 0.0
        %3227 = vmatmul.mubr.f32.gmra.mrb[0].mxu0 %v3151
        %v3228 = vpop.f32.mrb[0].mxu0
        %v3229 = vadd.f32 %v3133, %v3228
        %v3230 = vpop.f32.mrb[0].mxu0
        %3231 = vmatprep.mubr.f32.mxu0 0.0
        %3232 = vmatmul.mubr.f32.gmra.mrb[0].mxu0 %v3154
        %v3233 = vpop.f32.mrb[0].mxu0
        %v3234 = vadd.f32 %v3138, %v3233
        %v3235 = vpop.f32.mrb[0].mxu0
        %3236 = vmatprep.mubr.f32.mxu0 0.0
        %3237 = vmatmul.mubr.f32.gmra.mrb[0].mxu0 %v3157
        %v3238 = vpop.f32.mrb[0].mxu0
        %v3239 = vadd.f32 %v3143, %v3238
        %v3240 = vpop.f32.mrb[0].mxu0
        %3241 = vmatprep.mubr.f32.mxu0 0.0
        %3242 = vmatmul.mubr.f32.gmra.mrb[0].mxu0 %v3160
        %v3243 = vpop.f32.mrb[0].mxu0
        %v3244 = vadd.f32 %v3148, %v3243
        %v3245 = vpop.f32.mrb[0].mxu0
        %3246 = vdwg.mxu0
        %v3247 = vtanh.pop %v3229
        %v3248 = vtanh.pop %v3234
        %v3249 = vtanh.pop %v3239
        %v3250 = vtanh.pop %v3244
        %v3251 = vmul.f32 %v3247, 0.008333334
        %v3252 = vmul.f32 %v3248, 0.008333334
        %v3253 = vmul.f32 %v3249, 0.008333334
        %v3254 = vmul.f32 %v3250, 0.008333334
        %v3255 = vmul.f32 %v3247, 0.025
        %v3256 = vmul.f32 %v3248, 0.025
        %v3257 = vmul.f32 %v3249, 0.025
        %v3258 = vmul.f32 %v3250, 0.025
        %v3259 = vadd.f32 %v2695, %v3255
        %v3260 = vadd.f32 %v2696, %v3256
        %v3261 = vadd.f32 %v2697, %v3257
        %v3262 = vadd.f32 %v2698, %v3258
        %3263 = vmatprep.subr.mxu0 0.0
        %3264 = vmatpush1.msra.mxu0 %v3259
        %3265 = vmatprep.subr.mxu0 0.0
        %3266 = vmatpush1.msra.mxu0 %v3260
        %3267 = vmatprep.subr.mxu0 0.0
        %3268 = vmatpush1.msra.mxu0 %v3261
        %3269 = vmatprep.subr.mxu0 0.0
        %3270 = vmatpush1.msra.mxu0 %v3262
        %3271 = vmatprep.subr.mxu0 0.0
        %3272 = vmatpush1.msra.mxu0 0.0
        %3273 = vmatprep.subr.mxu0 0.0
        %3274 = vmatpush1.msra.mxu0 0.0
        %3275 = vmatprep.subr.mxu0 0.0
        %3276 = vmatpush1.msra.mxu0 0.0
        %3277 = vmatprep.subr.mxu0 0.0
        %3278 = vmatpush1.msra.mxu0 0.0
        %3279 = vmatprep.subr.mxu0 0.0
        %3280 = vmatpush1.msra.mxu0 0.0
        %3281 = vmatprep.subr.mxu0 0.0
        %3282 = vmatpush1.msra.mxu0 0.0
        %3283 = vmatprep.subr.mxu0 0.0
        %3284 = vmatpush1.msra.mxu0 0.0
        %3285 = vmatprep.subr.mxu0 0.0
        %3286 = vmatpush1.msra.mxu0 0.0
        %3287 = vmatprep.subr.mxu0 0.0
        %3288 = vmatpush1.msra.mxu0 0.0
        %3289 = vmatprep.subr.mxu0 0.0
        %3290 = vmatpush1.msra.mxu0 0.0
        %3291 = vmatprep.subr.mxu0 0.0
        %3292 = vmatpush1.msra.mxu0 0.0
        %3293 = vmatprep.subr.mxu0 0.0
        %3294 = vmatpush1.msra.mxu0 0.0
        %3295 = vmatprep.subr.mxu0 0.0
        %3296 = vmatpush1.msra.mxu0 0.0
        %3297 = vmatprep.subr.mxu0 0.0
        %3298 = vmatpush1.msra.mxu0 0.0
        %3299 = vmatprep.subr.mxu0 0.0
        %3300 = vmatpush1.msra.mxu0 0.0
        %3301 = vmatprep.subr.mxu0 0.0
        %3302 = vmatpush1.msra.mxu0 0.0
        %3303 = vmatprep.subr.mxu0 0.0
        %3304 = vmatpush1.msra.mxu0 0.0
        %3305 = vmatprep.subr.mxu0 0.0
        %3306 = vmatpush1.msra.mxu0 0.0
        %3307 = vmatprep.subr.mxu0 0.0
        %3308 = vmatpush1.msra.mxu0 0.0
        %3309 = vmatprep.subr.mxu0 0.0
        %3310 = vmatpush1.msra.mxu0 0.0
        %3311 = vmatprep.subr.mxu0 0.0
        %3312 = vmatpush1.msra.mxu0 0.0
        %3313 = vmatprep.subr.mxu0 0.0
        %3314 = vmatpush1.msra.mxu0 0.0
        %3315 = vmatprep.subr.mxu0 0.0
        %3316 = vmatpush1.msra.mxu0 0.0
        %3317 = vmatprep.subr.mxu0 0.0
        %3318 = vmatpush1.msra.mxu0 0.0
        %3319 = vmatprep.subr.mxu0 0.0
        %3320 = vmatpush1.msra.mxu0 0.0
        %3321 = vmatprep.subr.mxu0 0.0
        %3322 = vmatpush1.msra.mxu0 0.0
        %3323 = vmatprep.subr.mxu0 0.0
        %3324 = vmatpush1.msra.mxu0 0.0
        %3325 = vmatprep.subr.mxu0 0.0
        %3326 = vmatpush1.msra.mxu0 0.0
        %3327 = vmatprep.mubr.f32.mxu0 0.0
        %3328 = vmatmul.mubr.f32.gmra.mrb[0].mxu0 %v3151
        %v3329 = vpop.f32.mrb[0].mxu0
        %v3330 = vadd.f32 %v3133, %v3329
        %v3331 = vpop.f32.mrb[0].mxu0
        %3332 = vmatprep.mubr.f32.mxu0 0.0
        %3333 = vmatmul.mubr.f32.gmra.mrb[0].mxu0 %v3154
        %v3334 = vpop.f32.mrb[0].mxu0
        %v3335 = vadd.f32 %v3138, %v3334
        %v3336 = vpop.f32.mrb[0].mxu0
        %3337 = vmatprep.mubr.f32.mxu0 0.0
        %3338 = vmatmul.mubr.f32.gmra.mrb[0].mxu0 %v3157
        %v3339 = vpop.f32.mrb[0].mxu0
        %v3340 = vadd.f32 %v3143, %v3339
        %v3341 = vpop.f32.mrb[0].mxu0
        %3342 = vmatprep.mubr.f32.mxu0 0.0
        %3343 = vmatmul.mubr.f32.gmra.mrb[0].mxu0 %v3160
        %v3344 = vpop.f32.mrb[0].mxu0
        %v3345 = vadd.f32 %v3148, %v3344
        %v3346 = vpop.f32.mrb[0].mxu0
        %3347 = vdwg.mxu0
        %v3348 = vtanh.pop %v3330
        %v3349 = vtanh.pop %v3335
        %v3350 = vtanh.pop %v3340
        %v3351 = vtanh.pop %v3345
        %v3352 = vmul.f32 %v3348, 0.016666668
        %v3353 = vmul.f32 %v3349, 0.016666668
        %v3354 = vmul.f32 %v3350, 0.016666668
        %v3355 = vmul.f32 %v3351, 0.016666668
        %v3356 = vadd.f32 %v3251, %v3352
        %v3357 = vadd.f32 %v3252, %v3353
        %v3358 = vadd.f32 %v3253, %v3354
        %v3359 = vadd.f32 %v3254, %v3355
        %v3360 = vmul.f32 %v3348, 0.025
        %v3361 = vmul.f32 %v3349, 0.025
        %v3362 = vmul.f32 %v3350, 0.025
        %v3363 = vmul.f32 %v3351, 0.025
        %v3364 = vadd.f32 %v2695, %v3360
        %v3365 = vadd.f32 %v2696, %v3361
        %v3366 = vadd.f32 %v2697, %v3362
        %v3367 = vadd.f32 %v2698, %v3363
        %3368 = vmatprep.subr.mxu0 0.0
        %3369 = vmatpush1.msra.mxu0 %v3364
        %3370 = vmatprep.subr.mxu0 0.0
        %3371 = vmatpush1.msra.mxu0 %v3365
        %3372 = vmatprep.subr.mxu0 0.0
        %3373 = vmatpush1.msra.mxu0 %v3366
        %3374 = vmatprep.subr.mxu0 0.0
        %3375 = vmatpush1.msra.mxu0 %v3367
        %3376 = vmatprep.subr.mxu0 0.0
        %3377 = vmatpush1.msra.mxu0 0.0
        %3378 = vmatprep.subr.mxu0 0.0
        %3379 = vmatpush1.msra.mxu0 0.0
        %3380 = vmatprep.subr.mxu0 0.0
        %3381 = vmatpush1.msra.mxu0 0.0
        %3382 = vmatprep.subr.mxu0 0.0
        %3383 = vmatpush1.msra.mxu0 0.0
        %3384 = vmatprep.subr.mxu0 0.0
        %3385 = vmatpush1.msra.mxu0 0.0
        %3386 = vmatprep.subr.mxu0 0.0
        %3387 = vmatpush1.msra.mxu0 0.0
        %3388 = vmatprep.subr.mxu0 0.0
        %3389 = vmatpush1.msra.mxu0 0.0
        %3390 = vmatprep.subr.mxu0 0.0
        %3391 = vmatpush1.msra.mxu0 0.0
        %3392 = vmatprep.subr.mxu0 0.0
        %3393 = vmatpush1.msra.mxu0 0.0
        %3394 = vmatprep.subr.mxu0 0.0
        %3395 = vmatpush1.msra.mxu0 0.0
        %3396 = vmatprep.subr.mxu0 0.0
        %3397 = vmatpush1.msra.mxu0 0.0
        %3398 = vmatprep.subr.mxu0 0.0
        %3399 = vmatpush1.msra.mxu0 0.0
        %3400 = vmatprep.subr.mxu0 0.0
        %3401 = vmatpush1.msra.mxu0 0.0
        %3402 = vmatprep.subr.mxu0 0.0
        %3403 = vmatpush1.msra.mxu0 0.0
        %3404 = vmatprep.subr.mxu0 0.0
        %3405 = vmatpush1.msra.mxu0 0.0
        %3406 = vmatprep.subr.mxu0 0.0
        %3407 = vmatpush1.msra.mxu0 0.0
        %3408 = vmatprep.subr.mxu0 0.0
        %3409 = vmatpush1.msra.mxu0 0.0
        %3410 = vmatprep.subr.mxu0 0.0
        %3411 = vmatpush1.msra.mxu0 0.0
        %3412 = vmatprep.subr.mxu0 0.0
        %3413 = vmatpush1.msra.mxu0 0.0
        %3414 = vmatprep.subr.mxu0 0.0
        %3415 = vmatpush1.msra.mxu0 0.0
        %3416 = vmatprep.subr.mxu0 0.0
        %3417 = vmatpush1.msra.mxu0 0.0
        %3418 = vmatprep.subr.mxu0 0.0
        %3419 = vmatpush1.msra.mxu0 0.0
        %3420 = vmatprep.subr.mxu0 0.0
        %3421 = vmatpush1.msra.mxu0 0.0
        %3422 = vmatprep.subr.mxu0 0.0
        %3423 = vmatpush1.msra.mxu0 0.0
        %3424 = vmatprep.subr.mxu0 0.0
        %3425 = vmatpush1.msra.mxu0 0.0
        %3426 = vmatprep.subr.mxu0 0.0
        %3427 = vmatpush1.msra.mxu0 0.0
        %3428 = vmatprep.subr.mxu0 0.0
        %3429 = vmatpush1.msra.mxu0 0.0
        %3430 = vmatprep.subr.mxu0 0.0
        %3431 = vmatpush1.msra.mxu0 0.0
        %3432 = vmatprep.mubr.f32.mxu0 0.0
        %3433 = vmatmul.mubr.f32.gmra.mrb[0].mxu0 %v3151
        %v3434 = vpop.f32.mrb[0].mxu0
        %v3435 = vadd.f32 %v3133, %v3434
        %v3436 = vpop.f32.mrb[0].mxu0
        %3437 = vmatprep.mubr.f32.mxu0 0.0
        %3438 = vmatmul.mubr.f32.gmra.mrb[0].mxu0 %v3154
        %v3439 = vpop.f32.mrb[0].mxu0
        %v3440 = vadd.f32 %v3138, %v3439
        %v3441 = vpop.f32.mrb[0].mxu0
        %3442 = vmatprep.mubr.f32.mxu0 0.0
        %3443 = vmatmul.mubr.f32.gmra.mrb[0].mxu0 %v3157
        %v3444 = vpop.f32.mrb[0].mxu0
        %v3445 = vadd.f32 %v3143, %v3444
        %v3446 = vpop.f32.mrb[0].mxu0
        %3447 = vmatprep.mubr.f32.mxu0 0.0
        %3448 = vmatmul.mubr.f32.gmra.mrb[0].mxu0 %v3160
        %v3449 = vpop.f32.mrb[0].mxu0
        %v3450 = vadd.f32 %v3148, %v3449
        %v3451 = vpop.f32.mrb[0].mxu0
        %3452 = vdwg.mxu0
        %v3453 = vtanh.pop %v3435
        %v3454 = vtanh.pop %v3440
        %v3455 = vtanh.pop %v3445
        %v3456 = vtanh.pop %v3450
        %v3457 = vmul.f32 %v3453, 0.016666668
        %v3458 = vmul.f32 %v3454, 0.016666668
        %v3459 = vmul.f32 %v3455, 0.016666668
        %v3460 = vmul.f32 %v3456, 0.016666668
        %v3461 = vadd.f32 %v3356, %v3457
        %v3462 = vadd.f32 %v3357, %v3458
        %v3463 = vadd.f32 %v3358, %v3459
        %v3464 = vadd.f32 %v3359, %v3460
        %v3465 = vmul.f32 %v3453, 0.05
        %v3466 = vmul.f32 %v3454, 0.05
        %v3467 = vmul.f32 %v3455, 0.05
        %v3468 = vmul.f32 %v3456, 0.05
        %v3469 = vadd.f32 %v2695, %v3465
        %v3470 = vadd.f32 %v2696, %v3466
        %v3471 = vadd.f32 %v2697, %v3467
        %v3472 = vadd.f32 %v2698, %v3468
        %3473 = vmatprep.subr.mxu0 0.0
        %3474 = vmatpush1.msra.mxu0 %v3469
        %3475 = vmatprep.subr.mxu0 0.0
        %3476 = vmatpush1.msra.mxu0 %v3470
        %3477 = vmatprep.subr.mxu0 0.0
        %3478 = vmatpush1.msra.mxu0 %v3471
        %3479 = vmatprep.subr.mxu0 0.0
        %3480 = vmatpush1.msra.mxu0 %v3472
        %3481 = vmatprep.subr.mxu0 0.0
        %3482 = vmatpush1.msra.mxu0 0.0
        %3483 = vmatprep.subr.mxu0 0.0
        %3484 = vmatpush1.msra.mxu0 0.0
        %3485 = vmatprep.subr.mxu0 0.0
        %3486 = vmatpush1.msra.mxu0 0.0
        %3487 = vmatprep.subr.mxu0 0.0
        %3488 = vmatpush1.msra.mxu0 0.0
        %3489 = vmatprep.subr.mxu0 0.0
        %3490 = vmatpush1.msra.mxu0 0.0
        %3491 = vmatprep.subr.mxu0 0.0
        %3492 = vmatpush1.msra.mxu0 0.0
        %3493 = vmatprep.subr.mxu0 0.0
        %3494 = vmatpush1.msra.mxu0 0.0
        %3495 = vmatprep.subr.mxu0 0.0
        %3496 = vmatpush1.msra.mxu0 0.0
        %3497 = vmatprep.subr.mxu0 0.0
        %3498 = vmatpush1.msra.mxu0 0.0
        %3499 = vmatprep.subr.mxu0 0.0
        %3500 = vmatpush1.msra.mxu0 0.0
        %3501 = vmatprep.subr.mxu0 0.0
        %3502 = vmatpush1.msra.mxu0 0.0
        %3503 = vmatprep.subr.mxu0 0.0
        %3504 = vmatpush1.msra.mxu0 0.0
        %3505 = vmatprep.subr.mxu0 0.0
        %3506 = vmatpush1.msra.mxu0 0.0
        %3507 = vmatprep.subr.mxu0 0.0
        %3508 = vmatpush1.msra.mxu0 0.0
        %3509 = vmatprep.subr.mxu0 0.0
        %3510 = vmatpush1.msra.mxu0 0.0
        %3511 = vmatprep.subr.mxu0 0.0
        %3512 = vmatpush1.msra.mxu0 0.0
        %3513 = vmatprep.subr.mxu0 0.0
        %3514 = vmatpush1.msra.mxu0 0.0
        %3515 = vmatprep.subr.mxu0 0.0
        %3516 = vmatpush1.msra.mxu0 0.0
        %3517 = vmatprep.subr.mxu0 0.0
        %3518 = vmatpush1.msra.mxu0 0.0
        %3519 = vmatprep.subr.mxu0 0.0
        %3520 = vmatpush1.msra.mxu0 0.0
        %3521 = vmatprep.subr.mxu0 0.0
        %3522 = vmatpush1.msra.mxu0 0.0
        %3523 = vmatprep.subr.mxu0 0.0
        %3524 = vmatpush1.msra.mxu0 0.0
        %3525 = vmatprep.subr.mxu0 0.0
        %3526 = vmatpush1.msra.mxu0 0.0
        %3527 = vmatprep.subr.mxu0 0.0
        %3528 = vmatpush1.msra.mxu0 0.0
        %3529 = vmatprep.subr.mxu0 0.0
        %3530 = vmatpush1.msra.mxu0 0.0
        %3531 = vmatprep.subr.mxu0 0.0
        %3532 = vmatpush1.msra.mxu0 0.0
        %3533 = vmatprep.subr.mxu0 0.0
        %3534 = vmatpush1.msra.mxu0 0.0
        %3535 = vmatprep.subr.mxu0 0.0
        %3536 = vmatpush1.msra.mxu0 0.0
        %3537 = vmatprep.mubr.f32.mxu0 0.0
        %3538 = vmatmul.mubr.f32.gmra.mrb[0].mxu0 %v3151
        %v3539 = vpop.f32.mrb[0].mxu0
        %v3540 = vadd.f32 %v3133, %v3539
        %v3541 = vpop.f32.mrb[0].mxu0
        %3542 = vmatprep.mubr.f32.mxu0 0.0
        %3543 = vmatmul.mubr.f32.gmra.mrb[0].mxu0 %v3154
        %v3544 = vpop.f32.mrb[0].mxu0
        %v3545 = vadd.f32 %v3138, %v3544
        %v3546 = vpop.f32.mrb[0].mxu0
        %3547 = vmatprep.mubr.f32.mxu0 0.0
        %3548 = vmatmul.mubr.f32.gmra.mrb[0].mxu0 %v3157
        %v3549 = vpop.f32.mrb[0].mxu0
        %v3550 = vadd.f32 %v3143, %v3549
        %v3551 = vpop.f32.mrb[0].mxu0
        %3552 = vmatprep.mubr.f32.mxu0 0.0
        %3553 = vmatmul.mubr.f32.gmra.mrb[0].mxu0 %v3160
        %v3554 = vpop.f32.mrb[0].mxu0
        %v3555 = vadd.f32 %v3148, %v3554
        %v3556 = vpop.f32.mrb[0].mxu0
        %3557 = vdwg.mxu0
        %v3558 = vtanh.pop %v3540
        %v3559 = vtanh.pop %v3545
        %v3560 = vtanh.pop %v3550
        %v3561 = vtanh.pop %v3555
        %v3562 = vadd.f32 %v2695, %v3461
        %v3563 = vadd.f32 %v2696, %v3462
        %v3564 = vadd.f32 %v2697, %v3463
        %v3565 = vadd.f32 %v2698, %v3464
        %v3566 = vmul.f32 %v3558, 0.008333334
        %v3567 = vmul.f32 %v3559, 0.008333334
        %v3568 = vmul.f32 %v3560, 0.008333334
        %v3569 = vmul.f32 %v3561, 0.008333334
        %v3570 = vadd.f32 %v3562, %v3566
        %v3571 = vadd.f32 %v3563, %v3567
        %v3572 = vadd.f32 %v3564, %v3568
        %v3573 = vadd.f32 %v3565, %v3569
        %s3574 = scalar_lea.vmem %s283, 256 [#allocation4]
        %3575 = vst [vmem:[%s3574] sm:$0xff] %v3570
        %3576 = vst [vmem:[%s3574 + $0x10] sm:$0xff] %v3571
        %3577 = vst [vmem:[%s3574 + $0x20] sm:$0xff] %v3572
        %3578 = vst [vmem:[%s3574 + $0x30] sm:$0xff] %v3573
        %3579 = vmatprep.subr.mxu0 0.0
        %3580 = vmatpush1.msra.mxu0 %v3112
        %3581 = vmatprep.subr.mxu0 0.0
        %3582 = vmatpush1.msra.mxu0 %v3113
        %3583 = vmatprep.subr.mxu0 0.0
        %3584 = vmatpush1.msra.mxu0 %v3114
        %3585 = vmatprep.subr.mxu0 0.0
        %3586 = vmatpush1.msra.mxu0 %v3115
        %3587 = vmatprep.subr.mxu0 0.0
        %3588 = vmatpush1.msra.mxu0 0.0
        %3589 = vmatprep.subr.mxu0 0.0
        %3590 = vmatpush1.msra.mxu0 0.0
        %3591 = vmatprep.subr.mxu0 0.0
        %3592 = vmatpush1.msra.mxu0 0.0
        %3593 = vmatprep.subr.mxu0 0.0
        %3594 = vmatpush1.msra.mxu0 0.0
        %3595 = vmatprep.subr.mxu0 0.0
        %3596 = vmatpush1.msra.mxu0 0.0
        %3597 = vmatprep.subr.mxu0 0.0
        %3598 = vmatpush1.msra.mxu0 0.0
        %3599 = vmatprep.subr.mxu0 0.0
        %3600 = vmatpush1.msra.mxu0 0.0
        %3601 = vmatprep.subr.mxu0 0.0
        %3602 = vmatpush1.msra.mxu0 0.0
        %3603 = vmatprep.subr.mxu0 0.0
        %3604 = vmatpush1.msra.mxu0 0.0
        %3605 = vmatprep.subr.mxu0 0.0
        %3606 = vmatpush1.msra.mxu0 0.0
        %3607 = vmatprep.subr.mxu0 0.0
        %3608 = vmatpush1.msra.mxu0 0.0
        %3609 = vmatprep.subr.mxu0 0.0
        %3610 = vmatpush1.msra.mxu0 0.0
        %3611 = vmatprep.subr.mxu0 0.0
        %3612 = vmatpush1.msra.mxu0 0.0
        %3613 = vmatprep.subr.mxu0 0.0
        %3614 = vmatpush1.msra.mxu0 0.0
        %3615 = vmatprep.subr.mxu0 0.0
        %3616 = vmatpush1.msra.mxu0 0.0
        %3617 = vmatprep.subr.mxu0 0.0
        %3618 = vmatpush1.msra.mxu0 0.0
        %3619 = vmatprep.subr.mxu0 0.0
        %3620 = vmatpush1.msra.mxu0 0.0
        %3621 = vmatprep.subr.mxu0 0.0
        %3622 = vmatpush1.msra.mxu0 0.0
        %3623 = vmatprep.subr.mxu0 0.0
        %3624 = vmatpush1.msra.mxu0 0.0
        %3625 = vmatprep.subr.mxu0 0.0
        %3626 = vmatpush1.msra.mxu0 0.0
        %3627 = vmatprep.subr.mxu0 0.0
        %3628 = vmatpush1.msra.mxu0 0.0
        %3629 = vmatprep.subr.mxu0 0.0
        %3630 = vmatpush1.msra.mxu0 0.0
        %3631 = vmatprep.subr.mxu0 0.0
        %3632 = vmatpush1.msra.mxu0 0.0
        %3633 = vmatprep.subr.mxu0 0.0
        %3634 = vmatpush1.msra.mxu0 0.0
        %3635 = vmatprep.subr.mxu0 0.0
        %3636 = vmatpush1.msra.mxu0 0.0
        %3637 = vmatprep.subr.mxu0 0.0
        %3638 = vmatpush1.msra.mxu0 0.0
        %3639 = vmatprep.subr.mxu0 0.0
        %3640 = vmatpush1.msra.mxu0 0.0
        %3641 = vmatprep.subr.mxu0 0.0
        %3642 = vmatpush1.msra.mxu0 0.0
        %3643 = vmatprep.mubr.f32.mxu0 0.0
        %3644 = vmatmul.mubr.f32.gmra.mrb[0].mxu0 %v3151
        %v3645 = vpop.f32.mrb[0].mxu0
        %v3646 = vadd.f32 %v3133, %v3645
        %v3647 = vpop.f32.mrb[0].mxu0
        %3648 = vmatprep.mubr.f32.mxu0 0.0
        %3649 = vmatmul.mubr.f32.gmra.mrb[0].mxu0 %v3154
        %v3650 = vpop.f32.mrb[0].mxu0
        %v3651 = vadd.f32 %v3138, %v3650
        %v3652 = vpop.f32.mrb[0].mxu0
        %3653 = vmatprep.mubr.f32.mxu0 0.0
        %3654 = vmatmul.mubr.f32.gmra.mrb[0].mxu0 %v3157
        %v3655 = vpop.f32.mrb[0].mxu0
        %v3656 = vadd.f32 %v3143, %v3655
        %v3657 = vpop.f32.mrb[0].mxu0
        %3658 = vmatprep.mubr.f32.mxu0 0.0
        %3659 = vmatmul.mubr.f32.gmra.mrb[0].mxu0 %v3160
        %v3660 = vpop.f32.mrb[0].mxu0
        %v3661 = vadd.f32 %v3148, %v3660
        %v3662 = vpop.f32.mrb[0].mxu0
        %3663 = vdwg.mxu0
        %v3664 = vtanh.pop %v3646
        %v3665 = vtanh.pop %v3651
        %v3666 = vtanh.pop %v3656
        %v3667 = vtanh.pop %v3661
        %v3668 = vmul.f32 %v3664, 0.008333334
        %v3669 = vmul.f32 %v3665, 0.008333334
        %v3670 = vmul.f32 %v3666, 0.008333334
        %v3671 = vmul.f32 %v3667, 0.008333334
        %v3672 = vmul.f32 %v3664, 0.025
        %v3673 = vmul.f32 %v3665, 0.025
        %v3674 = vmul.f32 %v3666, 0.025
        %v3675 = vmul.f32 %v3667, 0.025
        %v3676 = vadd.f32 %v3112, %v3672
        %v3677 = vadd.f32 %v3113, %v3673
        %v3678 = vadd.f32 %v3114, %v3674
        %v3679 = vadd.f32 %v3115, %v3675
        %3680 = vmatprep.subr.mxu0 0.0
        %3681 = vmatpush1.msra.mxu0 %v3676
        %3682 = vmatprep.subr.mxu0 0.0
        %3683 = vmatpush1.msra.mxu0 %v3677
        %3684 = vmatprep.subr.mxu0 0.0
        %3685 = vmatpush1.msra.mxu0 %v3678
        %3686 = vmatprep.subr.mxu0 0.0
        %3687 = vmatpush1.msra.mxu0 %v3679
        %3688 = vmatprep.subr.mxu0 0.0
        %3689 = vmatpush1.msra.mxu0 0.0
        %3690 = vmatprep.subr.mxu0 0.0
        %3691 = vmatpush1.msra.mxu0 0.0
        %3692 = vmatprep.subr.mxu0 0.0
        %3693 = vmatpush1.msra.mxu0 0.0
        %3694 = vmatprep.subr.mxu0 0.0
        %3695 = vmatpush1.msra.mxu0 0.0
        %3696 = vmatprep.subr.mxu0 0.0
        %3697 = vmatpush1.msra.mxu0 0.0
        %3698 = vmatprep.subr.mxu0 0.0
        %3699 = vmatpush1.msra.mxu0 0.0
        %3700 = vmatprep.subr.mxu0 0.0
        %3701 = vmatpush1.msra.mxu0 0.0
        %3702 = vmatprep.subr.mxu0 0.0
        %3703 = vmatpush1.msra.mxu0 0.0
        %3704 = vmatprep.subr.mxu0 0.0
        %3705 = vmatpush1.msra.mxu0 0.0
        %3706 = vmatprep.subr.mxu0 0.0
        %3707 = vmatpush1.msra.mxu0 0.0
        %3708 = vmatprep.subr.mxu0 0.0
        %3709 = vmatpush1.msra.mxu0 0.0
        %3710 = vmatprep.subr.mxu0 0.0
        %3711 = vmatpush1.msra.mxu0 0.0
        %3712 = vmatprep.subr.mxu0 0.0
        %3713 = vmatpush1.msra.mxu0 0.0
        %3714 = vmatprep.subr.mxu0 0.0
        %3715 = vmatpush1.msra.mxu0 0.0
        %3716 = vmatprep.subr.mxu0 0.0
        %3717 = vmatpush1.msra.mxu0 0.0
        %3718 = vmatprep.subr.mxu0 0.0
        %3719 = vmatpush1.msra.mxu0 0.0
        %3720 = vmatprep.subr.mxu0 0.0
        %3721 = vmatpush1.msra.mxu0 0.0
        %3722 = vmatprep.subr.mxu0 0.0
        %3723 = vmatpush1.msra.mxu0 0.0
        %3724 = vmatprep.subr.mxu0 0.0
        %3725 = vmatpush1.msra.mxu0 0.0
        %3726 = vmatprep.subr.mxu0 0.0
        %3727 = vmatpush1.msra.mxu0 0.0
        %3728 = vmatprep.subr.mxu0 0.0
        %3729 = vmatpush1.msra.mxu0 0.0
        %3730 = vmatprep.subr.mxu0 0.0
        %3731 = vmatpush1.msra.mxu0 0.0
        %3732 = vmatprep.subr.mxu0 0.0
        %3733 = vmatpush1.msra.mxu0 0.0
        %3734 = vmatprep.subr.mxu0 0.0
        %3735 = vmatpush1.msra.mxu0 0.0
        %3736 = vmatprep.subr.mxu0 0.0
        %3737 = vmatpush1.msra.mxu0 0.0
        %3738 = vmatprep.subr.mxu0 0.0
        %3739 = vmatpush1.msra.mxu0 0.0
        %3740 = vmatprep.subr.mxu0 0.0
        %3741 = vmatpush1.msra.mxu0 0.0
        %3742 = vmatprep.subr.mxu0 0.0
        %3743 = vmatpush1.msra.mxu0 0.0
        %3744 = vmatprep.mubr.f32.mxu0 0.0
        %3745 = vmatmul.mubr.f32.gmra.mrb[0].mxu0 %v3151
        %v3746 = vpop.f32.mrb[0].mxu0
        %v3747 = vadd.f32 %v3133, %v3746
        %v3748 = vpop.f32.mrb[0].mxu0
        %3749 = vmatprep.mubr.f32.mxu0 0.0
        %3750 = vmatmul.mubr.f32.gmra.mrb[0].mxu0 %v3154
        %v3751 = vpop.f32.mrb[0].mxu0
        %v3752 = vadd.f32 %v3138, %v3751
        %v3753 = vpop.f32.mrb[0].mxu0
        %3754 = vmatprep.mubr.f32.mxu0 0.0
        %3755 = vmatmul.mubr.f32.gmra.mrb[0].mxu0 %v3157
        %v3756 = vpop.f32.mrb[0].mxu0
        %v3757 = vadd.f32 %v3143, %v3756
        %v3758 = vpop.f32.mrb[0].mxu0
        %3759 = vmatprep.mubr.f32.mxu0 0.0
        %3760 = vmatmul.mubr.f32.gmra.mrb[0].mxu0 %v3160
        %v3761 = vpop.f32.mrb[0].mxu0
        %v3762 = vadd.f32 %v3148, %v3761
        %v3763 = vpop.f32.mrb[0].mxu0
        %3764 = vdwg.mxu0
        %v3765 = vtanh.pop %v3747
        %v3766 = vtanh.pop %v3752
        %v3767 = vtanh.pop %v3757
        %v3768 = vtanh.pop %v3762
        %v3769 = vmul.f32 %v3765, 0.016666668
        %v3770 = vmul.f32 %v3766, 0.016666668
        %v3771 = vmul.f32 %v3767, 0.016666668
        %v3772 = vmul.f32 %v3768, 0.016666668
        %v3773 = vadd.f32 %v3668, %v3769
        %v3774 = vadd.f32 %v3669, %v3770
        %v3775 = vadd.f32 %v3670, %v3771
        %v3776 = vadd.f32 %v3671, %v3772
        %v3777 = vmul.f32 %v3765, 0.025
        %v3778 = vmul.f32 %v3766, 0.025
        %v3779 = vmul.f32 %v3767, 0.025
        %v3780 = vmul.f32 %v3768, 0.025
        %v3781 = vadd.f32 %v3112, %v3777
        %v3782 = vadd.f32 %v3113, %v3778
        %v3783 = vadd.f32 %v3114, %v3779
        %v3784 = vadd.f32 %v3115, %v3780
        %3785 = vmatprep.subr.mxu0 0.0
        %3786 = vmatpush1.msra.mxu0 %v3781
        %3787 = vmatprep.subr.mxu0 0.0
        %3788 = vmatpush1.msra.mxu0 %v3782
        %3789 = vmatprep.subr.mxu0 0.0
        %3790 = vmatpush1.msra.mxu0 %v3783
        %3791 = vmatprep.subr.mxu0 0.0
        %3792 = vmatpush1.msra.mxu0 %v3784
        %3793 = vmatprep.subr.mxu0 0.0
        %3794 = vmatpush1.msra.mxu0 0.0
        %3795 = vmatprep.subr.mxu0 0.0
        %3796 = vmatpush1.msra.mxu0 0.0
        %3797 = vmatprep.subr.mxu0 0.0
        %3798 = vmatpush1.msra.mxu0 0.0
        %3799 = vmatprep.subr.mxu0 0.0
        %3800 = vmatpush1.msra.mxu0 0.0
        %3801 = vmatprep.subr.mxu0 0.0
        %3802 = vmatpush1.msra.mxu0 0.0
        %3803 = vmatprep.subr.mxu0 0.0
        %3804 = vmatpush1.msra.mxu0 0.0
        %3805 = vmatprep.subr.mxu0 0.0
        %3806 = vmatpush1.msra.mxu0 0.0
        %3807 = vmatprep.subr.mxu0 0.0
        %3808 = vmatpush1.msra.mxu0 0.0
        %3809 = vmatprep.subr.mxu0 0.0
        %3810 = vmatpush1.msra.mxu0 0.0
        %3811 = vmatprep.subr.mxu0 0.0
        %3812 = vmatpush1.msra.mxu0 0.0
        %3813 = vmatprep.subr.mxu0 0.0
        %3814 = vmatpush1.msra.mxu0 0.0
        %3815 = vmatprep.subr.mxu0 0.0
        %3816 = vmatpush1.msra.mxu0 0.0
        %3817 = vmatprep.subr.mxu0 0.0
        %3818 = vmatpush1.msra.mxu0 0.0
        %3819 = vmatprep.subr.mxu0 0.0
        %3820 = vmatpush1.msra.mxu0 0.0
        %3821 = vmatprep.subr.mxu0 0.0
        %3822 = vmatpush1.msra.mxu0 0.0
        %3823 = vmatprep.subr.mxu0 0.0
        %3824 = vmatpush1.msra.mxu0 0.0
        %3825 = vmatprep.subr.mxu0 0.0
        %3826 = vmatpush1.msra.mxu0 0.0
        %3827 = vmatprep.subr.mxu0 0.0
        %3828 = vmatpush1.msra.mxu0 0.0
        %3829 = vmatprep.subr.mxu0 0.0
        %3830 = vmatpush1.msra.mxu0 0.0
        %3831 = vmatprep.subr.mxu0 0.0
        %3832 = vmatpush1.msra.mxu0 0.0
        %3833 = vmatprep.subr.mxu0 0.0
        %3834 = vmatpush1.msra.mxu0 0.0
        %3835 = vmatprep.subr.mxu0 0.0
        %3836 = vmatpush1.msra.mxu0 0.0
        %3837 = vmatprep.subr.mxu0 0.0
        %3838 = vmatpush1.msra.mxu0 0.0
        %3839 = vmatprep.subr.mxu0 0.0
        %3840 = vmatpush1.msra.mxu0 0.0
        %3841 = vmatprep.subr.mxu0 0.0
        %3842 = vmatpush1.msra.mxu0 0.0
        %3843 = vmatprep.subr.mxu0 0.0
        %3844 = vmatpush1.msra.mxu0 0.0
        %3845 = vmatprep.subr.mxu0 0.0
        %3846 = vmatpush1.msra.mxu0 0.0
        %3847 = vmatprep.subr.mxu0 0.0
        %3848 = vmatpush1.msra.mxu0 0.0
        %3849 = vmatprep.mubr.f32.mxu0 0.0
        %3850 = vmatmul.mubr.f32.gmra.mrb[0].mxu0 %v3151
        %v3851 = vpop.f32.mrb[0].mxu0
        %v3852 = vadd.f32 %v3133, %v3851
        %v3853 = vpop.f32.mrb[0].mxu0
        %3854 = vmatprep.mubr.f32.mxu0 0.0
        %3855 = vmatmul.mubr.f32.gmra.mrb[0].mxu0 %v3154
        %v3856 = vpop.f32.mrb[0].mxu0
        %v3857 = vadd.f32 %v3138, %v3856
        %v3858 = vpop.f32.mrb[0].mxu0
        %3859 = vmatprep.mubr.f32.mxu0 0.0
        %3860 = vmatmul.mubr.f32.gmra.mrb[0].mxu0 %v3157
        %v3861 = vpop.f32.mrb[0].mxu0
        %v3862 = vadd.f32 %v3143, %v3861
        %v3863 = vpop.f32.mrb[0].mxu0
        %3864 = vmatprep.mubr.f32.mxu0 0.0
        %3865 = vmatmul.mubr.f32.gmra.mrb[0].mxu0 %v3160
        %v3866 = vpop.f32.mrb[0].mxu0
        %v3867 = vadd.f32 %v3148, %v3866
        %v3868 = vpop.f32.mrb[0].mxu0
        %3869 = vdwg.mxu0
        %v3870 = vtanh.pop %v3852
        %v3871 = vtanh.pop %v3857
        %v3872 = vtanh.pop %v3862
        %v3873 = vtanh.pop %v3867
        %v3874 = vmul.f32 %v3870, 0.016666668
        %v3875 = vmul.f32 %v3871, 0.016666668
        %v3876 = vmul.f32 %v3872, 0.016666668
        %v3877 = vmul.f32 %v3873, 0.016666668
        %v3878 = vadd.f32 %v3773, %v3874
        %v3879 = vadd.f32 %v3774, %v3875
        %v3880 = vadd.f32 %v3775, %v3876
        %v3881 = vadd.f32 %v3776, %v3877
        %v3882 = vmul.f32 %v3870, 0.05
        %v3883 = vmul.f32 %v3871, 0.05
        %v3884 = vmul.f32 %v3872, 0.05
        %v3885 = vmul.f32 %v3873, 0.05
        %v3886 = vadd.f32 %v3112, %v3882
        %v3887 = vadd.f32 %v3113, %v3883
        %v3888 = vadd.f32 %v3114, %v3884
        %v3889 = vadd.f32 %v3115, %v3885
        %3890 = vmatprep.subr.mxu0 0.0
        %3891 = vmatpush1.msra.mxu0 %v3886
        %3892 = vmatprep.subr.mxu0 0.0
        %3893 = vmatpush1.msra.mxu0 %v3887
        %3894 = vmatprep.subr.mxu0 0.0
        %3895 = vmatpush1.msra.mxu0 %v3888
        %3896 = vmatprep.subr.mxu0 0.0
        %3897 = vmatpush1.msra.mxu0 %v3889
        %3898 = vmatprep.subr.mxu0 0.0
        %3899 = vmatpush1.msra.mxu0 0.0
        %3900 = vmatprep.subr.mxu0 0.0
        %3901 = vmatpush1.msra.mxu0 0.0
        %3902 = vmatprep.subr.mxu0 0.0
        %3903 = vmatpush1.msra.mxu0 0.0
        %3904 = vmatprep.subr.mxu0 0.0
        %3905 = vmatpush1.msra.mxu0 0.0
        %3906 = vmatprep.subr.mxu0 0.0
        %3907 = vmatpush1.msra.mxu0 0.0
        %3908 = vmatprep.subr.mxu0 0.0
        %3909 = vmatpush1.msra.mxu0 0.0
        %3910 = vmatprep.subr.mxu0 0.0
        %3911 = vmatpush1.msra.mxu0 0.0
        %3912 = vmatprep.subr.mxu0 0.0
        %3913 = vmatpush1.msra.mxu0 0.0
        %3914 = vmatprep.subr.mxu0 0.0
        %3915 = vmatpush1.msra.mxu0 0.0
        %3916 = vmatprep.subr.mxu0 0.0
        %3917 = vmatpush1.msra.mxu0 0.0
        %3918 = vmatprep.subr.mxu0 0.0
        %3919 = vmatpush1.msra.mxu0 0.0
        %3920 = vmatprep.subr.mxu0 0.0
        %3921 = vmatpush1.msra.mxu0 0.0
        %3922 = vmatprep.subr.mxu0 0.0
        %3923 = vmatpush1.msra.mxu0 0.0
        %3924 = vmatprep.subr.mxu0 0.0
        %3925 = vmatpush1.msra.mxu0 0.0
        %3926 = vmatprep.subr.mxu0 0.0
        %3927 = vmatpush1.msra.mxu0 0.0
        %3928 = vmatprep.subr.mxu0 0.0
        %3929 = vmatpush1.msra.mxu0 0.0
        %3930 = vmatprep.subr.mxu0 0.0
        %3931 = vmatpush1.msra.mxu0 0.0
        %3932 = vmatprep.subr.mxu0 0.0
        %3933 = vmatpush1.msra.mxu0 0.0
        %3934 = vmatprep.subr.mxu0 0.0
        %3935 = vmatpush1.msra.mxu0 0.0
        %3936 = vmatprep.subr.mxu0 0.0
        %3937 = vmatpush1.msra.mxu0 0.0
        %3938 = vmatprep.subr.mxu0 0.0
        %3939 = vmatpush1.msra.mxu0 0.0
        %3940 = vmatprep.subr.mxu0 0.0
        %3941 = vmatpush1.msra.mxu0 0.0
        %3942 = vmatprep.subr.mxu0 0.0
        %3943 = vmatpush1.msra.mxu0 0.0
        %3944 = vmatprep.subr.mxu0 0.0
        %3945 = vmatpush1.msra.mxu0 0.0
        %3946 = vmatprep.subr.mxu0 0.0
        %3947 = vmatpush1.msra.mxu0 0.0
        %3948 = vmatprep.subr.mxu0 0.0
        %3949 = vmatpush1.msra.mxu0 0.0
        %3950 = vmatprep.subr.mxu0 0.0
        %3951 = vmatpush1.msra.mxu0 0.0
        %3952 = vmatprep.subr.mxu0 0.0
        %3953 = vmatpush1.msra.mxu0 0.0
        %3954 = vmatprep.mubr.f32.mxu0 0.0
        %3955 = vmatmul.mubr.f32.gmra.mrb[0].mxu0 %v3151
        %v3956 = vpop.f32.mrb[0].mxu0
        %v3957 = vadd.f32 %v3133, %v3956
        %v3958 = vpop.f32.mrb[0].mxu0
        %3959 = vmatprep.mubr.f32.mxu0 0.0
        %3960 = vmatmul.mubr.f32.gmra.mrb[0].mxu0 %v3154
        %v3961 = vpop.f32.mrb[0].mxu0
        %v3962 = vadd.f32 %v3138, %v3961
        %v3963 = vpop.f32.mrb[0].mxu0
        %3964 = vmatprep.mubr.f32.mxu0 0.0
        %3965 = vmatmul.mubr.f32.gmra.mrb[0].mxu0 %v3157
        %v3966 = vpop.f32.mrb[0].mxu0
        %v3967 = vadd.f32 %v3143, %v3966
        %v3968 = vpop.f32.mrb[0].mxu0
        %3969 = vmatprep.mubr.f32.mxu0 0.0
        %3970 = vmatmul.mubr.f32.gmra.mrb[0].mxu0 %v3160
        %v3971 = vpop.f32.mrb[0].mxu0
        %v3972 = vadd.f32 %v3148, %v3971
        %v3973 = vpop.f32.mrb[0].mxu0
        %3974 = vdwg.mxu0
        %v3975 = vtanh.pop %v3957
        %v3976 = vtanh.pop %v3962
        %v3977 = vtanh.pop %v3967
        %v3978 = vtanh.pop %v3972
        %v3979 = vadd.f32 %v3112, %v3878
        %v3980 = vadd.f32 %v3113, %v3879
        %v3981 = vadd.f32 %v3114, %v3880
        %v3982 = vadd.f32 %v3115, %v3881
        %v3983 = vmul.f32 %v3975, 0.008333334
        %v3984 = vmul.f32 %v3976, 0.008333334
        %v3985 = vmul.f32 %v3977, 0.008333334
        %v3986 = vmul.f32 %v3978, 0.008333334
        %v3987 = vadd.f32 %v3979, %v3983
        %v3988 = vadd.f32 %v3980, %v3984
        %v3989 = vadd.f32 %v3981, %v3985
        %v3990 = vadd.f32 %v3982, %v3986
        %3991 = vst [vmem:[%s3574 + $0x8] sm:$0xff] %v3987
        %3992 = vst [vmem:[%s3574 + $0x18] sm:$0xff] %v3988
        %3993 = vst [vmem:[%s3574 + $0x28] sm:$0xff] %v3989
        %3994 = vst [vmem:[%s3574 + $0x38] sm:$0xff] %v3990
        %v3995 = vld [vmem:[%s4] sm:$0x7]
        %v3996 = vld [vmem:[%s5] sm:$0x7]
        %3998 = vset.pattern.permute.xlu0 0
        %3999 = vperm.xlu0 %3998, %v3996
        %v4000 = vpop.permute.xlu0 %3999
        %v4003 = vsel %vm524, %v3995, 0
        %4005 = vmatprep.subr.mxu0 0.0
        %4006 = vmatpush1.msra.mxu0 %v3570
        %4007 = vmatprep.subr.mxu0 0.0
        %4008 = vmatpush1.msra.mxu0 %v3571
        %4009 = vmatprep.subr.mxu0 0.0
        %4010 = vmatpush1.msra.mxu0 %v3572
        %4011 = vmatprep.subr.mxu0 0.0
        %4012 = vmatpush1.msra.mxu0 %v3573
        %4013 = vmatprep.subr.mxu0 0.0
        %4014 = vmatpush1.msra.mxu0 0.0
        %4015 = vmatprep.subr.mxu0 0.0
        %4016 = vmatpush1.msra.mxu0 0.0
        %4017 = vmatprep.subr.mxu0 0.0
        %4018 = vmatpush1.msra.mxu0 0.0
        %4019 = vmatprep.subr.mxu0 0.0
        %4020 = vmatpush1.msra.mxu0 0.0
        %4021 = vmatprep.subr.mxu0 0.0
        %4022 = vmatpush1.msra.mxu0 0.0
        %4023 = vmatprep.subr.mxu0 0.0
        %4024 = vmatpush1.msra.mxu0 0.0
        %4025 = vmatprep.subr.mxu0 0.0
        %4026 = vmatpush1.msra.mxu0 0.0
        %4027 = vmatprep.subr.mxu0 0.0
        %4028 = vmatpush1.msra.mxu0 0.0
        %4029 = vmatprep.subr.mxu0 0.0
        %4030 = vmatpush1.msra.mxu0 0.0
        %4031 = vmatprep.subr.mxu0 0.0
        %4032 = vmatpush1.msra.mxu0 0.0
        %4033 = vmatprep.subr.mxu0 0.0
        %4034 = vmatpush1.msra.mxu0 0.0
        %4035 = vmatprep.subr.mxu0 0.0
        %4036 = vmatpush1.msra.mxu0 0.0
        %4037 = vmatprep.subr.mxu0 0.0
        %4038 = vmatpush1.msra.mxu0 0.0
        %4039 = vmatprep.subr.mxu0 0.0
        %4040 = vmatpush1.msra.mxu0 0.0
        %4041 = vmatprep.subr.mxu0 0.0
        %4042 = vmatpush1.msra.mxu0 0.0
        %4043 = vmatprep.subr.mxu0 0.0
        %4044 = vmatpush1.msra.mxu0 0.0
        %4045 = vmatprep.subr.mxu0 0.0
        %4046 = vmatpush1.msra.mxu0 0.0
        %4047 = vmatprep.subr.mxu0 0.0
        %4048 = vmatpush1.msra.mxu0 0.0
        %4049 = vmatprep.subr.mxu0 0.0
        %4050 = vmatpush1.msra.mxu0 0.0
        %4051 = vmatprep.subr.mxu0 0.0
        %4052 = vmatpush1.msra.mxu0 0.0
        %4053 = vmatprep.subr.mxu0 0.0
        %4054 = vmatpush1.msra.mxu0 0.0
        %4055 = vmatprep.subr.mxu0 0.0
        %4056 = vmatpush1.msra.mxu0 0.0
        %4057 = vmatprep.subr.mxu0 0.0
        %4058 = vmatpush1.msra.mxu0 0.0
        %4059 = vmatprep.subr.mxu0 0.0
        %4060 = vmatpush1.msra.mxu0 0.0
        %4061 = vmatprep.subr.mxu0 0.0
        %4062 = vmatpush1.msra.mxu0 0.0
        %4063 = vmatprep.subr.mxu0 0.0
        %4064 = vmatpush1.msra.mxu0 0.0
        %4065 = vmatprep.subr.mxu0 0.0
        %4066 = vmatpush1.msra.mxu0 0.0
        %4067 = vmatprep.subr.mxu0 0.0
        %4068 = vmatpush1.msra.mxu0 0.0
        %4069 = vmatprep.mubr.f32.mxu0 0.0
        %4070 = vmatmul.mubr.f32.gmra.mrb[0].mxu0 %v4003
        %v4071 = vpop.f32.mrb[0].mxu0
        %v4072 = vadd.f32 %v4000, %v4071
        %v4073 = vpop.f32.mrb[0].mxu0
        %4074 = vdwg.mxu0
        %4075 = vst [vmem:[%s276] sm:$0x7] %v4072
        %4076 = vmatprep.subr.mxu0 0.0
        %4077 = vmatpush1.msra.mxu0 %v3987
        %4078 = vmatprep.subr.mxu0 0.0
        %4079 = vmatpush1.msra.mxu0 %v3988
        %4080 = vmatprep.subr.mxu0 0.0
        %4081 = vmatpush1.msra.mxu0 %v3989
        %4082 = vmatprep.subr.mxu0 0.0
        %4083 = vmatpush1.msra.mxu0 %v3990
        %4084 = vmatprep.subr.mxu0 0.0
        %4085 = vmatpush1.msra.mxu0 0.0
        %4086 = vmatprep.subr.mxu0 0.0
        %4087 = vmatpush1.msra.mxu0 0.0
        %4088 = vmatprep.subr.mxu0 0.0
        %4089 = vmatpush1.msra.mxu0 0.0
        %4090 = vmatprep.subr.mxu0 0.0
        %4091 = vmatpush1.msra.mxu0 0.0
        %4092 = vmatprep.subr.mxu0 0.0
        %4093 = vmatpush1.msra.mxu0 0.0
        %4094 = vmatprep.subr.mxu0 0.0
        %4095 = vmatpush1.msra.mxu0 0.0
        %4096 = vmatprep.subr.mxu0 0.0
        %4097 = vmatpush1.msra.mxu0 0.0
        %4098 = vmatprep.subr.mxu0 0.0
        %4099 = vmatpush1.msra.mxu0 0.0
        %4100 = vmatprep.subr.mxu0 0.0
        %4101 = vmatpush1.msra.mxu0 0.0
        %4102 = vmatprep.subr.mxu0 0.0
        %4103 = vmatpush1.msra.mxu0 0.0
        %4104 = vmatprep.subr.mxu0 0.0
        %4105 = vmatpush1.msra.mxu0 0.0
        %4106 = vmatprep.subr.mxu0 0.0
        %4107 = vmatpush1.msra.mxu0 0.0
        %4108 = vmatprep.subr.mxu0 0.0
        %4109 = vmatpush1.msra.mxu0 0.0
        %4110 = vmatprep.subr.mxu0 0.0
        %4111 = vmatpush1.msra.mxu0 0.0
        %4112 = vmatprep.subr.mxu0 0.0
        %4113 = vmatpush1.msra.mxu0 0.0
        %4114 = vmatprep.subr.mxu0 0.0
        %4115 = vmatpush1.msra.mxu0 0.0
        %4116 = vmatprep.subr.mxu0 0.0
        %4117 = vmatpush1.msra.mxu0 0.0
        %4118 = vmatprep.subr.mxu0 0.0
        %4119 = vmatpush1.msra.mxu0 0.0
        %4120 = vmatprep.subr.mxu0 0.0
        %4121 = vmatpush1.msra.mxu0 0.0
        %4122 = vmatprep.subr.mxu0 0.0
        %4123 = vmatpush1.msra.mxu0 0.0
        %4124 = vmatprep.subr.mxu0 0.0
        %4125 = vmatpush1.msra.mxu0 0.0
        %4126 = vmatprep.subr.mxu0 0.0
        %4127 = vmatpush1.msra.mxu0 0.0
        %4128 = vmatprep.subr.mxu0 0.0
        %4129 = vmatpush1.msra.mxu0 0.0
        %4130 = vmatprep.subr.mxu0 0.0
        %4131 = vmatpush1.msra.mxu0 0.0
        %4132 = vmatprep.subr.mxu0 0.0
        %4133 = vmatpush1.msra.mxu0 0.0
        %4134 = vmatprep.subr.mxu0 0.0
        %4135 = vmatpush1.msra.mxu0 0.0
        %4136 = vmatprep.subr.mxu0 0.0
        %4137 = vmatpush1.msra.mxu0 0.0
        %4138 = vmatprep.subr.mxu0 0.0
        %4139 = vmatpush1.msra.mxu0 0.0
        %4140 = vmatprep.mubr.f32.mxu0 0.0
        %4141 = vmatmul.mubr.f32.gmra.mrb[0].mxu0 %v4003
        %v4142 = vpop.f32.mrb[0].mxu0
        %v4143 = vadd.f32 %v4000, %v4142
        %v4144 = vpop.f32.mrb[0].mxu0
        %4145 = vdwg.mxu0
        %4146 = vst [vmem:[%s276 + $0x4] sm:$0x7] %v4143
        %s4147 = sand.u32 %s164, 1
        %s4148 = scalar_lea.sflag [#allocation3], %s4147
        %s4149 = sand.u32 %s164, 1
        %s4150 = smul.addr %s4149, 8
        %s4151 = scalar_lea.vmem [#allocation2], %s4150
        %s4152 = sand.u32 %s190, 1
        %s4153 = scalar_lea.sflag [#allocation5], %s4152
        %s4154 = sand.u32 %s190, 1
        %s4155 = smul.addr %s4154, 320
        %s4156 = scalar_lea.vmem [#allocation4], %s4155
        // Predicated region
        $region45: #{tpu_custom_call.1} parent=43 // pred_check
          %p4157 = pneg %p174
        $region46: #{tpu_custom_call.1} parent=43 // pred_check_branch
          %4159 = sbr.rel (%p4157) target = $region48
        $region47: #{tpu_custom_call.1} parent=43 // pred_region
          %s4160 = smul.u32 2, %s25
          %s4162 = ssub.s32 128, 128
          %4163 = vsyncadd %s4148, %s4162
          %s4164 = smul.addr %s4160, 64
          %s4165 = scalar_lea.hbm %s6, %s4164
          %s4167 = sshll.u32 %s4151, 4
          %s4168 = int_to_ptr.vmem [resolvable:$true] %s4167
          %4170 = dma.vmem_to_hbm [thread:$0]  %s4168, 128, %s4165, %s4148
        $region48: #{tpu_custom_call.1} parent=43 // pred_fallthru
          _
        // Predicated region
        $region49: #{tpu_custom_call.1} parent=43 // pred_check
          %p4171 = pneg %p200
        $region50: #{tpu_custom_call.1} parent=43 // pred_check_branch
          %4173 = sbr.rel (%p4171) target = $region52
        $region51: #{tpu_custom_call.1} parent=43 // pred_region
          %s4174 = smul.u32 2, %s25
          %s4176 = ssub.s32 5120, 5120
          %4177 = vsyncadd %s4153, %s4176
          %s4178 = smul.addr %s4174, 128
          %s4179 = scalar_lea.hbm %s7, %s4178
          %s4180 = sshll.u32 %s4156, 4
          %s4181 = int_to_ptr.vmem [resolvable:$true] %s4180
          %4186 = dma.vmem_to_hbm [thread:$0]  %s4181, 5120, %s4179, %s4153, 256, 1024, 16
        $region52: #{tpu_custom_call.1} parent=43 // pred_fallthru
          _
      $region44: #{tpu_custom_call.1} parent=5 // pred_fallthru
        _
      %p4187 = scmp.le.s32.totalorder 2, %s20
      // Predicated region
      $region53: #{tpu_custom_call.1} parent=5 // pred_check
        %p4188 = pneg %p4187
      $region54: #{tpu_custom_call.1} parent=5 // pred_check_branch
        %4190 = sbr.rel (%p4188) target = $region56
      $region55: #{tpu_custom_call.1} parent=5 // pred_region
        %s4191 = ssub.s32 %s20, 2
        // Predicated region
        $region57: #{tpu_custom_call.1} parent=55 // pred_check
          %p4192 = pneg %p180
        $region58: #{tpu_custom_call.1} parent=55 // pred_check_branch
          %4194 = sbr.rel (%p4192) target = $region60
        $region59: #{tpu_custom_call.1} parent=55 // pred_region
          %s4195 = sand.u32 %s165, 1
          %s4196 = scalar_lea.sflag [#allocation3], %s4195
          %s4197 = sand.u32 %s165, 1
          %s4198 = smul.addr %s4197, 8
          %s4199 = scalar_lea.vmem [#allocation2], %s4198
          %4200 = dma.done %s4196, 128
        $region60: #{tpu_custom_call.1} parent=55 // pred_fallthru
          _
        // Predicated region
        $region61: #{tpu_custom_call.1} parent=55 // pred_check
          %p4201 = pneg %p206
        $region62: #{tpu_custom_call.1} parent=55 // pred_check_branch
          %4203 = sbr.rel (%p4201) target = $region64
        $region63: #{tpu_custom_call.1} parent=55 // pred_region
          %s4204 = sand.u32 %s191, 1
          %s4205 = scalar_lea.sflag [#allocation5], %s4204
          %s4206 = sand.u32 %s191, 1
          %s4207 = smul.addr %s4206, 320
          %s4208 = scalar_lea.vmem [#allocation4], %s4207
          %4209 = dma.done %s4205, 5120
        $region64: #{tpu_custom_call.1} parent=55 // pred_fallthru
          _
      $region56: #{tpu_custom_call.1} parent=5 // pred_fallthru
        _
    $region6: #{tpu_custom_call.1} parent=1 // loop_footer
      %s24 = sadd.s32 1, %s20
    $region7: #{tpu_custom_call.1} parent=1 // loop_footer_branch
      %19 = sbr.rel target = $region3
    $region8: #{tpu_custom_call.1} parent=1 // loop_exit
      _
    %4210 = vsyncpa [#allocation3], 1
    %s4211 = scalar_lea.sflag [#allocation3], 1
    %4212 = vsyncpa %s4211, 1
    %4213 = vsyncpa [#allocation5], 1
    %s4214 = scalar_lea.sflag [#allocation5], 1
    %4215 = vsyncpa %s4214, 1

</llo_original>
